<compile_context>
chip_gen: v5e
topology: v5e:2x2
jax: 0.10.0
libtpu: 0.0.40
codegen_flags: <defaults>
</compile_context>

<pallas_src>
import functools
import math

import jax
import jax.numpy as jnp
from jax.experimental import pallas as pl
from jax.experimental.pallas import tpu as pltpu

# Only affects the pure-JAX reference / glue and the optional f32-validation mode of
# the kernel.  The production kernel feeds the MXU bf16 operands explicitly.
jax.config.update("jax_default_matmul_precision", "float32")


# ----------------------------------------------------------------------------
# Pallas kernel: one (batch, query-tile) block per grid step
# ----------------------------------------------------------------------------
def _node_edge_kernel(n_head, df, compute_dtype,
                      x_ref, xq_ref, e_ref, mr_ref, mrq_ref, yx1_ref, yx2_ref,
                      wq_ref, bq_ref, wkv_ref, bkv_ref,
                      we12_ref, be12_ref, weo_ref, beo_ref, wxo_ref, bxo_ref,
                      newx_ref, newe_ref):
    X = x_ref[0]                    # (n, dx)   all nodes (keys / values)
    Xq = xq_ref[0]                  # (tq, dx)  query rows of this tile
    Ef = e_ref[0]                   # (tq, n, de)
    mr = mr_ref[0]                  # (n, 1)    node mask, all nodes
    mrq = mrq_ref[0]                # (tq, 1)   node mask, query rows
    n, dx = X.shape
    tq = Xq.shape[0]
    de = Ef.shape[-1]
    inv_sqrt_df = 1.0 / math.sqrt(df)

    def mm(a, b):                   # bf16 (or f32) operands, f32 accumulation
        return jnp.dot(a.astype(compute_dtype), b.astype(compute_dtype),
                       preferred_element_type=jnp.float32)

    # Fused K|V projection over all nodes; Q only for this tile (masked like the ref).
    KV = (mm(X, wkv_ref[...]) + bkv_ref[...]) * mr            # (n, 2dx) f32
    K = KV[:, :dx]
    V = KV[:, dx:]
    Qt = (mm(Xq, wq_ref[...]) + bq_ref[...]) * mrq            # (tq, dx)

    # Edge mask for this tile, built in-kernel from the node mask.
    emf = (mrq[:, None, :] * mr[None, :, :]).reshape(tq * n, 1)

    # Fused e_mul|e_add projection (masked after bias, as in the reference).
    E12 = (mm(Ef.reshape(tq * n, de), we12_ref[...]) + be12_ref[...]) * emf
    E1 = E12[:, :dx]                                          # e_mul
    E2 = E12[:, dx:]                                          # e_add

    # FiLM: Y = (Q*K/sqrt(df)) * (E1+1) + E2, consumed in place.
    Yf = (Qt[:, None, :] * K[None, :, :]).reshape(tq * n, dx) * inv_sqrt_df
    Yf = Yf * (E1 + 1.0) + E2                                 # (tq*n, dx)

    # Edge output projection (lane-dense padded out channels), edge-masked.
    newE = (mm(Yf, weo_ref[...]) + beo_ref[...]) * emf        # (tq*n, de_pad)
    newe_ref[0] = newE.reshape(tq, n, newE.shape[-1])

    # Per-head attention: head scores via lane-slice + reduction, softmax over keys
    # (unmasked, exactly like the reference), then attn @ V_h on the MXU per head.
    Y3 = Yf.reshape(tq, n, dx)
    wv_parts = []
    for h in range(n_head):
        s = jnp.sum(Y3[:, :, h * df:(h + 1) * df], axis=-1)   # (tq, n)
        s_max = jnp.max(s, axis=-1, keepdims=True)
        ex = jnp.exp(s - s_max)
        denom = jnp.sum(ex, axis=-1, keepdims=True)
        attn = ex * pl.reciprocal(denom, approx=True)         # EUP, off the VALU
        wv_parts.append(mm(attn, V[:, h * df:(h + 1) * df]))  # (tq, df)
    wV = jnp.concatenate(wv_parts, axis=-1)                   # (tq, dx)

    # FiLM with globals + x_out projection (lane-dense padded), node-masked.
    pre = yx1_ref[0] + (yx2_ref[0] + 1.0) * wV                # (tq, dx)
    newx_ref[0] = (mm(pre, wxo_ref[...]) + bxo_ref[...]) * mrq


# ----------------------------------------------------------------------------
# Small helpers
# ----------------------------------------------------------------------------
def _round_up(x, m):
    return ((x + m - 1) // m) * m


def _pad_last(a, target):
    pad = target - a.shape[-1]
    if pad == 0:
        return a
    return jnp.pad(a, [(0, 0)] * (a.ndim - 1) + [(0, pad)])


def _choose_q_tile(n, dx, de, de_pad, e_itemsize, vmem_limit_bytes):
    """Largest query tile (multiple of 8 dividing n, or n itself) whose tile-scaled
    VMEM footprint (double-buffered E-in / newE-out + live f32 intermediates) fits
    within ~half of the scoped VMEM limit."""
    budget = vmem_limit_bytes // 2
    cands = sorted({t for t in range(8, n + 1, 8) if n % t == 0} | {n})
    per_row = n * (2 * de * e_itemsize          # E tile (double-buffered)
                   + 2 * de_pad * 4             # newE tile (double-buffered)
                   + 4 * (3 * dx + de_pad))     # E12 / Yf / newE intermediates
    best = cands[0]
    for t in cands:
        if t * per_row <= budget:
            best = t
    return best


def _scoped_vmem_limit(requested):
    """Clamp the requested scoped-VMEM limit against the chip's physical VMEM
    (v7x: 64 MiB/TC vs 128 MiB on v5e/v6e).  Guarded: falls back to `requested`."""
    try:
        info = pltpu.get_tpu_info()
        cap = getattr(info, "vmem_capacity_bytes", None)
        if cap:
            return int(min(requested, cap * 3 // 4))
    except Exception:
        pass
    return requested


# ----------------------------------------------------------------------------
# Global pooling helpers (Xtoy / Etoy) -- tiny, plain JAX glue
# ----------------------------------------------------------------------------
def _xtoy(X, p):
    m = X.mean(axis=1)
    mi = X.min(axis=1)
    ma = X.max(axis=1)
    std = jnp.std(X, axis=1, ddof=1)          # torch .std() is unbiased
    z = jnp.concatenate([m, mi, ma, std], axis=1)
    return z @ p["w_x_y"] + p["b_x_y"]


def _etoy(E, p):
    bs, n, _, de = E.shape
    m = E.mean(axis=(1, 2))
    mi = E.min(axis=(1, 2))
    ma = E.max(axis=(1, 2))
    std = jnp.std(E.reshape(bs, n * n, de), axis=1, ddof=1)
    z = jnp.concatenate([m, mi, ma, std], axis=1)
    return z @ p["w_e_y"] + p["b_e_y"]


# ----------------------------------------------------------------------------
# Wrapper
# ----------------------------------------------------------------------------
def node_edge_block_improved(X, E, y, node_mask, p, n_head, *,
                             q_tile=None, mxu_dtype=jnp.bfloat16,
                             vmem_limit_bytes=48 * 1024 * 1024):
    bs, n, dx = X.shape
    de = E.shape[-1]
    assert dx % n_head == 0
    df = dx // n_head
    f32 = jnp.float32
    cdt = jnp.dtype(mxu_dtype)

    de_pad = _round_up(de, 128)
    dx_pad = _round_up(dx, 128)

    vmem_limit_bytes = _scoped_vmem_limit(vmem_limit_bytes)
    if q_tile is None:
        q_tile = _choose_q_tile(n, dx, de, de_pad, cdt.itemsize, vmem_limit_bytes)
    assert n % q_tile == 0 and (q_tile % 8 == 0 or q_tile == n), q_tile
    n_qt = n // q_tile

    mr = node_mask.astype(f32)[:, :, None]                          # (bs, n, 1)
    yx1 = (y @ p["w_y_x_add"] + p["b_y_x_add"])[:, None, :]         # (bs, 1, dx)
    yx2 = (y @ p["w_y_x_mul"] + p["b_y_x_mul"])[:, None, :]         # (bs, 1, dx)

    Xc = X.astype(cdt)
    Ec = E.astype(cdt)

    def b2d(b):
        return b.astype(f32)[None, :]

    # Fused / padded weights (biases stay f32, added after the f32 accumulation).
    w_kv = jnp.concatenate([p["w_k"], p["w_v"]], axis=1)            # (dx, 2dx)
    b_kv = jnp.concatenate([p["b_k"], p["b_v"]], axis=0)
    w_e12 = jnp.concatenate([p["w_e_mul"], p["w_e_add"]], axis=1)   # (de, 2dx)
    b_e12 = jnp.concatenate([p["b_e_mul"], p["b_e_add"]], axis=0)
    w_eo = _pad_last(p["w_e_out"], de_pad)                          # (dx, de_pad)
    b_eo = _pad_last(p["b_e_out"], de_pad)
    w_xo = _pad_last(p["w_x_out"], dx_pad)                          # (dx, dx_pad)
    b_xo = _pad_last(p["b_x_out"], dx_pad)

    weights = [p["w_q"].astype(cdt), b2d(p["b_q"]),
               w_kv.astype(cdt), b2d(b_kv),
               w_e12.astype(cdt), b2d(b_e12),
               w_eo.astype(cdt), b2d(b_eo),
               w_xo.astype(cdt), b2d(b_xo)]

    def full_spec(a):
        return pl.BlockSpec(a.shape, lambda b, q, _nd=a.ndim: (0,) * _nd)

    in_specs = [
        pl.BlockSpec((1, n, dx), lambda b, q: (b, 0, 0)),             # X (keys/values)
        pl.BlockSpec((1, q_tile, dx), lambda b, q: (b, q, 0)),        # X (query tile)
        pl.BlockSpec((1, q_tile, n, de), lambda b, q: (b, q, 0, 0)),  # E (query tile)
        pl.BlockSpec((1, n, 1), lambda b, q: (b, 0, 0)),              # node mask (full)
        pl.BlockSpec((1, q_tile, 1), lambda b, q: (b, q, 0)),         # node mask (q tile)
        pl.BlockSpec((1, 1, dx), lambda b, q: (b, 0, 0)),             # yx1
        pl.BlockSpec((1, 1, dx), lambda b, q: (b, 0, 0)),             # yx2
    ] + [full_spec(wt) for wt in weights]

    out_specs = [
        pl.BlockSpec((1, q_tile, dx_pad), lambda b, q: (b, q, 0)),
        pl.BlockSpec((1, q_tile, n, de_pad), lambda b, q: (b, q, 0, 0)),
    ]

    # Advisory cost estimate so XLA schedules around the custom call sensibly.
    flops = int(4 * bs * n * n * de * dx          # fused e_mul|e_add projection
                + 2 * bs * n * n * dx * de_pad    # e_out projection
                + 2 * bs * n * n * dx             # attn @ V
                + 4 * bs * n * dx * dx * (1 + n_qt)   # q + (k|v per query tile)
                + 2 * bs * n * dx * dx_pad        # x_out projection
                + 8 * bs * n * n * dx)            # FiLM element-wise
    transcendentals = int(bs * n * n * n_head)    # softmax exp
    bytes_accessed = int(bs * n * n * de * cdt.itemsize          # E in
                         + bs * n * n * de_pad * 4               # newE out
                         + bs * n * dx * cdt.itemsize * (1 + n_qt)
                         + bs * n * dx_pad * 4)

    kernel = functools.partial(_node_edge_kernel, n_head, df, cdt)
    newX_pad, newE_pad = pl.pallas_call(
        kernel,
        out_shape=(jax.ShapeDtypeStruct((bs, n, dx_pad), f32),
                   jax.ShapeDtypeStruct((bs, n, n, de_pad), f32)),
        grid=(bs, n_qt),
        in_specs=in_specs,
        out_specs=out_specs,
        compiler_params=pltpu.CompilerParams(
            dimension_semantics=("parallel", "parallel"),
            vmem_limit_bytes=vmem_limit_bytes),
        cost_estimate=pl.CostEstimate(flops=flops,
                                      transcendentals=transcendentals,
                                      bytes_accessed=bytes_accessed),
    )(Xc, Xc, Ec, mr, mr, yx1, yx2, *weights)

    newX = newX_pad[:, :, :dx]
    newE = newE_pad[:, :, :, :de]

    # Global feature path (tiny, plain JAX glue).
    # NOTE: reference computes self.y_y(y) and immediately overwrites it -> dead code, skipped.
    new_y = y + _xtoy(X, p) + _etoy(E, p)
    h = jnp.maximum(new_y @ p["w_y_out1"] + p["b_y_out1"], 0.0)
    new_y = h @ p["w_y_out2"] + p["b_y_out2"]
    return newX, newE, new_y


# ----------------------------------------------------------------------------
# Pure-JAX reference (mirrors the PyTorch forward exactly) for validation
# ----------------------------------------------------------------------------
def reference_forward(X, E, y, node_mask, p, n_head):
    bs, n, dx = X.shape
    de = E.shape[-1]
    df = dx // n_head
    x_mask = node_mask.astype(jnp.float32)[:, :, None]
    e_mask1 = x_mask[:, :, None, :]
    e_mask2 = x_mask[:, None, :, :]
    Q = ((X @ p["w_q"] + p["b_q"]) * x_mask).reshape(bs, n, n_head, df)[:, :, None]
    K = ((X @ p["w_k"] + p["b_k"]) * x_mask).reshape(bs, n, n_head, df)[:, None]
    Y = Q * K / math.sqrt(df)
    E1 = ((E @ p["w_e_mul"] + p["b_e_mul"]) * e_mask1 * e_mask2).reshape(bs, n, n, n_head, df)
    E2 = ((E @ p["w_e_add"] + p["b_e_add"]) * e_mask1 * e_mask2).reshape(bs, n, n, n_head, df)
    Y = Y * (E1 + 1.0) + E2
    newE = ((Y.reshape(bs, n, n, dx) @ p["w_e_out"] + p["b_e_out"]) * e_mask1 * e_mask2)
    Ys = Y.sum(axis=-1)
    attn = jax.nn.softmax(Ys, axis=2)
    V = ((X @ p["w_v"] + p["b_v"]) * x_mask).reshape(bs, n, n_head, df)[:, None]
    wV = (attn[..., None] * V).sum(axis=2).reshape(bs, n, dx)
    yx1 = (y @ p["w_y_x_add"] + p["b_y_x_add"])[:, None]
    yx2 = (y @ p["w_y_x_mul"] + p["b_y_x_mul"])[:, None]
    newX = ((yx1 + (yx2 + 1.0) * wV) @ p["w_x_out"] + p["b_x_out"]) * x_mask
    new_y = y + _xtoy(X, p) + _etoy(E, p)
    h = jnp.maximum(new_y @ p["w_y_out1"] + p["b_y_out1"], 0.0)
    new_y = h @ p["w_y_out2"] + p["b_y_out2"]
    return newX, newE, new_y


# ----------------------------------------------------------------------------
# Deterministic parameter init (weights stored as (in, out); y = x @ W + b)
# ----------------------------------------------------------------------------
def init_params(key, dx, de, dy):
    names = [
        ("q", dx, dx), ("k", dx, dx), ("v", dx, dx),
        ("e_add", de, dx), ("e_mul", de, dx),
        ("y_e_mul", dy, dx), ("y_e_add", dy, dx),      # unused in forward (kept for fidelity)
        ("y_x_mul", dy, dx), ("y_x_add", dy, dx),
        ("y_y", de, de),                               # computed-then-discarded in reference
        ("x_y", 4 * dx, dy), ("e_y", 4 * de, dy),
        ("x_out", dx, dx), ("e_out", dx, de),
        ("y_out1", dy, dy), ("y_out2", dy, dy),
    ]
    keys = jax.random.split(key, 2 * len(names))
    p = {}
    for i, (name, din, dout) in enumerate(names):
        p[f"w_{name}"] = (0.1 * jax.random.normal(keys[2 * i], (din, dout))).astype(jnp.float32)
        p[f"b_{name}"] = (0.1 * jax.random.normal(keys[2 * i + 1], (dout,))).astype(jnp.float32)
    return p


if __name__ == "__main__":
    bs, n, dx, de, dy, n_head = 2, 16, 16, 8, 8, 4

    key = jax.random.PRNGKey(0)
    kx, ke, ky, kp = jax.random.split(key, 4)
    X = jax.random.normal(kx, (bs, n, dx), jnp.float32)
    E = jax.random.normal(ke, (bs, n, n, de), jnp.float32)
    y = jax.random.normal(ky, (bs, dy), jnp.float32)
    # deterministic node mask: batch 0 fully valid, batch 1 has 11 valid nodes
    node_mask = (jnp.arange(n)[None, :] < jnp.array([[n], [11]])).astype(jnp.float32)

    params = init_params(kp, dx, de, dy)
    refX, refE, ref_y = reference_forward(X, E, y, node_mask, params, n_head)

    # 1) exact-arithmetic mode (f32 MXU operands) -- tight correctness check,
    #    q_tile=8 exercises the multi-query-tile grid (grid = (2, 2)).
    outX, outE, out_y = node_edge_block_improved(
        X, E, y, node_mask, params, n_head, q_tile=8, mxu_dtype=jnp.float32)
    jax.block_until_ready((outX, outE, out_y))
    assert jnp.allclose(outX, refX, atol=2e-3, rtol=2e-3), "newX mismatch (f32)"
    assert jnp.allclose(outE, refE, atol=2e-3, rtol=2e-3), "newE mismatch (f32)"
    assert jnp.allclose(out_y, ref_y, atol=2e-3, rtol=2e-3), "new_y mismatch (f32)"

    # 2) production mode (bf16 MXU operands, f32 accumulation, auto q-tile) -- loose check.
    outXb, outEb, out_yb = node_edge_block_improved(
        X, E, y, node_mask, params, n_head, mxu_dtype=jnp.bfloat16)
    jax.block_until_ready((outXb, outEb, out_yb))
    assert jnp.allclose(outXb, refX, atol=3e-2, rtol=3e-2), "newX mismatch (bf16)"
    assert jnp.allclose(outEb, refE, atol=3e-2, rtol=3e-2), "newE mismatch (bf16)"
    assert jnp.allclose(out_yb, ref_y, atol=3e-2, rtol=3e-2), "new_y mismatch (bf16)"

    print("KERNEL_OK")
</pallas_src>

<mosaic_0001>
module attributes {stable_mosaic.version = 11 : i64} {
  func.func @_node_edge_kernel(%arg0: i32, %arg1: i32, %arg2: memref<1x16x16xf32, #tpu.memory_space<vmem>>, %arg3: memref<1x8x16xf32, #tpu.memory_space<vmem>>, %arg4: memref<1x8x16x8xf32, #tpu.memory_space<vmem>>, %arg5: memref<1x16x1xf32, #tpu.memory_space<vmem>>, %arg6: memref<1x8x1xf32, #tpu.memory_space<vmem>>, %arg7: memref<1x1x16xf32, #tpu.memory_space<vmem>>, %arg8: memref<1x1x16xf32, #tpu.memory_space<vmem>>, %arg9: memref<16x16xf32, #tpu.memory_space<vmem>>, %arg10: memref<1x16xf32, #tpu.memory_space<vmem>>, %arg11: memref<16x32xf32, #tpu.memory_space<vmem>>, %arg12: memref<1x32xf32, #tpu.memory_space<vmem>>, %arg13: memref<8x32xf32, #tpu.memory_space<vmem>>, %arg14: memref<1x32xf32, #tpu.memory_space<vmem>>, %arg15: memref<16x128xf32, #tpu.memory_space<vmem>>, %arg16: memref<1x128xf32, #tpu.memory_space<vmem>>, %arg17: memref<16x128xf32, #tpu.memory_space<vmem>>, %arg18: memref<1x128xf32, #tpu.memory_space<vmem>>, %arg19: memref<1x8x128xf32, #tpu.memory_space<vmem>>, %arg20: memref<1x8x16x128xf32, #tpu.memory_space<vmem>>) attributes {dimension_semantics = [#tpu.dimension_semantics<parallel>, #tpu.dimension_semantics<parallel>], iteration_bounds = array<i64: 2, 2>, scalar_prefetch = 0 : i64, scratch_operands = 0 : i64, tpu.core_type = #tpu.core_type<tc>, window_params = [{transform_indices = @transform_0, window_bounds = array<i64: 1, 16, 16>}, {transform_indices = @transform_1, window_bounds = array<i64: 1, 8, 16>}, {transform_indices = @transform_2, window_bounds = array<i64: 1, 8, 16, 8>}, {transform_indices = @transform_3, window_bounds = array<i64: 1, 16, 1>}, {transform_indices = @transform_4, window_bounds = array<i64: 1, 8, 1>}, {transform_indices = @transform_5, window_bounds = array<i64: 1, 1, 16>}, {transform_indices = @transform_6, window_bounds = array<i64: 1, 1, 16>}, {pipeline_mode = #tpu.pipeline_mode<synchronous>, transform_indices = @transform_7, window_bounds = array<i64: 16, 16>}, {pipeline_mode = #tpu.pipeline_mode<synchronous>, transform_indices = @transform_8, window_bounds = array<i64: 1, 16>}, {pipeline_mode = #tpu.pipeline_mode<synchronous>, transform_indices = @transform_9, window_bounds = array<i64: 16, 32>}, {pipeline_mode = #tpu.pipeline_mode<synchronous>, transform_indices = @transform_10, window_bounds = array<i64: 1, 32>}, {pipeline_mode = #tpu.pipeline_mode<synchronous>, transform_indices = @transform_11, window_bounds = array<i64: 8, 32>}, {pipeline_mode = #tpu.pipeline_mode<synchronous>, transform_indices = @transform_12, window_bounds = array<i64: 1, 32>}, {pipeline_mode = #tpu.pipeline_mode<synchronous>, transform_indices = @transform_13, window_bounds = array<i64: 16, 128>}, {pipeline_mode = #tpu.pipeline_mode<synchronous>, transform_indices = @transform_14, window_bounds = array<i64: 1, 128>}, {pipeline_mode = #tpu.pipeline_mode<synchronous>, transform_indices = @transform_15, window_bounds = array<i64: 16, 128>}, {pipeline_mode = #tpu.pipeline_mode<synchronous>, transform_indices = @transform_16, window_bounds = array<i64: 1, 128>}, {transform_indices = @transform_17, window_bounds = array<i64: 1, 8, 128>}, {transform_indices = @transform_18, window_bounds = array<i64: 1, 8, 16, 128>}]} {
    %c0 = arith.constant 0 : index
    %c0_0 = arith.constant 0 : index
    %c0_1 = arith.constant 0 : index
    %0 = vector.load %arg2[%c0, %c0_0, %c0_1] : memref<1x16x16xf32, #tpu.memory_space<vmem>>, vector<1x16x16xf32>
    %1 = vector.shape_cast %0 : vector<1x16x16xf32> to vector<16x16xf32>
    %c0_2 = arith.constant 0 : index
    %c0_3 = arith.constant 0 : index
    %c0_4 = arith.constant 0 : index
    %2 = vector.load %arg3[%c0_2, %c0_3, %c0_4] : memref<1x8x16xf32, #tpu.memory_space<vmem>>, vector<1x8x16xf32>
    %3 = vector.shape_cast %2 : vector<1x8x16xf32> to vector<8x16xf32>
    %c0_5 = arith.constant 0 : index
    %c0_6 = arith.constant 0 : index
    %c0_7 = arith.constant 0 : index
    %c0_8 = arith.constant 0 : index
    %4 = vector.load %arg4[%c0_5, %c0_6, %c0_7, %c0_8] : memref<1x8x16x8xf32, #tpu.memory_space<vmem>>, vector<1x8x16x8xf32>
    %5 = vector.shape_cast %4 : vector<1x8x16x8xf32> to vector<8x16x8xf32>
    %c0_9 = arith.constant 0 : index
    %c0_10 = arith.constant 0 : index
    %c0_11 = arith.constant 0 : index
    %6 = vector.load %arg5[%c0_9, %c0_10, %c0_11] : memref<1x16x1xf32, #tpu.memory_space<vmem>>, vector<1x16x1xf32>
    %7 = vector.shape_cast %6 : vector<1x16x1xf32> to vector<16x1xf32>
    %c0_12 = arith.constant 0 : index
    %c0_13 = arith.constant 0 : index
    %c0_14 = arith.constant 0 : index
    %8 = vector.load %arg6[%c0_12, %c0_13, %c0_14] : memref<1x8x1xf32, #tpu.memory_space<vmem>>, vector<1x8x1xf32>
    %9 = vector.shape_cast %8 : vector<1x8x1xf32> to vector<8x1xf32>
    %c0_15 = arith.constant 0 : index
    %c0_16 = arith.constant 0 : index
    %10 = vector.load %arg11[%c0_15, %c0_16] : memref<16x32xf32, #tpu.memory_space<vmem>>, vector<16x32xf32>
    %cst = arith.constant dense<0.000000e+00> : vector<16x32xf32>
    %11 = tpu.matmul %1, %10, %cst {dimension_numbers = #tpu.dot_dimension_numbers<[1], [0], [0], [1], [0, 0, 1, 1], [], []>, precision = #tpu.contract_precision<fp32>} : vector<16x16xf32>, vector<16x32xf32>, vector<16x32xf32> -> vector<16x32xf32>
    %c0_17 = arith.constant 0 : index
    %c0_18 = arith.constant 0 : index
    %12 = vector.load %arg12[%c0_17, %c0_18] : memref<1x32xf32, #tpu.memory_space<vmem>>, vector<1x32xf32>
    %13 = vector.broadcast %12 : vector<1x32xf32> to vector<16x32xf32>
    %14 = arith.addf %11, %13 : vector<16x32xf32>
    %15 = vector.broadcast %7 : vector<16x1xf32> to vector<16x32xf32>
    %16 = arith.mulf %14, %15 : vector<16x32xf32>
    %17 = vector.extract_strided_slice %16 {offsets = [0, 0], sizes = [16, 16], strides = [1, 1]} : vector<16x32xf32> to vector<16x16xf32>
    %18 = vector.extract_strided_slice %16 {offsets = [0, 16], sizes = [16, 16], strides = [1, 1]} : vector<16x32xf32> to vector<16x16xf32>
    %c0_19 = arith.constant 0 : index
    %c0_20 = arith.constant 0 : index
    %19 = vector.load %arg9[%c0_19, %c0_20] : memref<16x16xf32, #tpu.memory_space<vmem>>, vector<16x16xf32>
    %cst_21 = arith.constant dense<0.000000e+00> : vector<8x16xf32>
    %20 = tpu.matmul %3, %19, %cst_21 {dimension_numbers = #tpu.dot_dimension_numbers<[1], [0], [0], [1], [0, 0, 1, 1], [], []>, precision = #tpu.contract_precision<fp32>} : vector<8x16xf32>, vector<16x16xf32>, vector<8x16xf32> -> vector<8x16xf32>
    %c0_22 = arith.constant 0 : index
    %c0_23 = arith.constant 0 : index
    %21 = vector.load %arg10[%c0_22, %c0_23] : memref<1x16xf32, #tpu.memory_space<vmem>>, vector<1x16xf32>
    %22 = vector.broadcast %21 : vector<1x16xf32> to vector<8x16xf32>
    %23 = arith.addf %20, %22 : vector<8x16xf32>
    %24 = vector.broadcast %9 : vector<8x1xf32> to vector<8x16xf32>
    %25 = arith.mulf %23, %24 : vector<8x16xf32>
    %26 = vector.shape_cast %9 : vector<8x1xf32> to vector<8x1x1xf32>
    %27 = vector.shape_cast %7 : vector<16x1xf32> to vector<1x16x1xf32>
    %28 = vector.broadcast %26 : vector<8x1x1xf32> to vector<8x16x1xf32>
    %29 = vector.broadcast %27 : vector<1x16x1xf32> to vector<8x16x1xf32>
    %30 = arith.mulf %28, %29 : vector<8x16x1xf32>
    %31 = vector.shape_cast %30 : vector<8x16x1xf32> to vector<128x1xf32>
    %32 = vector.shape_cast %5 : vector<8x16x8xf32> to vector<128x8xf32>
    %c0_24 = arith.constant 0 : index
    %c0_25 = arith.constant 0 : index
    %33 = vector.load %arg13[%c0_24, %c0_25] : memref<8x32xf32, #tpu.memory_space<vmem>>, vector<8x32xf32>
    %cst_26 = arith.constant dense<0.000000e+00> : vector<128x32xf32>
    %34 = tpu.matmul %32, %33, %cst_26 {dimension_numbers = #tpu.dot_dimension_numbers<[1], [0], [0], [1], [0, 0, 1, 1], [], []>, precision = #tpu.contract_precision<fp32>} : vector<128x8xf32>, vector<8x32xf32>, vector<128x32xf32> -> vector<128x32xf32>
    %c0_27 = arith.constant 0 : index
    %c0_28 = arith.constant 0 : index
    %35 = vector.load %arg14[%c0_27, %c0_28] : memref<1x32xf32, #tpu.memory_space<vmem>>, vector<1x32xf32>
    %36 = vector.broadcast %35 : vector<1x32xf32> to vector<128x32xf32>
    %37 = arith.addf %34, %36 : vector<128x32xf32>
    %38 = vector.broadcast %31 : vector<128x1xf32> to vector<128x32xf32>
    %39 = arith.mulf %37, %38 : vector<128x32xf32>
    %40 = vector.extract_strided_slice %39 {offsets = [0, 0], sizes = [128, 16], strides = [1, 1]} : vector<128x32xf32> to vector<128x16xf32>
    %41 = vector.extract_strided_slice %39 {offsets = [0, 16], sizes = [128, 16], strides = [1, 1]} : vector<128x32xf32> to vector<128x16xf32>
    %42 = vector.shape_cast %25 : vector<8x16xf32> to vector<8x1x16xf32>
    %43 = vector.shape_cast %17 : vector<16x16xf32> to vector<1x16x16xf32>
    %44 = vector.broadcast %42 : vector<8x1x16xf32> to vector<8x16x16xf32>
    %45 = vector.broadcast %43 : vector<1x16x16xf32> to vector<8x16x16xf32>
    %46 = arith.mulf %44, %45 : vector<8x16x16xf32>
    %47 = vector.shape_cast %46 : vector<8x16x16xf32> to vector<128x16xf32>
    %cst_29 = arith.constant 5.000000e-01 : f32
    %48 = vector.broadcast %cst_29 : f32 to vector<128x16xf32>
    %49 = arith.mulf %47, %48 : vector<128x16xf32>
    %cst_30 = arith.constant 1.000000e+00 : f32
    %50 = vector.broadcast %cst_30 : f32 to vector<128x16xf32>
    %51 = arith.addf %40, %50 : vector<128x16xf32>
    %52 = arith.mulf %49, %51 : vector<128x16xf32>
    %53 = arith.addf %52, %41 : vector<128x16xf32>
    %c0_31 = arith.constant 0 : index
    %c0_32 = arith.constant 0 : index
    %54 = vector.load %arg15[%c0_31, %c0_32] : memref<16x128xf32, #tpu.memory_space<vmem>>, vector<16x128xf32>
    %cst_33 = arith.constant dense<0.000000e+00> : vector<128x128xf32>
    %55 = tpu.matmul %53, %54, %cst_33 {dimension_numbers = #tpu.dot_dimension_numbers<[1], [0], [0], [1], [0, 0, 1, 1], [], []>, precision = #tpu.contract_precision<fp32>} : vector<128x16xf32>, vector<16x128xf32>, vector<128x128xf32> -> vector<128x128xf32>
    %c0_34 = arith.constant 0 : index
    %c0_35 = arith.constant 0 : index
    %56 = vector.load %arg16[%c0_34, %c0_35] : memref<1x128xf32, #tpu.memory_space<vmem>>, vector<1x128xf32>
    %57 = vector.broadcast %56 : vector<1x128xf32> to vector<128x128xf32>
    %58 = arith.addf %55, %57 : vector<128x128xf32>
    %59 = vector.broadcast %31 : vector<128x1xf32> to vector<128x128xf32>
    %60 = arith.mulf %58, %59 : vector<128x128xf32>
    %61 = vector.shape_cast %60 : vector<128x128xf32> to vector<8x16x128xf32>
    %c0_36 = arith.constant 0 : index
    %c0_37 = arith.constant 0 : index
    %c0_38 = arith.constant 0 : index
    %c0_39 = arith.constant 0 : index
    %62 = vector.load %arg20[%c0_36, %c0_37, %c0_38, %c0_39] : memref<1x8x16x128xf32, #tpu.memory_space<vmem>>, vector<1x8x16x128xf32>
    %63 = vector.shape_cast %62 : vector<1x8x16x128xf32> to vector<8x16x128xf32>
    %64 = vector.shape_cast %61 : vector<8x16x128xf32> to vector<1x8x16x128xf32>
    tpu.vector_store %arg20[%c0_36, %c0_37, %c0_38, %c0_39], %64 {strides = array<i32>} : memref<1x8x16x128xf32, #tpu.memory_space<vmem>>, vector<1x8x16x128xf32>,
    %65 = vector.shape_cast %53 : vector<128x16xf32> to vector<8x16x16xf32>
    %66 = vector.extract_strided_slice %65 {offsets = [0, 0, 0], sizes = [8, 16, 4], strides = [1, 1, 1]} : vector<8x16x16xf32> to vector<8x16x4xf32>
    %cst_40 = arith.constant dense<0.000000e+00> : vector<8x16xf32>
    %67 = vector.multi_reduction <add>, %66, %cst_40 [2] : vector<8x16x4xf32> to vector<8x16xf32>
    %cst_41 = arith.constant dense<0xFF800000> : vector<8xf32>
    %68 = vector.multi_reduction <maximumf>, %67, %cst_41 [1] : vector<8x16xf32> to vector<8xf32>
    %69 = vector.shape_cast %68 : vector<8xf32> to vector<8x1xf32>
    %70 = vector.broadcast %69 : vector<8x1xf32> to vector<8x16xf32>
    %71 = arith.subf %67, %70 : vector<8x16xf32>
    %72 = math.exp %71 : vector<8x16xf32>
    %cst_42 = arith.constant dense<0.000000e+00> : vector<8xf32>
    %73 = vector.multi_reduction <add>, %72, %cst_42 [1] : vector<8x16xf32> to vector<8xf32>
    %74 = vector.shape_cast %73 : vector<8xf32> to vector<8x1xf32>
    %75 = tpu.reciprocal %74 {approx = true} : vector<8x1xf32> -> vector<8x1xf32>
    %76 = vector.broadcast %75 : vector<8x1xf32> to vector<8x16xf32>
    %77 = arith.mulf %72, %76 : vector<8x16xf32>
    %78 = vector.extract_strided_slice %18 {offsets = [0, 0], sizes = [16, 4], strides = [1, 1]} : vector<16x16xf32> to vector<16x4xf32>
    %cst_43 = arith.constant dense<0.000000e+00> : vector<8x4xf32>
    %79 = tpu.matmul %77, %78, %cst_43 {dimension_numbers = #tpu.dot_dimension_numbers<[1], [0], [0], [1], [0, 0, 1, 1], [], []>, precision = #tpu.contract_precision<fp32>} : vector<8x16xf32>, vector<16x4xf32>, vector<8x4xf32> -> vector<8x4xf32>
    %80 = vector.extract_strided_slice %65 {offsets = [0, 0, 4], sizes = [8, 16, 4], strides = [1, 1, 1]} : vector<8x16x16xf32> to vector<8x16x4xf32>
    %cst_44 = arith.constant dense<0.000000e+00> : vector<8x16xf32>
    %81 = vector.multi_reduction <add>, %80, %cst_44 [2] : vector<8x16x4xf32> to vector<8x16xf32>
    %cst_45 = arith.constant dense<0xFF800000> : vector<8xf32>
    %82 = vector.multi_reduction <maximumf>, %81, %cst_45 [1] : vector<8x16xf32> to vector<8xf32>
    %83 = vector.shape_cast %82 : vector<8xf32> to vector<8x1xf32>
    %84 = vector.broadcast %83 : vector<8x1xf32> to vector<8x16xf32>
    %85 = arith.subf %81, %84 : vector<8x16xf32>
    %86 = math.exp %85 : vector<8x16xf32>
    %cst_46 = arith.constant dense<0.000000e+00> : vector<8xf32>
    %87 = vector.multi_reduction <add>, %86, %cst_46 [1] : vector<8x16xf32> to vector<8xf32>
    %88 = vector.shape_cast %87 : vector<8xf32> to vector<8x1xf32>
    %89 = tpu.reciprocal %88 {approx = true} : vector<8x1xf32> -> vector<8x1xf32>
    %90 = vector.broadcast %89 : vector<8x1xf32> to vector<8x16xf32>
    %91 = arith.mulf %86, %90 : vector<8x16xf32>
    %92 = vector.extract_strided_slice %18 {offsets = [0, 4], sizes = [16, 4], strides = [1, 1]} : vector<16x16xf32> to vector<16x4xf32>
    %cst_47 = arith.constant dense<0.000000e+00> : vector<8x4xf32>
    %93 = tpu.matmul %91, %92, %cst_47 {dimension_numbers = #tpu.dot_dimension_numbers<[1], [0], [0], [1], [0, 0, 1, 1], [], []>, precision = #tpu.contract_precision<fp32>} : vector<8x16xf32>, vector<16x4xf32>, vector<8x4xf32> -> vector<8x4xf32>
    %94 = vector.extract_strided_slice %65 {offsets = [0, 0, 8], sizes = [8, 16, 4], strides = [1, 1, 1]} : vector<8x16x16xf32> to vector<8x16x4xf32>
    %cst_48 = arith.constant dense<0.000000e+00> : vector<8x16xf32>
    %95 = vector.multi_reduction <add>, %94, %cst_48 [2] : vector<8x16x4xf32> to vector<8x16xf32>
    %cst_49 = arith.constant dense<0xFF800000> : vector<8xf32>
    %96 = vector.multi_reduction <maximumf>, %95, %cst_49 [1] : vector<8x16xf32> to vector<8xf32>
    %97 = vector.shape_cast %96 : vector<8xf32> to vector<8x1xf32>
    %98 = vector.broadcast %97 : vector<8x1xf32> to vector<8x16xf32>
    %99 = arith.subf %95, %98 : vector<8x16xf32>
    %100 = math.exp %99 : vector<8x16xf32>
    %cst_50 = arith.constant dense<0.000000e+00> : vector<8xf32>
    %101 = vector.multi_reduction <add>, %100, %cst_50 [1] : vector<8x16xf32> to vector<8xf32>
    %102 = vector.shape_cast %101 : vector<8xf32> to vector<8x1xf32>
    %103 = tpu.reciprocal %102 {approx = true} : vector<8x1xf32> -> vector<8x1xf32>
    %104 = vector.broadcast %103 : vector<8x1xf32> to vector<8x16xf32>
    %105 = arith.mulf %100, %104 : vector<8x16xf32>
    %106 = vector.extract_strided_slice %18 {offsets = [0, 8], sizes = [16, 4], strides = [1, 1]} : vector<16x16xf32> to vector<16x4xf32>
    %cst_51 = arith.constant dense<0.000000e+00> : vector<8x4xf32>
    %107 = tpu.matmul %105, %106, %cst_51 {dimension_numbers = #tpu.dot_dimension_numbers<[1], [0], [0], [1], [0, 0, 1, 1], [], []>, precision = #tpu.contract_precision<fp32>} : vector<8x16xf32>, vector<16x4xf32>, vector<8x4xf32> -> vector<8x4xf32>
    %108 = vector.extract_strided_slice %65 {offsets = [0, 0, 12], sizes = [8, 16, 4], strides = [1, 1, 1]} : vector<8x16x16xf32> to vector<8x16x4xf32>
    %cst_52 = arith.constant dense<0.000000e+00> : vector<8x16xf32>
    %109 = vector.multi_reduction <add>, %108, %cst_52 [2] : vector<8x16x4xf32> to vector<8x16xf32>
    %cst_53 = arith.constant dense<0xFF800000> : vector<8xf32>
    %110 = vector.multi_reduction <maximumf>, %109, %cst_53 [1] : vector<8x16xf32> to vector<8xf32>
    %111 = vector.shape_cast %110 : vector<8xf32> to vector<8x1xf32>
    %112 = vector.broadcast %111 : vector<8x1xf32> to vector<8x16xf32>
    %113 = arith.subf %109, %112 : vector<8x16xf32>
    %114 = math.exp %113 : vector<8x16xf32>
    %cst_54 = arith.constant dense<0.000000e+00> : vector<8xf32>
    %115 = vector.multi_reduction <add>, %114, %cst_54 [1] : vector<8x16xf32> to vector<8xf32>
    %116 = vector.shape_cast %115 : vector<8xf32> to vector<8x1xf32>
    %117 = tpu.reciprocal %116 {approx = true} : vector<8x1xf32> -> vector<8x1xf32>
    %118 = vector.broadcast %117 : vector<8x1xf32> to vector<8x16xf32>
    %119 = arith.mulf %114, %118 : vector<8x16xf32>
    %120 = vector.extract_strided_slice %18 {offsets = [0, 12], sizes = [16, 4], strides = [1, 1]} : vector<16x16xf32> to vector<16x4xf32>
    %cst_55 = arith.constant dense<0.000000e+00> : vector<8x4xf32>
    %121 = tpu.matmul %119, %120, %cst_55 {dimension_numbers = #tpu.dot_dimension_numbers<[1], [0], [0], [1], [0, 0, 1, 1], [], []>, precision = #tpu.contract_precision<fp32>} : vector<8x16xf32>, vector<16x4xf32>, vector<8x4xf32> -> vector<8x4xf32>
    %122 = tpu.concatenate %79, %93, %107, %121 in 1 : vector<8x4xf32>, vector<8x4xf32>, vector<8x4xf32>, vector<8x4xf32> -> vector<8x16xf32>
    %c0_56 = arith.constant 0 : index
    %c0_57 = arith.constant 0 : index
    %c0_58 = arith.constant 0 : index
    %123 = vector.load %arg7[%c0_56, %c0_57, %c0_58] : memref<1x1x16xf32, #tpu.memory_space<vmem>>, vector<1x1x16xf32>
    %124 = vector.shape_cast %123 : vector<1x1x16xf32> to vector<1x16xf32>
    %c0_59 = arith.constant 0 : index
    %c0_60 = arith.constant 0 : index
    %c0_61 = arith.constant 0 : index
    %125 = vector.load %arg8[%c0_59, %c0_60, %c0_61] : memref<1x1x16xf32, #tpu.memory_space<vmem>>, vector<1x1x16xf32>
    %126 = vector.shape_cast %125 : vector<1x1x16xf32> to vector<1x16xf32>
    %cst_62 = arith.constant 1.000000e+00 : f32
    %127 = vector.broadcast %cst_62 : f32 to vector<1x16xf32>
    %128 = arith.addf %126, %127 : vector<1x16xf32>
    %129 = vector.broadcast %128 : vector<1x16xf32> to vector<8x16xf32>
    %130 = arith.mulf %129, %122 : vector<8x16xf32>
    %131 = vector.broadcast %124 : vector<1x16xf32> to vector<8x16xf32>
    %132 = arith.addf %131, %130 : vector<8x16xf32>
    %c0_63 = arith.constant 0 : index
    %c0_64 = arith.constant 0 : index
    %133 = vector.load %arg17[%c0_63, %c0_64] : memref<16x128xf32, #tpu.memory_space<vmem>>, vector<16x128xf32>
    %cst_65 = arith.constant dense<0.000000e+00> : vector<8x128xf32>
    %134 = tpu.matmul %132, %133, %cst_65 {dimension_numbers = #tpu.dot_dimension_numbers<[1], [0], [0], [1], [0, 0, 1, 1], [], []>, precision = #tpu.contract_precision<fp32>} : vector<8x16xf32>, vector<16x128xf32>, vector<8x128xf32> -> vector<8x128xf32>
    %c0_66 = arith.constant 0 : index
    %c0_67 = arith.constant 0 : index
    %135 = vector.load %arg18[%c0_66, %c0_67] : memref<1x128xf32, #tpu.memory_space<vmem>>, vector<1x128xf32>
    %136 = vector.broadcast %135 : vector<1x128xf32> to vector<8x128xf32>
    %137 = arith.addf %134, %136 : vector<8x128xf32>
    %138 = vector.broadcast %9 : vector<8x1xf32> to vector<8x128xf32>
    %139 = arith.mulf %137, %138 : vector<8x128xf32>
    %c0_68 = arith.constant 0 : index
    %c0_69 = arith.constant 0 : index
    %c0_70 = arith.constant 0 : index
    %140 = vector.load %arg19[%c0_68, %c0_69, %c0_70] : memref<1x8x128xf32, #tpu.memory_space<vmem>>, vector<1x8x128xf32>
    %141 = vector.shape_cast %140 : vector<1x8x128xf32> to vector<8x128xf32>
    %142 = vector.shape_cast %139 : vector<8x128xf32> to vector<1x8x128xf32>
    tpu.vector_store %arg19[%c0_68, %c0_69, %c0_70], %142 {strides = array<i32>} : memref<1x8x128xf32, #tpu.memory_space<vmem>>, vector<1x8x128xf32>,
    return
  }
  func.func @transform_0(%arg0: i32, %arg1: i32) -> (i32, i32, i32) {
    %c0_i32 = arith.constant 0 : i32
    %c0_i32_0 = arith.constant 0 : i32
    %c0_i32_1 = arith.constant 0 : i32
    return %arg0, %c0_i32, %c0_i32_0 : i32, i32, i32
  }
  func.func @transform_1(%arg0: i32, %arg1: i32) -> (i32, i32, i32) {
    %c0_i32 = arith.constant 0 : i32
    %c0_i32_0 = arith.constant 0 : i32
    return %arg0, %arg1, %c0_i32 : i32, i32, i32
  }
  func.func @transform_2(%arg0: i32, %arg1: i32) -> (i32, i32, i32, i32) {
    %c0_i32 = arith.constant 0 : i32
    %c0_i32_0 = arith.constant 0 : i32
    %c0_i32_1 = arith.constant 0 : i32
    return %arg0, %arg1, %c0_i32, %c0_i32_0 : i32, i32, i32, i32
  }
  func.func @transform_3(%arg0: i32, %arg1: i32) -> (i32, i32, i32) {
    %c0_i32 = arith.constant 0 : i32
    %c0_i32_0 = arith.constant 0 : i32
    %c0_i32_1 = arith.constant 0 : i32
    return %arg0, %c0_i32, %c0_i32_0 : i32, i32, i32
  }
  func.func @transform_4(%arg0: i32, %arg1: i32) -> (i32, i32, i32) {
    %c0_i32 = arith.constant 0 : i32
    %c0_i32_0 = arith.constant 0 : i32
    return %arg0, %arg1, %c0_i32 : i32, i32, i32
  }
  func.func @transform_5(%arg0: i32, %arg1: i32) -> (i32, i32, i32) {
    %c0_i32 = arith.constant 0 : i32
    %c0_i32_0 = arith.constant 0 : i32
    %c0_i32_1 = arith.constant 0 : i32
    return %arg0, %c0_i32, %c0_i32_0 : i32, i32, i32
  }
  func.func @transform_6(%arg0: i32, %arg1: i32) -> (i32, i32, i32) {
    %c0_i32 = arith.constant 0 : i32
    %c0_i32_0 = arith.constant 0 : i32
    %c0_i32_1 = arith.constant 0 : i32
    return %arg0, %c0_i32, %c0_i32_0 : i32, i32, i32
  }
  func.func @transform_7(%arg0: i32, %arg1: i32) -> (i32, i32) {
    %c0_i32 = arith.constant 0 : i32
    %c0_i32_0 = arith.constant 0 : i32
    %c0_i32_1 = arith.constant 0 : i32
    return %c0_i32, %c0_i32_0 : i32, i32
  }
  func.func @transform_8(%arg0: i32, %arg1: i32) -> (i32, i32) {
    %c0_i32 = arith.constant 0 : i32
    %c0_i32_0 = arith.constant 0 : i32
    %c0_i32_1 = arith.constant 0 : i32
    return %c0_i32, %c0_i32_0 : i32, i32
  }
  func.func @transform_9(%arg0: i32, %arg1: i32) -> (i32, i32) {
    %c0_i32 = arith.constant 0 : i32
    %c0_i32_0 = arith.constant 0 : i32
    %c0_i32_1 = arith.constant 0 : i32
    return %c0_i32, %c0_i32_0 : i32, i32
  }
  func.func @transform_10(%arg0: i32, %arg1: i32) -> (i32, i32) {
    %c0_i32 = arith.constant 0 : i32
    %c0_i32_0 = arith.constant 0 : i32
    %c0_i32_1 = arith.constant 0 : i32
    return %c0_i32, %c0_i32_0 : i32, i32
  }
  func.func @transform_11(%arg0: i32, %arg1: i32) -> (i32, i32) {
    %c0_i32 = arith.constant 0 : i32
    %c0_i32_0 = arith.constant 0 : i32
    %c0_i32_1 = arith.constant 0 : i32
    return %c0_i32, %c0_i32_0 : i32, i32
  }
  func.func @transform_12(%arg0: i32, %arg1: i32) -> (i32, i32) {
    %c0_i32 = arith.constant 0 : i32
    %c0_i32_0 = arith.constant 0 : i32
    %c0_i32_1 = arith.constant 0 : i32
    return %c0_i32, %c0_i32_0 : i32, i32
  }
  func.func @transform_13(%arg0: i32, %arg1: i32) -> (i32, i32) {
    %c0_i32 = arith.constant 0 : i32
    %c0_i32_0 = arith.constant 0 : i32
    %c0_i32_1 = arith.constant 0 : i32
    return %c0_i32, %c0_i32_0 : i32, i32
  }
  func.func @transform_14(%arg0: i32, %arg1: i32) -> (i32, i32) {
    %c0_i32 = arith.constant 0 : i32
    %c0_i32_0 = arith.constant 0 : i32
    %c0_i32_1 = arith.constant 0 : i32
    return %c0_i32, %c0_i32_0 : i32, i32
  }
  func.func @transform_15(%arg0: i32, %arg1: i32) -> (i32, i32) {
    %c0_i32 = arith.constant 0 : i32
    %c0_i32_0 = arith.constant 0 : i32
    %c0_i32_1 = arith.constant 0 : i32
    return %c0_i32, %c0_i32_0 : i32, i32
  }
  func.func @transform_16(%arg0: i32, %arg1: i32) -> (i32, i32) {
    %c0_i32 = arith.constant 0 : i32
    %c0_i32_0 = arith.constant 0 : i32
    %c0_i32_1 = arith.constant 0 : i32
    return %c0_i32, %c0_i32_0 : i32, i32
  }
  func.func @transform_17(%arg0: i32, %arg1: i32) -> (i32, i32, i32) {
    %c0_i32 = arith.constant 0 : i32
    %c0_i32_0 = arith.constant 0 : i32
    return %arg0, %arg1, %c0_i32 : i32, i32, i32
  }
  func.func @transform_18(%arg0: i32, %arg1: i32) -> (i32, i32, i32, i32) {
    %c0_i32 = arith.constant 0 : i32
    %c0_i32_0 = arith.constant 0 : i32
    %c0_i32_1 = arith.constant 0 : i32
    return %arg0, %arg1, %c0_i32, %c0_i32_0 : i32, i32, i32, i32
  }
}

</mosaic_0001>

<llo_original>
// kernel: tpu_custom_call.1
$region0: #{tpu_custom_call.1}
  #allocation0 [shape = 'u32[]', space=smem, size = 0x4, offset = 0x4, fixed_abs, tag = 'smem constant byte address 0x4 - core index']
  #allocation1 [shape = 'u32[72,128]{1,0:T(1,128)}', space=vmem, size = 0x9000, scoped, tag = 'internal scratch']
  %s0 = inlined_call_operand.vmem [shape: f32[2,16,16], index: 0, kind: input, shape index: {}]
  %s1 = inlined_call_operand.vmem [shape: f32[2,16,16], index: 1, kind: input, shape index: {}]
  %s2 = inlined_call_operand.vmem [shape: f32[2,16,16,8], index: 2, kind: input, shape index: {}]
  %s3 = inlined_call_operand.vmem [shape: f32[2,16,1], index: 3, kind: input, shape index: {}]
  %s4 = inlined_call_operand.vmem [shape: f32[2,16,1], index: 4, kind: input, shape index: {}]
  %s5 = inlined_call_operand.vmem [shape: f32[2,1,16], index: 5, kind: input, shape index: {}]
  %s6 = inlined_call_operand.vmem [shape: f32[2,1,16], index: 6, kind: input, shape index: {}]
  %s7 = inlined_call_operand.vmem [shape: f32[16,16], index: 7, kind: input, shape index: {}]
  %s8 = inlined_call_operand.vmem [shape: f32[1,16], index: 8, kind: input, shape index: {}]
  %s9 = inlined_call_operand.vmem [shape: f32[16,32], index: 9, kind: input, shape index: {}]
  %s10 = inlined_call_operand.vmem [shape: f32[1,32], index: 10, kind: input, shape index: {}]
  %s11 = inlined_call_operand.vmem [shape: f32[8,32], index: 11, kind: input, shape index: {}]
  %s12 = inlined_call_operand.vmem [shape: f32[1,32], index: 12, kind: input, shape index: {}]
  %s13 = inlined_call_operand.vmem [shape: f32[16,128], index: 13, kind: input, shape index: {}]
  %s14 = inlined_call_operand.vmem [shape: f32[1,128], index: 14, kind: input, shape index: {}]
  %s15 = inlined_call_operand.vmem [shape: f32[16,128], index: 15, kind: input, shape index: {}]
  %s16 = inlined_call_operand.vmem [shape: f32[1,128], index: 16, kind: input, shape index: {}]
  %s17 = inlined_call_operand.hbm [shape: f32[2,16,128], index: 17, kind: output, shape index: {0}]
  %s18 = inlined_call_operand.hbm [shape: f32[2,16,16,128], index: 18, kind: output, shape index: {1}]
  %19 = xla_tuple %s17, %s18
  %s20 = sld [smem:[#allocation0]]
  $region109: #{tpu_custom_call.1} parent=0
    _
  %s22 = ssub.s32 1, %s20
  %s23 = scalar_select 0, %s22, %s20
  $region1: #{tpu_custom_call.1} parent=0
    #allocation2 [shape = 'u8[8192]{0}', space=vmem, size = 0x2000, scoped, tag = 'output window, operand 0']
    #allocation3 [shape = 's32[2]{0}', space=sflag, size = 0x8, scoped, tag = 'scoped memory for tpu_custom_call.1']
    #allocation4 [shape = 'u8[131072]{0}', space=vmem, size = 0x20000, scoped, tag = 'output window, operand 1']
    #allocation5 [shape = 's32[2]{0}', space=sflag, size = 0x8, scoped, tag = 'scoped memory for tpu_custom_call.1']
    %24 = vsyncpa [#allocation3], 0
    %s25 = scalar_lea.sflag [#allocation3], 1
    %26 = vsyncpa %s25, 0
    %27 = vsyncpa [#allocation5], 0
    %s28 = scalar_lea.sflag [#allocation5], 1
    %29 = vsyncpa %s28, 0
    loop: start=0, step=1, limit=6
    $region2: #{tpu_custom_call.1} parent=1 // loop_pre_header
      _
    $region3: #{tpu_custom_call.1} parent=1 // loop_header
      %s31 = sphi 0, %s35
      %p32 = scmp.ge.s32.totalorder %s31, 6
      %s38 = sphi 0, %s50
      %s39 = sphi 0, %s46
      %s40 = sphi 0, %s38
      %s41 = sphi 0, %s39
      %s42 = sphi 0, %s40
      %s43 = sphi 0, %s41
      %s53 = sphi 0, %s55
      %s56 = sphi 0, %s53
      %s57 = sphi 0, %s56
      %s73 = sphi 0, %s57
      %s81 = sphi 0, %s83
      %s84 = sphi 0, %s81
      %s85 = sphi 0, %s84
      %s101 = sphi 0, %s85
      %s109 = sphi 0, %s111
      %s112 = sphi 0, %s109
      %s113 = sphi 0, %s112
      %s129 = sphi 0, %s113
      %s135 = sphi 0, %s137
      %s138 = sphi 0, %s135
      %s139 = sphi 0, %s138
      %s155 = sphi 0, %s139
      %s163 = sphi 0, %s165
      %s166 = sphi 0, %s163
      %s167 = sphi 0, %s166
      %s183 = sphi 0, %s167
      %s189 = sphi 0, %s191
      %s192 = sphi 0, %s189
      %s193 = sphi 0, %s192
      %s209 = sphi 0, %s193
      %s215 = sphi 0, %s217
      %s218 = sphi 0, %s215
      %s219 = sphi 0, %s218
      %s235 = sphi 0, %s219
      %s239 = sphi 0, %s239
      %s241 = sphi 0, %s239
      %s242 = sphi 0, %s241
      %s256 = sphi 0, %s242
      %s260 = sphi 0, %s260
      %s262 = sphi 0, %s260
      %s263 = sphi 0, %s262
      %s277 = sphi 0, %s263
      %s281 = sphi 0, %s281
      %s283 = sphi 0, %s281
      %s284 = sphi 0, %s283
      %s298 = sphi 0, %s284
      %s302 = sphi 0, %s302
      %s304 = sphi 0, %s302
      %s305 = sphi 0, %s304
      %s319 = sphi 0, %s305
      %s323 = sphi 0, %s323
      %s325 = sphi 0, %s323
      %s326 = sphi 0, %s325
      %s340 = sphi 0, %s326
      %s344 = sphi 0, %s344
      %s346 = sphi 0, %s344
      %s347 = sphi 0, %s346
      %s361 = sphi 0, %s347
      %s365 = sphi 0, %s365
      %s367 = sphi 0, %s365
      %s368 = sphi 0, %s367
      %s382 = sphi 0, %s368
      %s386 = sphi 0, %s386
      %s388 = sphi 0, %s386
      %s389 = sphi 0, %s388
      %s403 = sphi 0, %s389
      %s407 = sphi 0, %s407
      %s409 = sphi 0, %s407
      %s410 = sphi 0, %s409
      %s424 = sphi 0, %s410
      %s428 = sphi 0, %s428
      %s430 = sphi 0, %s428
      %s431 = sphi 0, %s430
      %s445 = sphi 0, %s431
      %s453 = sphi 0, %s455
      %s456 = sphi 0, %s453
      %s457 = sphi 0, %s456
      %s473 = sphi 0, %s457
      %s481 = sphi 0, %s483
      %s484 = sphi 0, %s481
      %s485 = sphi 0, %s484
      %s501 = sphi 0, %s485
    $region4: #{tpu_custom_call.1} parent=1 // loop_header_branch
      %34 = sbr.rel (%p32) target = $region8
    $region5: #{tpu_custom_call.1} parent=1 // loop_body
      %s36 = ssub.s32 %s31, 1
      %s37 = ssub.s32 %s31, 2
      %s44 = sadd.s32 1, %s39
      %p45 = scmp.ge.s32.totalorder %s44, 2
      %s46 = scalar_select %p45, 0, %s44
      %s47 = sadd.s32 1, %s38
      %s48 = scalar_select %p45, %s47, %s38
      %p49 = scmp.ge.s32.totalorder %s48, 2
      %s50 = scalar_select %p49, 0, %s48
      %s51 = ssub.s32 %s38, %s50
      %p52 = scmp.eq.s32.totalorder %s51, 0
      %s54 = sadd.s32 %s53, 1
      %s55 = scalar_select %p52, %s53, %s54
      %p58 = pneg %p52
      %p59 = scmp.eq.s32.totalorder %s31, 3
      %p60 = por %p58, %p59
      %p61 = scmp.ne.s32.totalorder %s53, %s56
      %p62 = scmp.eq.s32.totalorder %s31, 0
      %p63 = por %p61, %p62
      %p64 = scmp.ne.s32.totalorder %s53, %s56
      %p65 = scmp.eq.s32.totalorder %s36, 3
      %p66 = por %p64, %p65
      %p67 = scmp.ne.s32.totalorder %s56, %s57
      %p68 = scmp.eq.s32.totalorder %s36, 0
      %p69 = por %p67, %p68
      %p70 = scmp.ne.s32.totalorder %s56, %s57
      %p71 = scmp.eq.s32.totalorder %s37, 3
      %p72 = por %p70, %p71
      %p74 = scmp.ne.s32.totalorder %s57, %s73
      %p75 = scmp.eq.s32.totalorder %s37, 0
      %p76 = por %p74, %p75
      %s77 = ssub.s32 %s38, %s50
      %s78 = ssub.s32 %s39, %s46
      %s79 = sor.u32 %s77, %s78
      %p80 = scmp.eq.s32.totalorder %s79, 0
      %s82 = sadd.s32 %s81, 1
      %s83 = scalar_select %p80, %s81, %s82
      %p86 = pneg %p80
      %p87 = scmp.eq.s32.totalorder %s31, 3
      %p88 = por %p86, %p87
      %p89 = scmp.ne.s32.totalorder %s81, %s84
      %p90 = scmp.eq.s32.totalorder %s31, 0
      %p91 = por %p89, %p90
      %p92 = scmp.ne.s32.totalorder %s81, %s84
      %p93 = scmp.eq.s32.totalorder %s36, 3
      %p94 = por %p92, %p93
      %p95 = scmp.ne.s32.totalorder %s84, %s85
      %p96 = scmp.eq.s32.totalorder %s36, 0
      %p97 = por %p95, %p96
      %p98 = scmp.ne.s32.totalorder %s84, %s85
      %p99 = scmp.eq.s32.totalorder %s37, 3
      %p100 = por %p98, %p99
      %p102 = scmp.ne.s32.totalorder %s85, %s101
      %p103 = scmp.eq.s32.totalorder %s37, 0
      %p104 = por %p102, %p103
      %s105 = ssub.s32 %s38, %s50
      %s106 = ssub.s32 %s39, %s46
      %s107 = sor.u32 %s105, %s106
      %p108 = scmp.eq.s32.totalorder %s107, 0
      %s110 = sadd.s32 %s109, 1
      %s111 = scalar_select %p108, %s109, %s110
      %p114 = pneg %p108
      %p115 = scmp.eq.s32.totalorder %s31, 3
      %p116 = por %p114, %p115
      %p117 = scmp.ne.s32.totalorder %s109, %s112
      %p118 = scmp.eq.s32.totalorder %s31, 0
      %p119 = por %p117, %p118
      %p120 = scmp.ne.s32.totalorder %s109, %s112
      %p121 = scmp.eq.s32.totalorder %s36, 3
      %p122 = por %p120, %p121
      %p123 = scmp.ne.s32.totalorder %s112, %s113
      %p124 = scmp.eq.s32.totalorder %s36, 0
      %p125 = por %p123, %p124
      %p126 = scmp.ne.s32.totalorder %s112, %s113
      %p127 = scmp.eq.s32.totalorder %s37, 3
      %p128 = por %p126, %p127
      %p130 = scmp.ne.s32.totalorder %s113, %s129
      %p131 = scmp.eq.s32.totalorder %s37, 0
      %p132 = por %p130, %p131
      %s133 = ssub.s32 %s38, %s50
      %p134 = scmp.eq.s32.totalorder %s133, 0
      %s136 = sadd.s32 %s135, 1
      %s137 = scalar_select %p134, %s135, %s136
      %p140 = pneg %p134
      %p141 = scmp.eq.s32.totalorder %s31, 3
      %p142 = por %p140, %p141
      %p143 = scmp.ne.s32.totalorder %s135, %s138
      %p144 = scmp.eq.s32.totalorder %s31, 0
      %p145 = por %p143, %p144
      %p146 = scmp.ne.s32.totalorder %s135, %s138
      %p147 = scmp.eq.s32.totalorder %s36, 3
      %p148 = por %p146, %p147
      %p149 = scmp.ne.s32.totalorder %s138, %s139
      %p150 = scmp.eq.s32.totalorder %s36, 0
      %p151 = por %p149, %p150
      %p152 = scmp.ne.s32.totalorder %s138, %s139
      %p153 = scmp.eq.s32.totalorder %s37, 3
      %p154 = por %p152, %p153
      %p156 = scmp.ne.s32.totalorder %s139, %s155
      %p157 = scmp.eq.s32.totalorder %s37, 0
      %p158 = por %p156, %p157
      %s159 = ssub.s32 %s38, %s50
      %s160 = ssub.s32 %s39, %s46
      %s161 = sor.u32 %s159, %s160
      %p162 = scmp.eq.s32.totalorder %s161, 0
      %s164 = sadd.s32 %s163, 1
      %s165 = scalar_select %p162, %s163, %s164
      %p168 = pneg %p162
      %p169 = scmp.eq.s32.totalorder %s31, 3
      %p170 = por %p168, %p169
      %p171 = scmp.ne.s32.totalorder %s163, %s166
      %p172 = scmp.eq.s32.totalorder %s31, 0
      %p173 = por %p171, %p172
      %p174 = scmp.ne.s32.totalorder %s163, %s166
      %p175 = scmp.eq.s32.totalorder %s36, 3
      %p176 = por %p174, %p175
      %p177 = scmp.ne.s32.totalorder %s166, %s167
      %p178 = scmp.eq.s32.totalorder %s36, 0
      %p179 = por %p177, %p178
      %p180 = scmp.ne.s32.totalorder %s166, %s167
      %p181 = scmp.eq.s32.totalorder %s37, 3
      %p182 = por %p180, %p181
      %p184 = scmp.ne.s32.totalorder %s167, %s183
      %p185 = scmp.eq.s32.totalorder %s37, 0
      %p186 = por %p184, %p185
      %s187 = ssub.s32 %s38, %s50
      %p188 = scmp.eq.s32.totalorder %s187, 0
      %s190 = sadd.s32 %s189, 1
      %s191 = scalar_select %p188, %s189, %s190
      %p194 = pneg %p188
      %p195 = scmp.eq.s32.totalorder %s31, 3
      %p196 = por %p194, %p195
      %p197 = scmp.ne.s32.totalorder %s189, %s192
      %p198 = scmp.eq.s32.totalorder %s31, 0
      %p199 = por %p197, %p198
      %p200 = scmp.ne.s32.totalorder %s189, %s192
      %p201 = scmp.eq.s32.totalorder %s36, 3
      %p202 = por %p200, %p201
      %p203 = scmp.ne.s32.totalorder %s192, %s193
      %p204 = scmp.eq.s32.totalorder %s36, 0
      %p205 = por %p203, %p204
      %p206 = scmp.ne.s32.totalorder %s192, %s193
      %p207 = scmp.eq.s32.totalorder %s37, 3
      %p208 = por %p206, %p207
      %p210 = scmp.ne.s32.totalorder %s193, %s209
      %p211 = scmp.eq.s32.totalorder %s37, 0
      %p212 = por %p210, %p211
      %s213 = ssub.s32 %s38, %s50
      %p214 = scmp.eq.s32.totalorder %s213, 0
      %s216 = sadd.s32 %s215, 1
      %s217 = scalar_select %p214, %s215, %s216
      %p220 = pneg %p214
      %p221 = scmp.eq.s32.totalorder %s31, 3
      %p222 = por %p220, %p221
      %p223 = scmp.ne.s32.totalorder %s215, %s218
      %p224 = scmp.eq.s32.totalorder %s31, 0
      %p225 = por %p223, %p224
      %p226 = scmp.ne.s32.totalorder %s215, %s218
      %p227 = scmp.eq.s32.totalorder %s36, 3
      %p228 = por %p226, %p227
      %p229 = scmp.ne.s32.totalorder %s218, %s219
      %p230 = scmp.eq.s32.totalorder %s36, 0
      %p231 = por %p229, %p230
      %p232 = scmp.ne.s32.totalorder %s218, %s219
      %p233 = scmp.eq.s32.totalorder %s37, 3
      %p234 = por %p232, %p233
      %p236 = scmp.ne.s32.totalorder %s219, %s235
      %p237 = scmp.eq.s32.totalorder %s37, 0
      %p238 = por %p236, %p237
      %s240 = sadd.s32 %s239, 1
      %p243 = scmp.eq.s32.totalorder %s31, 3
      %p244 = scmp.ne.s32.totalorder %s239, %s241
      %p245 = scmp.eq.s32.totalorder %s31, 0
      %p246 = por %p244, %p245
      %p247 = scmp.ne.s32.totalorder %s239, %s241
      %p248 = scmp.eq.s32.totalorder %s36, 3
      %p249 = por %p247, %p248
      %p250 = scmp.ne.s32.totalorder %s241, %s242
      %p251 = scmp.eq.s32.totalorder %s36, 0
      %p252 = por %p250, %p251
      %p253 = scmp.ne.s32.totalorder %s241, %s242
      %p254 = scmp.eq.s32.totalorder %s37, 3
      %p255 = por %p253, %p254
      %p257 = scmp.ne.s32.totalorder %s242, %s256
      %p258 = scmp.eq.s32.totalorder %s37, 0
      %p259 = por %p257, %p258
      %s261 = sadd.s32 %s260, 1
      %p264 = scmp.eq.s32.totalorder %s31, 3
      %p265 = scmp.ne.s32.totalorder %s260, %s262
      %p266 = scmp.eq.s32.totalorder %s31, 0
      %p267 = por %p265, %p266
      %p268 = scmp.ne.s32.totalorder %s260, %s262
      %p269 = scmp.eq.s32.totalorder %s36, 3
      %p270 = por %p268, %p269
      %p271 = scmp.ne.s32.totalorder %s262, %s263
      %p272 = scmp.eq.s32.totalorder %s36, 0
      %p273 = por %p271, %p272
      %p274 = scmp.ne.s32.totalorder %s262, %s263
      %p275 = scmp.eq.s32.totalorder %s37, 3
      %p276 = por %p274, %p275
      %p278 = scmp.ne.s32.totalorder %s263, %s277
      %p279 = scmp.eq.s32.totalorder %s37, 0
      %p280 = por %p278, %p279
      %s282 = sadd.s32 %s281, 1
      %p285 = scmp.eq.s32.totalorder %s31, 3
      %p286 = scmp.ne.s32.totalorder %s281, %s283
      %p287 = scmp.eq.s32.totalorder %s31, 0
      %p288 = por %p286, %p287
      %p289 = scmp.ne.s32.totalorder %s281, %s283
      %p290 = scmp.eq.s32.totalorder %s36, 3
      %p291 = por %p289, %p290
      %p292 = scmp.ne.s32.totalorder %s283, %s284
      %p293 = scmp.eq.s32.totalorder %s36, 0
      %p294 = por %p292, %p293
      %p295 = scmp.ne.s32.totalorder %s283, %s284
      %p296 = scmp.eq.s32.totalorder %s37, 3
      %p297 = por %p295, %p296
      %p299 = scmp.ne.s32.totalorder %s284, %s298
      %p300 = scmp.eq.s32.totalorder %s37, 0
      %p301 = por %p299, %p300
      %s303 = sadd.s32 %s302, 1
      %p306 = scmp.eq.s32.totalorder %s31, 3
      %p307 = scmp.ne.s32.totalorder %s302, %s304
      %p308 = scmp.eq.s32.totalorder %s31, 0
      %p309 = por %p307, %p308
      %p310 = scmp.ne.s32.totalorder %s302, %s304
      %p311 = scmp.eq.s32.totalorder %s36, 3
      %p312 = por %p310, %p311
      %p313 = scmp.ne.s32.totalorder %s304, %s305
      %p314 = scmp.eq.s32.totalorder %s36, 0
      %p315 = por %p313, %p314
      %p316 = scmp.ne.s32.totalorder %s304, %s305
      %p317 = scmp.eq.s32.totalorder %s37, 3
      %p318 = por %p316, %p317
      %p320 = scmp.ne.s32.totalorder %s305, %s319
      %p321 = scmp.eq.s32.totalorder %s37, 0
      %p322 = por %p320, %p321
      %s324 = sadd.s32 %s323, 1
      %p327 = scmp.eq.s32.totalorder %s31, 3
      %p328 = scmp.ne.s32.totalorder %s323, %s325
      %p329 = scmp.eq.s32.totalorder %s31, 0
      %p330 = por %p328, %p329
      %p331 = scmp.ne.s32.totalorder %s323, %s325
      %p332 = scmp.eq.s32.totalorder %s36, 3
      %p333 = por %p331, %p332
      %p334 = scmp.ne.s32.totalorder %s325, %s326
      %p335 = scmp.eq.s32.totalorder %s36, 0
      %p336 = por %p334, %p335
      %p337 = scmp.ne.s32.totalorder %s325, %s326
      %p338 = scmp.eq.s32.totalorder %s37, 3
      %p339 = por %p337, %p338
      %p341 = scmp.ne.s32.totalorder %s326, %s340
      %p342 = scmp.eq.s32.totalorder %s37, 0
      %p343 = por %p341, %p342
      %s345 = sadd.s32 %s344, 1
      %p348 = scmp.eq.s32.totalorder %s31, 3
      %p349 = scmp.ne.s32.totalorder %s344, %s346
      %p350 = scmp.eq.s32.totalorder %s31, 0
      %p351 = por %p349, %p350
      %p352 = scmp.ne.s32.totalorder %s344, %s346
      %p353 = scmp.eq.s32.totalorder %s36, 3
      %p354 = por %p352, %p353
      %p355 = scmp.ne.s32.totalorder %s346, %s347
      %p356 = scmp.eq.s32.totalorder %s36, 0
      %p357 = por %p355, %p356
      %p358 = scmp.ne.s32.totalorder %s346, %s347
      %p359 = scmp.eq.s32.totalorder %s37, 3
      %p360 = por %p358, %p359
      %p362 = scmp.ne.s32.totalorder %s347, %s361
      %p363 = scmp.eq.s32.totalorder %s37, 0
      %p364 = por %p362, %p363
      %s366 = sadd.s32 %s365, 1
      %p369 = scmp.eq.s32.totalorder %s31, 3
      %p370 = scmp.ne.s32.totalorder %s365, %s367
      %p371 = scmp.eq.s32.totalorder %s31, 0
      %p372 = por %p370, %p371
      %p373 = scmp.ne.s32.totalorder %s365, %s367
      %p374 = scmp.eq.s32.totalorder %s36, 3
      %p375 = por %p373, %p374
      %p376 = scmp.ne.s32.totalorder %s367, %s368
      %p377 = scmp.eq.s32.totalorder %s36, 0
      %p378 = por %p376, %p377
      %p379 = scmp.ne.s32.totalorder %s367, %s368
      %p380 = scmp.eq.s32.totalorder %s37, 3
      %p381 = por %p379, %p380
      %p383 = scmp.ne.s32.totalorder %s368, %s382
      %p384 = scmp.eq.s32.totalorder %s37, 0
      %p385 = por %p383, %p384
      %s387 = sadd.s32 %s386, 1
      %p390 = scmp.eq.s32.totalorder %s31, 3
      %p391 = scmp.ne.s32.totalorder %s386, %s388
      %p392 = scmp.eq.s32.totalorder %s31, 0
      %p393 = por %p391, %p392
      %p394 = scmp.ne.s32.totalorder %s386, %s388
      %p395 = scmp.eq.s32.totalorder %s36, 3
      %p396 = por %p394, %p395
      %p397 = scmp.ne.s32.totalorder %s388, %s389
      %p398 = scmp.eq.s32.totalorder %s36, 0
      %p399 = por %p397, %p398
      %p400 = scmp.ne.s32.totalorder %s388, %s389
      %p401 = scmp.eq.s32.totalorder %s37, 3
      %p402 = por %p400, %p401
      %p404 = scmp.ne.s32.totalorder %s389, %s403
      %p405 = scmp.eq.s32.totalorder %s37, 0
      %p406 = por %p404, %p405
      %s408 = sadd.s32 %s407, 1
      %p411 = scmp.eq.s32.totalorder %s31, 3
      %p412 = scmp.ne.s32.totalorder %s407, %s409
      %p413 = scmp.eq.s32.totalorder %s31, 0
      %p414 = por %p412, %p413
      %p415 = scmp.ne.s32.totalorder %s407, %s409
      %p416 = scmp.eq.s32.totalorder %s36, 3
      %p417 = por %p415, %p416
      %p418 = scmp.ne.s32.totalorder %s409, %s410
      %p419 = scmp.eq.s32.totalorder %s36, 0
      %p420 = por %p418, %p419
      %p421 = scmp.ne.s32.totalorder %s409, %s410
      %p422 = scmp.eq.s32.totalorder %s37, 3
      %p423 = por %p421, %p422
      %p425 = scmp.ne.s32.totalorder %s410, %s424
      %p426 = scmp.eq.s32.totalorder %s37, 0
      %p427 = por %p425, %p426
      %s429 = sadd.s32 %s428, 1
      %p432 = scmp.eq.s32.totalorder %s31, 3
      %p433 = scmp.ne.s32.totalorder %s428, %s430
      %p434 = scmp.eq.s32.totalorder %s31, 0
      %p435 = por %p433, %p434
      %p436 = scmp.ne.s32.totalorder %s428, %s430
      %p437 = scmp.eq.s32.totalorder %s36, 3
      %p438 = por %p436, %p437
      %p439 = scmp.ne.s32.totalorder %s430, %s431
      %p440 = scmp.eq.s32.totalorder %s36, 0
      %p441 = por %p439, %p440
      %p442 = scmp.ne.s32.totalorder %s430, %s431
      %p443 = scmp.eq.s32.totalorder %s37, 3
      %p444 = por %p442, %p443
      %p446 = scmp.ne.s32.totalorder %s431, %s445
      %p447 = scmp.eq.s32.totalorder %s37, 0
      %p448 = por %p446, %p447
      %s449 = ssub.s32 %s38, %s50
      %s450 = ssub.s32 %s39, %s46
      %s451 = sor.u32 %s449, %s450
      %p452 = scmp.eq.s32.totalorder %s451, 0
      %s454 = sadd.s32 %s453, 1
      %s455 = scalar_select %p452, %s453, %s454
      %p458 = pneg %p452
      %p459 = scmp.eq.s32.totalorder %s31, 3
      %p460 = por %p458, %p459
      %p461 = scmp.ne.s32.totalorder %s453, %s456
      %p462 = scmp.eq.s32.totalorder %s31, 0
      %p463 = por %p461, %p462
      %p464 = scmp.ne.s32.totalorder %s453, %s456
      %p465 = scmp.eq.s32.totalorder %s36, 3
      %p466 = por %p464, %p465
      %p467 = scmp.ne.s32.totalorder %s456, %s457
      %p468 = scmp.eq.s32.totalorder %s36, 0
      %p469 = por %p467, %p468
      %p470 = scmp.ne.s32.totalorder %s456, %s457
      %p471 = scmp.eq.s32.totalorder %s37, 3
      %p472 = por %p470, %p471
      %p474 = scmp.ne.s32.totalorder %s457, %s473
      %p475 = scmp.eq.s32.totalorder %s37, 0
      %p476 = por %p474, %p475
      %s477 = ssub.s32 %s38, %s50
      %s478 = ssub.s32 %s39, %s46
      %s479 = sor.u32 %s477, %s478
      %p480 = scmp.eq.s32.totalorder %s479, 0
      %s482 = sadd.s32 %s481, 1
      %s483 = scalar_select %p480, %s481, %s482
      %p486 = pneg %p480
      %p487 = scmp.eq.s32.totalorder %s31, 3
      %p488 = por %p486, %p487
      %p489 = scmp.ne.s32.totalorder %s481, %s484
      %p490 = scmp.eq.s32.totalorder %s31, 0
      %p491 = por %p489, %p490
      %p492 = scmp.ne.s32.totalorder %s481, %s484
      %p493 = scmp.eq.s32.totalorder %s36, 3
      %p494 = por %p492, %p493
      %p495 = scmp.ne.s32.totalorder %s484, %s485
      %p496 = scmp.eq.s32.totalorder %s36, 0
      %p497 = por %p495, %p496
      %p498 = scmp.ne.s32.totalorder %s484, %s485
      %p499 = scmp.eq.s32.totalorder %s37, 3
      %p500 = por %p498, %p499
      %p502 = scmp.ne.s32.totalorder %s485, %s501
      %p503 = scmp.eq.s32.totalorder %s37, 0
      %p504 = por %p502, %p503
      %p505 = scmp.le.s32.totalorder 1, %s31
      %p506 = scmp.lt.s32.totalorder %s31, 5
      %p507 = pnand %p505, %p506
      %p508 = pneg %p507
      // Predicated region
      $region9: #{tpu_custom_call.1} parent=5 // pred_check
        _
      $region10: #{tpu_custom_call.1} parent=5 // pred_check_branch
        %510 = sbr.rel (%p507) target = $region12
      $region11: #{tpu_custom_call.1} parent=5 // pred_region
        %s511 = ssub.s32 %s31, 1
        // Predicated region
        $region13: #{tpu_custom_call.1} parent=11 // pred_check
          %p512 = pneg %p252
        $region14: #{tpu_custom_call.1} parent=11 // pred_check_branch
          %514 = sbr.rel (%p512) target = $region16
        $region15: #{tpu_custom_call.1} parent=11 // pred_region
          _
        $region16: #{tpu_custom_call.1} parent=11 // pred_fallthru
          _
        // Predicated region
        $region17: #{tpu_custom_call.1} parent=11 // pred_check
          %p515 = pneg %p273
        $region18: #{tpu_custom_call.1} parent=11 // pred_check_branch
          %517 = sbr.rel (%p515) target = $region20
        $region19: #{tpu_custom_call.1} parent=11 // pred_region
          _
        $region20: #{tpu_custom_call.1} parent=11 // pred_fallthru
          _
        // Predicated region
        $region21: #{tpu_custom_call.1} parent=11 // pred_check
          %p518 = pneg %p294
        $region22: #{tpu_custom_call.1} parent=11 // pred_check_branch
          %520 = sbr.rel (%p518) target = $region24
        $region23: #{tpu_custom_call.1} parent=11 // pred_region
          _
        $region24: #{tpu_custom_call.1} parent=11 // pred_fallthru
          _
        // Predicated region
        $region25: #{tpu_custom_call.1} parent=11 // pred_check
          %p521 = pneg %p315
        $region26: #{tpu_custom_call.1} parent=11 // pred_check_branch
          %523 = sbr.rel (%p521) target = $region28
        $region27: #{tpu_custom_call.1} parent=11 // pred_region
          _
        $region28: #{tpu_custom_call.1} parent=11 // pred_fallthru
          _
        // Predicated region
        $region29: #{tpu_custom_call.1} parent=11 // pred_check
          %p524 = pneg %p336
        $region30: #{tpu_custom_call.1} parent=11 // pred_check_branch
          %526 = sbr.rel (%p524) target = $region32
        $region31: #{tpu_custom_call.1} parent=11 // pred_region
          _
        $region32: #{tpu_custom_call.1} parent=11 // pred_fallthru
          _
        // Predicated region
        $region33: #{tpu_custom_call.1} parent=11 // pred_check
          %p527 = pneg %p357
        $region34: #{tpu_custom_call.1} parent=11 // pred_check_branch
          %529 = sbr.rel (%p527) target = $region36
        $region35: #{tpu_custom_call.1} parent=11 // pred_region
          _
        $region36: #{tpu_custom_call.1} parent=11 // pred_fallthru
          _
        // Predicated region
        $region37: #{tpu_custom_call.1} parent=11 // pred_check
          %p530 = pneg %p378
        $region38: #{tpu_custom_call.1} parent=11 // pred_check_branch
          %532 = sbr.rel (%p530) target = $region40
        $region39: #{tpu_custom_call.1} parent=11 // pred_region
          _
        $region40: #{tpu_custom_call.1} parent=11 // pred_fallthru
          _
        // Predicated region
        $region41: #{tpu_custom_call.1} parent=11 // pred_check
          %p533 = pneg %p399
        $region42: #{tpu_custom_call.1} parent=11 // pred_check_branch
          %535 = sbr.rel (%p533) target = $region44
        $region43: #{tpu_custom_call.1} parent=11 // pred_region
          _
        $region44: #{tpu_custom_call.1} parent=11 // pred_fallthru
          _
        // Predicated region
        $region45: #{tpu_custom_call.1} parent=11 // pred_check
          %p536 = pneg %p420
        $region46: #{tpu_custom_call.1} parent=11 // pred_check_branch
          %538 = sbr.rel (%p536) target = $region48
        $region47: #{tpu_custom_call.1} parent=11 // pred_region
          _
        $region48: #{tpu_custom_call.1} parent=11 // pred_fallthru
          _
        // Predicated region
        $region49: #{tpu_custom_call.1} parent=11 // pred_check
          %p539 = pneg %p441
        $region50: #{tpu_custom_call.1} parent=11 // pred_check_branch
          %541 = sbr.rel (%p539) target = $region52
        $region51: #{tpu_custom_call.1} parent=11 // pred_region
          _
        $region52: #{tpu_custom_call.1} parent=11 // pred_fallthru
          _
      $region12: #{tpu_custom_call.1} parent=5 // pred_fallthru
        _
      %p542 = scmp.lt.s32.totalorder %s31, 4
      // Predicated region
      $region53: #{tpu_custom_call.1} parent=5 // pred_check
        %p543 = pneg %p542
      $region54: #{tpu_custom_call.1} parent=5 // pred_check_branch
        %545 = sbr.rel (%p543) target = $region56
      $region55: #{tpu_custom_call.1} parent=5 // pred_region
        // Predicated region
        $region57: #{tpu_custom_call.1} parent=55 // pred_check
          %p546 = pneg %p63
        $region58: #{tpu_custom_call.1} parent=55 // pred_check_branch
          %548 = sbr.rel (%p546) target = $region60
        $region59: #{tpu_custom_call.1} parent=55 // pred_region
          %p549 = scmp.lt.s32.totalorder %s38, 1
          %s550 = scalar_select %p549, %s38, 1
          %s551 = smul.addr %s550, 2
          %s552 = smul.addr %s551, 8
          %s553 = scalar_lea.vmem %s0, %s552
        $region60: #{tpu_custom_call.1} parent=55 // pred_fallthru
          _
        // Predicated region
        $region61: #{tpu_custom_call.1} parent=55 // pred_check
          %p554 = pneg %p91
        $region62: #{tpu_custom_call.1} parent=55 // pred_check_branch
          %556 = sbr.rel (%p554) target = $region64
        $region63: #{tpu_custom_call.1} parent=55 // pred_region
          %p557 = scmp.lt.s32.totalorder %s38, 1
          %s558 = scalar_select %p557, %s38, 1
          %p559 = scmp.lt.s32.totalorder %s39, 1
          %s560 = scalar_select %p559, %s39, 1
          %s561 = smul.addr %s558, 2
          %s562 = sadd.s32 %s560, %s561
          %s563 = smul.addr %s562, 8
          %s564 = scalar_lea.vmem %s1, %s563
        $region64: #{tpu_custom_call.1} parent=55 // pred_fallthru
          _
        // Predicated region
        $region65: #{tpu_custom_call.1} parent=55 // pred_check
          %p565 = pneg %p119
        $region66: #{tpu_custom_call.1} parent=55 // pred_check_branch
          %567 = sbr.rel (%p565) target = $region68
        $region67: #{tpu_custom_call.1} parent=55 // pred_region
          %s568 = smul.u32 8, %s39
          %p569 = scmp.lt.s32.totalorder %s38, 1
          %s570 = scalar_select %p569, %s38, 1
          %p571 = scmp.lt.s32.totalorder %s568, 15
          %s572 = scalar_select %p571, %s568, 15
          %s573 = smul.addr %s572, 2
          %s574 = smul.addr %s570, 32
          %s575 = sadd.s32 %s573, %s574
          %s576 = smul.addr %s575, 8
          %s577 = scalar_lea.vmem %s2, %s576
          %s578 = smul.u32 8, %s39
        $region68: #{tpu_custom_call.1} parent=55 // pred_fallthru
          _
        // Predicated region
        $region69: #{tpu_custom_call.1} parent=55 // pred_check
          %p579 = pneg %p145
        $region70: #{tpu_custom_call.1} parent=55 // pred_check_branch
          %581 = sbr.rel (%p579) target = $region72
        $region71: #{tpu_custom_call.1} parent=55 // pred_region
          %p582 = scmp.lt.s32.totalorder %s38, 1
          %s583 = scalar_select %p582, %s38, 1
          %s584 = smul.addr %s583, 2
          %s585 = smul.addr %s584, 8
          %s586 = scalar_lea.vmem %s3, %s585
        $region72: #{tpu_custom_call.1} parent=55 // pred_fallthru
          _
        // Predicated region
        $region73: #{tpu_custom_call.1} parent=55 // pred_check
          %p587 = pneg %p173
        $region74: #{tpu_custom_call.1} parent=55 // pred_check_branch
          %589 = sbr.rel (%p587) target = $region76
        $region75: #{tpu_custom_call.1} parent=55 // pred_region
          %p590 = scmp.lt.s32.totalorder %s38, 1
          %s591 = scalar_select %p590, %s38, 1
          %p592 = scmp.lt.s32.totalorder %s39, 1
          %s593 = scalar_select %p592, %s39, 1
          %s594 = smul.addr %s591, 2
          %s595 = sadd.s32 %s593, %s594
          %s596 = smul.addr %s595, 8
          %s597 = scalar_lea.vmem %s4, %s596
        $region76: #{tpu_custom_call.1} parent=55 // pred_fallthru
          _
        // Predicated region
        $region77: #{tpu_custom_call.1} parent=55 // pred_check
          %p598 = pneg %p199
        $region78: #{tpu_custom_call.1} parent=55 // pred_check_branch
          %600 = sbr.rel (%p598) target = $region80
        $region79: #{tpu_custom_call.1} parent=55 // pred_region
          %p601 = scmp.lt.s32.totalorder %s38, 1
          %s602 = scalar_select %p601, %s38, 1
          %s603 = scalar_lea.vmem %s5, %s602
        $region80: #{tpu_custom_call.1} parent=55 // pred_fallthru
          _
        // Predicated region
        $region81: #{tpu_custom_call.1} parent=55 // pred_check
          %p604 = pneg %p225
        $region82: #{tpu_custom_call.1} parent=55 // pred_check_branch
          %606 = sbr.rel (%p604) target = $region84
        $region83: #{tpu_custom_call.1} parent=55 // pred_region
          %p607 = scmp.lt.s32.totalorder %s38, 1
          %s608 = scalar_select %p607, %s38, 1
          %s609 = scalar_lea.vmem %s6, %s608
        $region84: #{tpu_custom_call.1} parent=55 // pred_fallthru
          _
      $region56: #{tpu_custom_call.1} parent=5 // pred_fallthru
        _
      %p610 = scmp.le.s32.totalorder 1, %s31
      %p611 = scmp.lt.s32.totalorder %s31, 5
      %p612 = pnand %p610, %p611
      %p613 = pneg %p612
      // Predicated region
      $region85: #{tpu_custom_call.1} parent=5 // pred_check
        _
      $region86: #{tpu_custom_call.1} parent=5 // pred_check_branch
        %615 = sbr.rel (%p612) target = $region88
      $region87: #{tpu_custom_call.1} parent=5 // pred_region
        %s616 = ssub.s32 %s31, 1
        %p617 = scmp.lt.s32.totalorder %s40, 1
        %s618 = scalar_select %p617, %s40, 1
        %s619 = smul.addr %s618, 2
        %s620 = smul.addr %s619, 8
        %s621 = scalar_lea.vmem %s0, %s620
        %p622 = pneg %p69
        %p623 = pneg %p66
        %p624 = scmp.lt.s32.totalorder %s40, 1
        %s625 = scalar_select %p624, %s40, 1
        %p626 = scmp.lt.s32.totalorder %s41, 1
        %s627 = scalar_select %p626, %s41, 1
        %s628 = smul.addr %s625, 2
        %s629 = sadd.s32 %s627, %s628
        %s630 = smul.addr %s629, 8
        %s631 = scalar_lea.vmem %s1, %s630
        %p632 = pneg %p97
        %p633 = pneg %p94
        %s634 = smul.u32 8, %s41
        %p635 = scmp.lt.s32.totalorder %s40, 1
        %s636 = scalar_select %p635, %s40, 1
        %p637 = scmp.lt.s32.totalorder %s634, 15
        %s638 = scalar_select %p637, %s634, 15
        %s639 = smul.addr %s638, 2
        %s640 = smul.addr %s636, 32
        %s641 = sadd.s32 %s639, %s640
        %s642 = smul.addr %s641, 8
        %s643 = scalar_lea.vmem %s2, %s642
        %p644 = pneg %p125
        %p645 = pneg %p122
        %p646 = scmp.lt.s32.totalorder %s40, 1
        %s647 = scalar_select %p646, %s40, 1
        %s648 = smul.addr %s647, 2
        %s649 = smul.addr %s648, 8
        %s650 = scalar_lea.vmem %s3, %s649
        %p651 = pneg %p151
        %p652 = pneg %p148
        %p653 = scmp.lt.s32.totalorder %s40, 1
        %s654 = scalar_select %p653, %s40, 1
        %p655 = scmp.lt.s32.totalorder %s41, 1
        %s656 = scalar_select %p655, %s41, 1
        %s657 = smul.addr %s654, 2
        %s658 = sadd.s32 %s656, %s657
        %s659 = smul.addr %s658, 8
        %s660 = scalar_lea.vmem %s4, %s659
        %p661 = pneg %p179
        %p662 = pneg %p176
        %p663 = scmp.lt.s32.totalorder %s40, 1
        %s664 = scalar_select %p663, %s40, 1
        %s665 = scalar_lea.vmem %s5, %s664
        %p666 = pneg %p205
        %p667 = pneg %p202
        %p668 = scmp.lt.s32.totalorder %s40, 1
        %s669 = scalar_select %p668, %s40, 1
        %s670 = scalar_lea.vmem %s6, %s669
        %p671 = pneg %p231
        %p672 = pneg %p228
        %p673 = pneg %p252
        %p674 = pneg %p249
        %p675 = pneg %p273
        %p676 = pneg %p270
        %p677 = pneg %p294
        %p678 = pneg %p291
        %p679 = pneg %p315
        %p680 = pneg %p312
        %p681 = pneg %p336
        %p682 = pneg %p333
        %p683 = pneg %p357
        %p684 = pneg %p354
        %p685 = pneg %p378
        %p686 = pneg %p375
        %p687 = pneg %p399
        %p688 = pneg %p396
        %p689 = pneg %p420
        %p690 = pneg %p417
        %p691 = pneg %p441
        %p692 = pneg %p438
        %p693 = pneg %p469
        %p694 = pneg %p466
        %s695 = sand.u32 %s456, 1
        %s696 = scalar_lea.sflag [#allocation3], %s695
        %s697 = sand.u32 %s456, 1
        %s698 = smul.addr %s697, 8
        %s699 = scalar_lea.vmem [#allocation2], %s698
        %p700 = pneg %p497
        %p701 = pneg %p494
        %s702 = sand.u32 %s484, 1
        %s703 = scalar_lea.sflag [#allocation5], %s702
        %s704 = sand.u32 %s484, 1
        %s705 = smul.addr %s704, 128
        %s706 = scalar_lea.vmem [#allocation4], %s705
        %p707 = scmp.lt.s32.totalorder %s40, 1
        %s708 = scalar_select %p707, %s40, 1
        %s709 = smul.addr %s708, 2
        %s710 = smul.addr %s709, 8
        %s711 = scalar_lea.vmem %s0, %s710
        %p712 = scmp.lt.s32.totalorder %s40, 1
        %s713 = scalar_select %p712, %s40, 1
        %p714 = scmp.lt.s32.totalorder %s41, 1
        %s715 = scalar_select %p714, %s41, 1
        %s716 = smul.addr %s713, 2
        %s717 = sadd.s32 %s715, %s716
        %s718 = smul.addr %s717, 8
        %s719 = scalar_lea.vmem %s1, %s718
        %s720 = smul.u32 8, %s41
        %p721 = scmp.lt.s32.totalorder %s40, 1
        %s722 = scalar_select %p721, %s40, 1
        %p723 = scmp.lt.s32.totalorder %s720, 15
        %s724 = scalar_select %p723, %s720, 15
        %s725 = smul.addr %s724, 2
        %s726 = smul.addr %s722, 32
        %s727 = sadd.s32 %s725, %s726
        %s728 = smul.addr %s727, 8
        %s729 = scalar_lea.vmem %s2, %s728
        %s730 = smul.u32 8, %s41
        %p731 = scmp.lt.s32.totalorder %s40, 1
        %s732 = scalar_select %p731, %s40, 1
        %s733 = smul.addr %s732, 2
        %s734 = smul.addr %s733, 8
        %s735 = scalar_lea.vmem %s3, %s734
        %p736 = scmp.lt.s32.totalorder %s40, 1
        %s737 = scalar_select %p736, %s40, 1
        %p738 = scmp.lt.s32.totalorder %s41, 1
        %s739 = scalar_select %p738, %s41, 1
        %s740 = smul.addr %s737, 2
        %s741 = sadd.s32 %s739, %s740
        %s742 = smul.addr %s741, 8
        %s743 = scalar_lea.vmem %s4, %s742
        %p744 = scmp.lt.s32.totalorder %s40, 1
        %s745 = scalar_select %p744, %s40, 1
        %s746 = scalar_lea.vmem %s5, %s745
        %p747 = scmp.lt.s32.totalorder %s40, 1
        %s748 = scalar_select %p747, %s40, 1
        %s749 = scalar_lea.vmem %s6, %s748
        %s750 = smul.u32 8, %s41
        %v751 = vld [vmem:[%s711] sm:$0xff]
        %v752 = vld [vmem:[%s711 + $0x8] sm:$0xff]
        %v753 = vld [vmem:[%s719] sm:$0xff]
        %v754 = vld [vmem:[%s729] sm:$0xff]
        %v755 = vld [vmem:[%s729 + $0x8] sm:$0xff]
        %v756 = vld [vmem:[%s729 + $0x10] sm:$0xff]
        %v757 = vld [vmem:[%s729 + $0x18] sm:$0xff]
        %v758 = vld [vmem:[%s729 + $0x20] sm:$0xff]
        %v759 = vld [vmem:[%s729 + $0x28] sm:$0xff]
        %v760 = vld [vmem:[%s729 + $0x30] sm:$0xff]
        %v761 = vld [vmem:[%s729 + $0x38] sm:$0xff]
        %v762 = vld [vmem:[%s729 + $0x40] sm:$0xff]
        %v763 = vld [vmem:[%s729 + $0x48] sm:$0xff]
        %v764 = vld [vmem:[%s729 + $0x50] sm:$0xff]
        %v765 = vld [vmem:[%s729 + $0x58] sm:$0xff]
        %v766 = vld [vmem:[%s729 + $0x60] sm:$0xff]
        %v767 = vld [vmem:[%s729 + $0x68] sm:$0xff]
        %v768 = vld [vmem:[%s729 + $0x70] sm:$0xff]
        %v769 = vld [vmem:[%s729 + $0x78] sm:$0xff]
        %v770 = vld [vmem:[%s735] sm:$0xff]
        %v771 = vld [vmem:[%s735 + $0x8] sm:$0xff]
        %v772 = vld [vmem:[%s743] sm:$0xff]
        %v773 = vld [vmem:[%s9] sm:$0xff]
        %v774 = vld [vmem:[%s9 + $0x8] sm:$0xff]
        %v775 = vld [vmem:[%s10] sm:$0x1]
        %v777 = vperm.slane %v775, 0
        %vm779 = vcmask 130048
        %v781 = vsel %vm779, %v751, 0
        %v784 = vsel %vm779, %v752, 0
        %786 = vmatpush.msra.mxu0 0.0
        %787 = vmatpush.msra.mxu0 0.0
        %788 = vmatpush.msra.mxu0 0.0
        %789 = vmatpush.msra.mxu0 0.0
        %790 = vmatpush.msra.mxu0 0.0
        %791 = vmatpush.msra.mxu0 0.0
        %792 = vmatpush.msra.mxu0 0.0
        %793 = vmatpush.msra.mxu0 0.0
        %794 = vmatpush.msra.mxu0 0.0
        %795 = vmatpush.msra.mxu0 0.0
        %796 = vmatpush.msra.mxu0 0.0
        %797 = vmatpush.msra.mxu0 0.0
        %798 = vmatpush.msra.mxu0 0.0
        %799 = vmatpush.msra.mxu0 0.0
        %v800 = vand.u32 %v774, 4294901760
        %801 = vmatpush.msra.mxu0 %v800
        %v802 = vand.u32 %v773, 4294901760
        %803 = vmatpush.msra.mxu0 %v802
        %v804 = vand.u32 %v781, 4294901760
        %v805 = vsub.f32 %v781, %v804
        %v806 = vand.u32 %v805, 4294901760
        %v807 = vsub.f32 %v805, %v806
        %v808 = vand.u32 %v807, 4294901760
        %809 = vmatmul.f32.gmra.mxu0 %v808
        %v810 = vpop.f32.mrf.mxu0
        %v811 = vadd.f32 %v777, %v810
        %v812 = vand.u32 %v784, 4294901760
        %v813 = vsub.f32 %v784, %v812
        %v814 = vand.u32 %v813, 4294901760
        %v815 = vsub.f32 %v813, %v814
        %v816 = vand.u32 %v815, 4294901760
        %817 = vmatmul.f32.gmra.mxu0 %v816
        %v818 = vpop.f32.mrf.mxu0
        %v819 = vadd.f32 %v777, %v818
        %820 = vdwg.mxu0
        %821 = vmatpush.msra.mxu0 0.0
        %822 = vmatpush.msra.mxu0 0.0
        %823 = vmatpush.msra.mxu0 0.0
        %824 = vmatpush.msra.mxu0 0.0
        %825 = vmatpush.msra.mxu0 0.0
        %826 = vmatpush.msra.mxu0 0.0
        %827 = vmatpush.msra.mxu0 0.0
        %828 = vmatpush.msra.mxu0 0.0
        %829 = vmatpush.msra.mxu0 0.0
        %830 = vmatpush.msra.mxu0 0.0
        %831 = vmatpush.msra.mxu0 0.0
        %832 = vmatpush.msra.mxu0 0.0
        %833 = vmatpush.msra.mxu0 0.0
        %834 = vmatpush.msra.mxu0 0.0
        %v835 = vand.u32 %v774, 4294901760
        %v836 = vsub.f32 %v774, %v835
        %v837 = vand.u32 %v836, 4294901760
        %v838 = vsub.f32 %v836, %v837
        %v839 = vand.u32 %v838, 4294901760
        %840 = vmatpush.msra.mxu0 %v839
        %v841 = vand.u32 %v773, 4294901760
        %v842 = vsub.f32 %v773, %v841
        %v843 = vand.u32 %v842, 4294901760
        %v844 = vsub.f32 %v842, %v843
        %v845 = vand.u32 %v844, 4294901760
        %846 = vmatpush.msra.mxu0 %v845
        %v847 = vand.u32 %v781, 4294901760
        %848 = vmatmul.f32.gmra.mxu0 %v847
        %v849 = vpop.f32.mrf.mxu0
        %v850 = vadd.f32 %v811, %v849
        %v851 = vand.u32 %v784, 4294901760
        %852 = vmatmul.f32.gmra.mxu0 %v851
        %v853 = vpop.f32.mrf.mxu0
        %v854 = vadd.f32 %v819, %v853
        %855 = vdwg.mxu0
        %856 = vmatpush.msra.mxu0 0.0
        %857 = vmatpush.msra.mxu0 0.0
        %858 = vmatpush.msra.mxu0 0.0
        %859 = vmatpush.msra.mxu0 0.0
        %860 = vmatpush.msra.mxu0 0.0
        %861 = vmatpush.msra.mxu0 0.0
        %862 = vmatpush.msra.mxu0 0.0
        %863 = vmatpush.msra.mxu0 0.0
        %864 = vmatpush.msra.mxu0 0.0
        %865 = vmatpush.msra.mxu0 0.0
        %866 = vmatpush.msra.mxu0 0.0
        %867 = vmatpush.msra.mxu0 0.0
        %868 = vmatpush.msra.mxu0 0.0
        %869 = vmatpush.msra.mxu0 0.0
        %v870 = vand.u32 %v774, 4294901760
        %v871 = vsub.f32 %v774, %v870
        %872 = vmatpush.msra.mxu0 %v871
        %v873 = vand.u32 %v773, 4294901760
        %v874 = vsub.f32 %v773, %v873
        %875 = vmatpush.msra.mxu0 %v874
        %v876 = vand.u32 %v781, 4294901760
        %v877 = vsub.f32 %v781, %v876
        %878 = vmatmul.f32.gmra.mxu0 %v877
        %v879 = vpop.f32.mrf.mxu0
        %v880 = vadd.f32 %v850, %v879
        %v881 = vand.u32 %v784, 4294901760
        %v882 = vsub.f32 %v784, %v881
        %883 = vmatmul.f32.gmra.mxu0 %v882
        %v884 = vpop.f32.mrf.mxu0
        %v885 = vadd.f32 %v854, %v884
        %886 = vdwg.mxu0
        %887 = vmatpush.msra.mxu0 0.0
        %888 = vmatpush.msra.mxu0 0.0
        %889 = vmatpush.msra.mxu0 0.0
        %890 = vmatpush.msra.mxu0 0.0
        %891 = vmatpush.msra.mxu0 0.0
        %892 = vmatpush.msra.mxu0 0.0
        %893 = vmatpush.msra.mxu0 0.0
        %894 = vmatpush.msra.mxu0 0.0
        %895 = vmatpush.msra.mxu0 0.0
        %896 = vmatpush.msra.mxu0 0.0
        %897 = vmatpush.msra.mxu0 0.0
        %898 = vmatpush.msra.mxu0 0.0
        %899 = vmatpush.msra.mxu0 0.0
        %900 = vmatpush.msra.mxu0 0.0
        %v901 = vand.u32 %v774, 4294901760
        %902 = vmatpush.msra.mxu0 %v901
        %v903 = vand.u32 %v773, 4294901760
        %904 = vmatpush.msra.mxu0 %v903
        %v905 = vand.u32 %v781, 4294901760
        %v906 = vsub.f32 %v781, %v905
        %v907 = vand.u32 %v906, 4294901760
        %908 = vmatmul.f32.gmra.mxu0 %v907
        %v909 = vpop.f32.mrf.mxu0
        %v910 = vadd.f32 %v880, %v909
        %v911 = vand.u32 %v784, 4294901760
        %v912 = vsub.f32 %v784, %v911
        %v913 = vand.u32 %v912, 4294901760
        %914 = vmatmul.f32.gmra.mxu0 %v913
        %v915 = vpop.f32.mrf.mxu0
        %v916 = vadd.f32 %v885, %v915
        %917 = vdwg.mxu0
        %918 = vmatpush.msra.mxu0 0.0
        %919 = vmatpush.msra.mxu0 0.0
        %920 = vmatpush.msra.mxu0 0.0
        %921 = vmatpush.msra.mxu0 0.0
        %922 = vmatpush.msra.mxu0 0.0
        %923 = vmatpush.msra.mxu0 0.0
        %924 = vmatpush.msra.mxu0 0.0
        %925 = vmatpush.msra.mxu0 0.0
        %926 = vmatpush.msra.mxu0 0.0
        %927 = vmatpush.msra.mxu0 0.0
        %928 = vmatpush.msra.mxu0 0.0
        %929 = vmatpush.msra.mxu0 0.0
        %930 = vmatpush.msra.mxu0 0.0
        %931 = vmatpush.msra.mxu0 0.0
        %v932 = vand.u32 %v774, 4294901760
        %v933 = vsub.f32 %v774, %v932
        %v934 = vand.u32 %v933, 4294901760
        %935 = vmatpush.msra.mxu0 %v934
        %v936 = vand.u32 %v773, 4294901760
        %v937 = vsub.f32 %v773, %v936
        %v938 = vand.u32 %v937, 4294901760
        %939 = vmatpush.msra.mxu0 %v938
        %v940 = vand.u32 %v781, 4294901760
        %941 = vmatmul.f32.gmra.mxu0 %v940
        %v942 = vpop.f32.mrf.mxu0
        %v943 = vadd.f32 %v910, %v942
        %v944 = vand.u32 %v784, 4294901760
        %945 = vmatmul.f32.gmra.mxu0 %v944
        %v946 = vpop.f32.mrf.mxu0
        %v947 = vadd.f32 %v916, %v946
        %948 = vdwg.mxu0
        %949 = vmatpush.msra.mxu0 0.0
        %950 = vmatpush.msra.mxu0 0.0
        %951 = vmatpush.msra.mxu0 0.0
        %952 = vmatpush.msra.mxu0 0.0
        %953 = vmatpush.msra.mxu0 0.0
        %954 = vmatpush.msra.mxu0 0.0
        %955 = vmatpush.msra.mxu0 0.0
        %956 = vmatpush.msra.mxu0 0.0
        %957 = vmatpush.msra.mxu0 0.0
        %958 = vmatpush.msra.mxu0 0.0
        %959 = vmatpush.msra.mxu0 0.0
        %960 = vmatpush.msra.mxu0 0.0
        %961 = vmatpush.msra.mxu0 0.0
        %962 = vmatpush.msra.mxu0 0.0
        %v963 = vand.u32 %v774, 4294901760
        %964 = vmatpush.msra.mxu0 %v963
        %v965 = vand.u32 %v773, 4294901760
        %966 = vmatpush.msra.mxu0 %v965
        %v967 = vand.u32 %v781, 4294901760
        %968 = vmatmul.f32.gmra.mxu0 %v967
        %v969 = vpop.f32.mrf.mxu0
        %v970 = vadd.f32 %v943, %v969
        %v971 = vand.u32 %v784, 4294901760
        %972 = vmatmul.f32.gmra.mxu0 %v971
        %v973 = vpop.f32.mrf.mxu0
        %v974 = vadd.f32 %v947, %v973
        %975 = vdwg.mxu0
        %977 = vset.pattern.permute.xlu0 0
        %978 = vperm.xlu0 %977, %v770
        %v979 = vpop.permute.xlu0 %978
        %982 = vset.pattern.permute.xlu0 0
        %983 = vperm.xlu0 %982, %v771
        %v984 = vpop.permute.xlu0 %983
        %v986 = vmul.f32 %v970, %v979
        %v987 = vmul.f32 %v974, %v984
        %v988 = vld [vmem:[%s7] sm:$0xff]
        %v989 = vld [vmem:[%s7 + $0x8] sm:$0xff]
        %v990 = vld [vmem:[%s8] sm:$0x1]
        %v992 = vperm.slane %v990, 0
        %v995 = vsel %vm779, %v753, 0
        %997 = vmatpush.msra.mxu0 0.0
        %998 = vmatpush.msra.mxu0 0.0
        %999 = vmatpush.msra.mxu0 0.0
        %1000 = vmatpush.msra.mxu0 0.0
        %1001 = vmatpush.msra.mxu0 0.0
        %1002 = vmatpush.msra.mxu0 0.0
        %1003 = vmatpush.msra.mxu0 0.0
        %1004 = vmatpush.msra.mxu0 0.0
        %1005 = vmatpush.msra.mxu0 0.0
        %1006 = vmatpush.msra.mxu0 0.0
        %1007 = vmatpush.msra.mxu0 0.0
        %1008 = vmatpush.msra.mxu0 0.0
        %1009 = vmatpush.msra.mxu0 0.0
        %1010 = vmatpush.msra.mxu0 0.0
        %v1011 = vand.u32 %v989, 4294901760
        %1012 = vmatpush.msra.mxu0 %v1011
        %v1013 = vand.u32 %v988, 4294901760
        %1014 = vmatpush.msra.mxu0 %v1013
        %v1015 = vand.u32 %v995, 4294901760
        %v1016 = vsub.f32 %v995, %v1015
        %v1017 = vand.u32 %v1016, 4294901760
        %v1018 = vsub.f32 %v1016, %v1017
        %v1019 = vand.u32 %v1018, 4294901760
        %1020 = vmatmul.f32.gmra.mxu0 %v1019
        %v1021 = vpop.f32.mrf.mxu0
        %v1022 = vadd.f32 %v992, %v1021
        %1023 = vdwg.mxu0
        %1024 = vmatpush.msra.mxu0 0.0
        %1025 = vmatpush.msra.mxu0 0.0
        %1026 = vmatpush.msra.mxu0 0.0
        %1027 = vmatpush.msra.mxu0 0.0
        %1028 = vmatpush.msra.mxu0 0.0
        %1029 = vmatpush.msra.mxu0 0.0
        %1030 = vmatpush.msra.mxu0 0.0
        %1031 = vmatpush.msra.mxu0 0.0
        %1032 = vmatpush.msra.mxu0 0.0
        %1033 = vmatpush.msra.mxu0 0.0
        %1034 = vmatpush.msra.mxu0 0.0
        %1035 = vmatpush.msra.mxu0 0.0
        %1036 = vmatpush.msra.mxu0 0.0
        %1037 = vmatpush.msra.mxu0 0.0
        %v1038 = vand.u32 %v989, 4294901760
        %v1039 = vsub.f32 %v989, %v1038
        %v1040 = vand.u32 %v1039, 4294901760
        %v1041 = vsub.f32 %v1039, %v1040
        %v1042 = vand.u32 %v1041, 4294901760
        %1043 = vmatpush.msra.mxu0 %v1042
        %v1044 = vand.u32 %v988, 4294901760
        %v1045 = vsub.f32 %v988, %v1044
        %v1046 = vand.u32 %v1045, 4294901760
        %v1047 = vsub.f32 %v1045, %v1046
        %v1048 = vand.u32 %v1047, 4294901760
        %1049 = vmatpush.msra.mxu0 %v1048
        %v1050 = vand.u32 %v995, 4294901760
        %1051 = vmatmul.f32.gmra.mxu0 %v1050
        %v1052 = vpop.f32.mrf.mxu0
        %v1053 = vadd.f32 %v1022, %v1052
        %1054 = vdwg.mxu0
        %1055 = vmatpush.msra.mxu0 0.0
        %1056 = vmatpush.msra.mxu0 0.0
        %1057 = vmatpush.msra.mxu0 0.0
        %1058 = vmatpush.msra.mxu0 0.0
        %1059 = vmatpush.msra.mxu0 0.0
        %1060 = vmatpush.msra.mxu0 0.0
        %1061 = vmatpush.msra.mxu0 0.0
        %1062 = vmatpush.msra.mxu0 0.0
        %1063 = vmatpush.msra.mxu0 0.0
        %1064 = vmatpush.msra.mxu0 0.0
        %1065 = vmatpush.msra.mxu0 0.0
        %1066 = vmatpush.msra.mxu0 0.0
        %1067 = vmatpush.msra.mxu0 0.0
        %1068 = vmatpush.msra.mxu0 0.0
        %v1069 = vand.u32 %v989, 4294901760
        %v1070 = vsub.f32 %v989, %v1069
        %1071 = vmatpush.msra.mxu0 %v1070
        %v1072 = vand.u32 %v988, 4294901760
        %v1073 = vsub.f32 %v988, %v1072
        %1074 = vmatpush.msra.mxu0 %v1073
        %v1075 = vand.u32 %v995, 4294901760
        %v1076 = vsub.f32 %v995, %v1075
        %1077 = vmatmul.f32.gmra.mxu0 %v1076
        %v1078 = vpop.f32.mrf.mxu0
        %v1079 = vadd.f32 %v1053, %v1078
        %1080 = vdwg.mxu0
        %1081 = vmatpush.msra.mxu0 0.0
        %1082 = vmatpush.msra.mxu0 0.0
        %1083 = vmatpush.msra.mxu0 0.0
        %1084 = vmatpush.msra.mxu0 0.0
        %1085 = vmatpush.msra.mxu0 0.0
        %1086 = vmatpush.msra.mxu0 0.0
        %1087 = vmatpush.msra.mxu0 0.0
        %1088 = vmatpush.msra.mxu0 0.0
        %1089 = vmatpush.msra.mxu0 0.0
        %1090 = vmatpush.msra.mxu0 0.0
        %1091 = vmatpush.msra.mxu0 0.0
        %1092 = vmatpush.msra.mxu0 0.0
        %1093 = vmatpush.msra.mxu0 0.0
        %1094 = vmatpush.msra.mxu0 0.0
        %v1095 = vand.u32 %v989, 4294901760
        %1096 = vmatpush.msra.mxu0 %v1095
        %v1097 = vand.u32 %v988, 4294901760
        %1098 = vmatpush.msra.mxu0 %v1097
        %v1099 = vand.u32 %v995, 4294901760
        %v1100 = vsub.f32 %v995, %v1099
        %v1101 = vand.u32 %v1100, 4294901760
        %1102 = vmatmul.f32.gmra.mxu0 %v1101
        %v1103 = vpop.f32.mrf.mxu0
        %v1104 = vadd.f32 %v1079, %v1103
        %1105 = vdwg.mxu0
        %1106 = vmatpush.msra.mxu0 0.0
        %1107 = vmatpush.msra.mxu0 0.0
        %1108 = vmatpush.msra.mxu0 0.0
        %1109 = vmatpush.msra.mxu0 0.0
        %1110 = vmatpush.msra.mxu0 0.0
        %1111 = vmatpush.msra.mxu0 0.0
        %1112 = vmatpush.msra.mxu0 0.0
        %1113 = vmatpush.msra.mxu0 0.0
        %1114 = vmatpush.msra.mxu0 0.0
        %1115 = vmatpush.msra.mxu0 0.0
        %1116 = vmatpush.msra.mxu0 0.0
        %1117 = vmatpush.msra.mxu0 0.0
        %1118 = vmatpush.msra.mxu0 0.0
        %1119 = vmatpush.msra.mxu0 0.0
        %v1120 = vand.u32 %v989, 4294901760
        %v1121 = vsub.f32 %v989, %v1120
        %v1122 = vand.u32 %v1121, 4294901760
        %1123 = vmatpush.msra.mxu0 %v1122
        %v1124 = vand.u32 %v988, 4294901760
        %v1125 = vsub.f32 %v988, %v1124
        %v1126 = vand.u32 %v1125, 4294901760
        %1127 = vmatpush.msra.mxu0 %v1126
        %v1128 = vand.u32 %v995, 4294901760
        %1129 = vmatmul.f32.gmra.mxu0 %v1128
        %v1130 = vpop.f32.mrf.mxu0
        %v1131 = vadd.f32 %v1104, %v1130
        %1132 = vdwg.mxu0
        %1133 = vmatpush.msra.mxu0 0.0
        %1134 = vmatpush.msra.mxu0 0.0
        %1135 = vmatpush.msra.mxu0 0.0
        %1136 = vmatpush.msra.mxu0 0.0
        %1137 = vmatpush.msra.mxu0 0.0
        %1138 = vmatpush.msra.mxu0 0.0
        %1139 = vmatpush.msra.mxu0 0.0
        %1140 = vmatpush.msra.mxu0 0.0
        %1141 = vmatpush.msra.mxu0 0.0
        %1142 = vmatpush.msra.mxu0 0.0
        %1143 = vmatpush.msra.mxu0 0.0
        %1144 = vmatpush.msra.mxu0 0.0
        %1145 = vmatpush.msra.mxu0 0.0
        %1146 = vmatpush.msra.mxu0 0.0
        %v1147 = vand.u32 %v989, 4294901760
        %1148 = vmatpush.msra.mxu0 %v1147
        %v1149 = vand.u32 %v988, 4294901760
        %1150 = vmatpush.msra.mxu0 %v1149
        %v1151 = vand.u32 %v995, 4294901760
        %1152 = vmatmul.f32.gmra.mxu0 %v1151
        %v1153 = vpop.f32.mrf.mxu0
        %v1154 = vadd.f32 %v1131, %v1153
        %1155 = vdwg.mxu0
        %1157 = vset.pattern.permute.xlu0 0
        %1158 = vperm.xlu0 %1157, %v772
        %v1159 = vpop.permute.xlu0 %1158
        %v1161 = vmul.f32 %v1154, %v1159
        %v1162 = vrot.slane %v772, 1
        %v1163 = vrot.slane %v772, 2
        %v1164 = vrot.slane %v772, 3
        %v1165 = vrot.slane %v772, 4
        %v1166 = vrot.slane %v772, 5
        %v1167 = vrot.slane %v772, 6
        %v1168 = vrot.slane %v772, 7
        %v1169 = vperm.slane %v772, 0
        %v1170 = vperm.slane %v1162, 0
        %v1171 = vperm.slane %v1163, 0
        %v1172 = vperm.slane %v1164, 0
        %v1173 = vperm.slane %v1165, 0
        %v1174 = vperm.slane %v1166, 0
        %v1175 = vperm.slane %v1167, 0
        %v1176 = vperm.slane %v1168, 0
        %v1185 = vmul.f32 %v1169, %v770
        %v1186 = vmul.f32 %v1169, %v771
        %v1187 = vmul.f32 %v1170, %v770
        %v1188 = vmul.f32 %v1170, %v771
        %v1189 = vmul.f32 %v1171, %v770
        %v1190 = vmul.f32 %v1171, %v771
        %v1191 = vmul.f32 %v1172, %v770
        %v1192 = vmul.f32 %v1172, %v771
        %v1193 = vmul.f32 %v1173, %v770
        %v1194 = vmul.f32 %v1173, %v771
        %v1195 = vmul.f32 %v1174, %v770
        %v1196 = vmul.f32 %v1174, %v771
        %v1197 = vmul.f32 %v1175, %v770
        %v1198 = vmul.f32 %v1175, %v771
        %v1199 = vmul.f32 %v1176, %v770
        %v1200 = vmul.f32 %v1176, %v771
        %v1201 = vld [vmem:[%s11] sm:$0xff]
        %v1202 = vld [vmem:[%s12] sm:$0x1]
        %v1204 = vperm.slane %v1202, 0
        %vm1206 = vcmask 64512
        %v1208 = vsel %vm1206, %v754, 0
        %v1211 = vsel %vm1206, %v755, 0
        %v1214 = vsel %vm1206, %v756, 0
        %v1217 = vsel %vm1206, %v757, 0
        %v1220 = vsel %vm1206, %v758, 0
        %v1223 = vsel %vm1206, %v759, 0
        %v1226 = vsel %vm1206, %v760, 0
        %v1229 = vsel %vm1206, %v761, 0
        %v1232 = vsel %vm1206, %v762, 0
        %v1235 = vsel %vm1206, %v763, 0
        %v1238 = vsel %vm1206, %v764, 0
        %v1241 = vsel %vm1206, %v765, 0
        %v1244 = vsel %vm1206, %v766, 0
        %v1247 = vsel %vm1206, %v767, 0
        %v1250 = vsel %vm1206, %v768, 0
        %v1253 = vsel %vm1206, %v769, 0
        %1255 = vmatpush.msra.mxu0 0.0
        %1256 = vmatpush.msra.mxu0 0.0
        %1257 = vmatpush.msra.mxu0 0.0
        %1258 = vmatpush.msra.mxu0 0.0
        %1259 = vmatpush.msra.mxu0 0.0
        %1260 = vmatpush.msra.mxu0 0.0
        %1261 = vmatpush.msra.mxu0 0.0
        %1262 = vmatpush.msra.mxu0 0.0
        %1263 = vmatpush.msra.mxu0 0.0
        %1264 = vmatpush.msra.mxu0 0.0
        %1265 = vmatpush.msra.mxu0 0.0
        %1266 = vmatpush.msra.mxu0 0.0
        %1267 = vmatpush.msra.mxu0 0.0
        %1268 = vmatpush.msra.mxu0 0.0
        %1269 = vmatpush.msra.mxu0 0.0
        %v1270 = vand.u32 %v1201, 4294901760
        %1271 = vmatpush.msra.mxu0 %v1270
        %v1272 = vand.u32 %v1208, 4294901760
        %v1273 = vsub.f32 %v1208, %v1272
        %v1274 = vand.u32 %v1273, 4294901760
        %v1275 = vsub.f32 %v1273, %v1274
        %v1276 = vand.u32 %v1275, 4294901760
        %1277 = vmatmul.f32.gmra.mxu0 %v1276
        %v1278 = vpop.f32.mrf.mxu0
        %v1279 = vadd.f32 %v1204, %v1278
        %v1280 = vand.u32 %v1211, 4294901760
        %v1281 = vsub.f32 %v1211, %v1280
        %v1282 = vand.u32 %v1281, 4294901760
        %v1283 = vsub.f32 %v1281, %v1282
        %v1284 = vand.u32 %v1283, 4294901760
        %1285 = vmatmul.f32.gmra.mxu0 %v1284
        %v1286 = vpop.f32.mrf.mxu0
        %v1287 = vadd.f32 %v1204, %v1286
        %v1288 = vand.u32 %v1214, 4294901760
        %v1289 = vsub.f32 %v1214, %v1288
        %v1290 = vand.u32 %v1289, 4294901760
        %v1291 = vsub.f32 %v1289, %v1290
        %v1292 = vand.u32 %v1291, 4294901760
        %1293 = vmatmul.f32.gmra.mxu0 %v1292
        %v1294 = vpop.f32.mrf.mxu0
        %v1295 = vadd.f32 %v1204, %v1294
        %v1296 = vand.u32 %v1217, 4294901760
        %v1297 = vsub.f32 %v1217, %v1296
        %v1298 = vand.u32 %v1297, 4294901760
        %v1299 = vsub.f32 %v1297, %v1298
        %v1300 = vand.u32 %v1299, 4294901760
        %1301 = vmatmul.f32.gmra.mxu0 %v1300
        %v1302 = vpop.f32.mrf.mxu0
        %v1303 = vadd.f32 %v1204, %v1302
        %v1304 = vand.u32 %v1220, 4294901760
        %v1305 = vsub.f32 %v1220, %v1304
        %v1306 = vand.u32 %v1305, 4294901760
        %v1307 = vsub.f32 %v1305, %v1306
        %v1308 = vand.u32 %v1307, 4294901760
        %1309 = vmatmul.f32.gmra.mxu0 %v1308
        %v1310 = vpop.f32.mrf.mxu0
        %v1311 = vadd.f32 %v1204, %v1310
        %v1312 = vand.u32 %v1223, 4294901760
        %v1313 = vsub.f32 %v1223, %v1312
        %v1314 = vand.u32 %v1313, 4294901760
        %v1315 = vsub.f32 %v1313, %v1314
        %v1316 = vand.u32 %v1315, 4294901760
        %1317 = vmatmul.f32.gmra.mxu0 %v1316
        %v1318 = vpop.f32.mrf.mxu0
        %v1319 = vadd.f32 %v1204, %v1318
        %v1320 = vand.u32 %v1226, 4294901760
        %v1321 = vsub.f32 %v1226, %v1320
        %v1322 = vand.u32 %v1321, 4294901760
        %v1323 = vsub.f32 %v1321, %v1322
        %v1324 = vand.u32 %v1323, 4294901760
        %1325 = vmatmul.f32.gmra.mxu0 %v1324
        %v1326 = vpop.f32.mrf.mxu0
        %v1327 = vadd.f32 %v1204, %v1326
        %v1328 = vand.u32 %v1229, 4294901760
        %v1329 = vsub.f32 %v1229, %v1328
        %v1330 = vand.u32 %v1329, 4294901760
        %v1331 = vsub.f32 %v1329, %v1330
        %v1332 = vand.u32 %v1331, 4294901760
        %1333 = vmatmul.f32.gmra.mxu0 %v1332
        %v1334 = vpop.f32.mrf.mxu0
        %v1335 = vadd.f32 %v1204, %v1334
        %v1336 = vand.u32 %v1232, 4294901760
        %v1337 = vsub.f32 %v1232, %v1336
        %v1338 = vand.u32 %v1337, 4294901760
        %v1339 = vsub.f32 %v1337, %v1338
        %v1340 = vand.u32 %v1339, 4294901760
        %1341 = vmatmul.f32.gmra.mxu0 %v1340
        %v1342 = vpop.f32.mrf.mxu0
        %v1343 = vadd.f32 %v1204, %v1342
        %v1344 = vand.u32 %v1235, 4294901760
        %v1345 = vsub.f32 %v1235, %v1344
        %v1346 = vand.u32 %v1345, 4294901760
        %v1347 = vsub.f32 %v1345, %v1346
        %v1348 = vand.u32 %v1347, 4294901760
        %1349 = vmatmul.f32.gmra.mxu0 %v1348
        %v1350 = vpop.f32.mrf.mxu0
        %v1351 = vadd.f32 %v1204, %v1350
        %v1352 = vand.u32 %v1238, 4294901760
        %v1353 = vsub.f32 %v1238, %v1352
        %v1354 = vand.u32 %v1353, 4294901760
        %v1355 = vsub.f32 %v1353, %v1354
        %v1356 = vand.u32 %v1355, 4294901760
        %1357 = vmatmul.f32.gmra.mxu0 %v1356
        %v1358 = vpop.f32.mrf.mxu0
        %v1359 = vadd.f32 %v1204, %v1358
        %v1360 = vand.u32 %v1241, 4294901760
        %v1361 = vsub.f32 %v1241, %v1360
        %v1362 = vand.u32 %v1361, 4294901760
        %v1363 = vsub.f32 %v1361, %v1362
        %v1364 = vand.u32 %v1363, 4294901760
        %1365 = vmatmul.f32.gmra.mxu0 %v1364
        %v1366 = vpop.f32.mrf.mxu0
        %v1367 = vadd.f32 %v1204, %v1366
        %v1368 = vand.u32 %v1244, 4294901760
        %v1369 = vsub.f32 %v1244, %v1368
        %v1370 = vand.u32 %v1369, 4294901760
        %v1371 = vsub.f32 %v1369, %v1370
        %v1372 = vand.u32 %v1371, 4294901760
        %1373 = vmatmul.f32.gmra.mxu0 %v1372
        %v1374 = vpop.f32.mrf.mxu0
        %v1375 = vadd.f32 %v1204, %v1374
        %v1376 = vand.u32 %v1247, 4294901760
        %v1377 = vsub.f32 %v1247, %v1376
        %v1378 = vand.u32 %v1377, 4294901760
        %v1379 = vsub.f32 %v1377, %v1378
        %v1380 = vand.u32 %v1379, 4294901760
        %1381 = vmatmul.f32.gmra.mxu0 %v1380
        %v1382 = vpop.f32.mrf.mxu0
        %v1383 = vadd.f32 %v1204, %v1382
        %v1384 = vand.u32 %v1250, 4294901760
        %v1385 = vsub.f32 %v1250, %v1384
        %v1386 = vand.u32 %v1385, 4294901760
        %v1387 = vsub.f32 %v1385, %v1386
        %v1388 = vand.u32 %v1387, 4294901760
        %1389 = vmatmul.f32.gmra.mxu0 %v1388
        %v1390 = vpop.f32.mrf.mxu0
        %v1391 = vadd.f32 %v1204, %v1390
        %v1392 = vand.u32 %v1253, 4294901760
        %v1393 = vsub.f32 %v1253, %v1392
        %v1394 = vand.u32 %v1393, 4294901760
        %v1395 = vsub.f32 %v1393, %v1394
        %v1396 = vand.u32 %v1395, 4294901760
        %1397 = vmatmul.f32.gmra.mxu0 %v1396
        %v1398 = vpop.f32.mrf.mxu0
        %v1399 = vadd.f32 %v1204, %v1398
        %1400 = vdwg.mxu0
        %1401 = vmatpush.msra.mxu0 0.0
        %1402 = vmatpush.msra.mxu0 0.0
        %1403 = vmatpush.msra.mxu0 0.0
        %1404 = vmatpush.msra.mxu0 0.0
        %1405 = vmatpush.msra.mxu0 0.0
        %1406 = vmatpush.msra.mxu0 0.0
        %1407 = vmatpush.msra.mxu0 0.0
        %1408 = vmatpush.msra.mxu0 0.0
        %1409 = vmatpush.msra.mxu0 0.0
        %1410 = vmatpush.msra.mxu0 0.0
        %1411 = vmatpush.msra.mxu0 0.0
        %1412 = vmatpush.msra.mxu0 0.0
        %1413 = vmatpush.msra.mxu0 0.0
        %1414 = vmatpush.msra.mxu0 0.0
        %1415 = vmatpush.msra.mxu0 0.0
        %v1416 = vand.u32 %v1201, 4294901760
        %v1417 = vsub.f32 %v1201, %v1416
        %v1418 = vand.u32 %v1417, 4294901760
        %v1419 = vsub.f32 %v1417, %v1418
        %v1420 = vand.u32 %v1419, 4294901760
        %1421 = vmatpush.msra.mxu0 %v1420
        %v1422 = vand.u32 %v1208, 4294901760
        %1423 = vmatmul.f32.gmra.mxu0 %v1422
        %v1424 = vpop.f32.mrf.mxu0
        %v1425 = vadd.f32 %v1279, %v1424
        %v1426 = vand.u32 %v1211, 4294901760
        %1427 = vmatmul.f32.gmra.mxu0 %v1426
        %v1428 = vpop.f32.mrf.mxu0
        %v1429 = vadd.f32 %v1287, %v1428
        %v1430 = vand.u32 %v1214, 4294901760
        %1431 = vmatmul.f32.gmra.mxu0 %v1430
        %v1432 = vpop.f32.mrf.mxu0
        %v1433 = vadd.f32 %v1295, %v1432
        %v1434 = vand.u32 %v1217, 4294901760
        %1435 = vmatmul.f32.gmra.mxu0 %v1434
        %v1436 = vpop.f32.mrf.mxu0
        %v1437 = vadd.f32 %v1303, %v1436
        %v1438 = vand.u32 %v1220, 4294901760
        %1439 = vmatmul.f32.gmra.mxu0 %v1438
        %v1440 = vpop.f32.mrf.mxu0
        %v1441 = vadd.f32 %v1311, %v1440
        %v1442 = vand.u32 %v1223, 4294901760
        %1443 = vmatmul.f32.gmra.mxu0 %v1442
        %v1444 = vpop.f32.mrf.mxu0
        %v1445 = vadd.f32 %v1319, %v1444
        %v1446 = vand.u32 %v1226, 4294901760
        %1447 = vmatmul.f32.gmra.mxu0 %v1446
        %v1448 = vpop.f32.mrf.mxu0
        %v1449 = vadd.f32 %v1327, %v1448
        %v1450 = vand.u32 %v1229, 4294901760
        %1451 = vmatmul.f32.gmra.mxu0 %v1450
        %v1452 = vpop.f32.mrf.mxu0
        %v1453 = vadd.f32 %v1335, %v1452
        %v1454 = vand.u32 %v1232, 4294901760
        %1455 = vmatmul.f32.gmra.mxu0 %v1454
        %v1456 = vpop.f32.mrf.mxu0
        %v1457 = vadd.f32 %v1343, %v1456
        %v1458 = vand.u32 %v1235, 4294901760
        %1459 = vmatmul.f32.gmra.mxu0 %v1458
        %v1460 = vpop.f32.mrf.mxu0
        %v1461 = vadd.f32 %v1351, %v1460
        %v1462 = vand.u32 %v1238, 4294901760
        %1463 = vmatmul.f32.gmra.mxu0 %v1462
        %v1464 = vpop.f32.mrf.mxu0
        %v1465 = vadd.f32 %v1359, %v1464
        %v1466 = vand.u32 %v1241, 4294901760
        %1467 = vmatmul.f32.gmra.mxu0 %v1466
        %v1468 = vpop.f32.mrf.mxu0
        %v1469 = vadd.f32 %v1367, %v1468
        %v1470 = vand.u32 %v1244, 4294901760
        %1471 = vmatmul.f32.gmra.mxu0 %v1470
        %v1472 = vpop.f32.mrf.mxu0
        %v1473 = vadd.f32 %v1375, %v1472
        %v1474 = vand.u32 %v1247, 4294901760
        %1475 = vmatmul.f32.gmra.mxu0 %v1474
        %v1476 = vpop.f32.mrf.mxu0
        %v1477 = vadd.f32 %v1383, %v1476
        %v1478 = vand.u32 %v1250, 4294901760
        %1479 = vmatmul.f32.gmra.mxu0 %v1478
        %v1480 = vpop.f32.mrf.mxu0
        %v1481 = vadd.f32 %v1391, %v1480
        %v1482 = vand.u32 %v1253, 4294901760
        %1483 = vmatmul.f32.gmra.mxu0 %v1482
        %v1484 = vpop.f32.mrf.mxu0
        %v1485 = vadd.f32 %v1399, %v1484
        %1486 = vdwg.mxu0
        %1487 = vmatpush.msra.mxu0 0.0
        %1488 = vmatpush.msra.mxu0 0.0
        %1489 = vmatpush.msra.mxu0 0.0
        %1490 = vmatpush.msra.mxu0 0.0
        %1491 = vmatpush.msra.mxu0 0.0
        %1492 = vmatpush.msra.mxu0 0.0
        %1493 = vmatpush.msra.mxu0 0.0
        %1494 = vmatpush.msra.mxu0 0.0
        %1495 = vmatpush.msra.mxu0 0.0
        %1496 = vmatpush.msra.mxu0 0.0
        %1497 = vmatpush.msra.mxu0 0.0
        %1498 = vmatpush.msra.mxu0 0.0
        %1499 = vmatpush.msra.mxu0 0.0
        %1500 = vmatpush.msra.mxu0 0.0
        %1501 = vmatpush.msra.mxu0 0.0
        %v1502 = vand.u32 %v1201, 4294901760
        %v1503 = vsub.f32 %v1201, %v1502
        %1504 = vmatpush.msra.mxu0 %v1503
        %v1505 = vand.u32 %v1208, 4294901760
        %v1506 = vsub.f32 %v1208, %v1505
        %1507 = vmatmul.f32.gmra.mxu0 %v1506
        %v1508 = vpop.f32.mrf.mxu0
        %v1509 = vadd.f32 %v1425, %v1508
        %v1510 = vand.u32 %v1211, 4294901760
        %v1511 = vsub.f32 %v1211, %v1510
        %1512 = vmatmul.f32.gmra.mxu0 %v1511
        %v1513 = vpop.f32.mrf.mxu0
        %v1514 = vadd.f32 %v1429, %v1513
        %v1515 = vand.u32 %v1214, 4294901760
        %v1516 = vsub.f32 %v1214, %v1515
        %1517 = vmatmul.f32.gmra.mxu0 %v1516
        %v1518 = vpop.f32.mrf.mxu0
        %v1519 = vadd.f32 %v1433, %v1518
        %v1520 = vand.u32 %v1217, 4294901760
        %v1521 = vsub.f32 %v1217, %v1520
        %1522 = vmatmul.f32.gmra.mxu0 %v1521
        %v1523 = vpop.f32.mrf.mxu0
        %v1524 = vadd.f32 %v1437, %v1523
        %v1525 = vand.u32 %v1220, 4294901760
        %v1526 = vsub.f32 %v1220, %v1525
        %1527 = vmatmul.f32.gmra.mxu0 %v1526
        %v1528 = vpop.f32.mrf.mxu0
        %v1529 = vadd.f32 %v1441, %v1528
        %v1530 = vand.u32 %v1223, 4294901760
        %v1531 = vsub.f32 %v1223, %v1530
        %1532 = vmatmul.f32.gmra.mxu0 %v1531
        %v1533 = vpop.f32.mrf.mxu0
        %v1534 = vadd.f32 %v1445, %v1533
        %v1535 = vand.u32 %v1226, 4294901760
        %v1536 = vsub.f32 %v1226, %v1535
        %1537 = vmatmul.f32.gmra.mxu0 %v1536
        %v1538 = vpop.f32.mrf.mxu0
        %v1539 = vadd.f32 %v1449, %v1538
        %v1540 = vand.u32 %v1229, 4294901760
        %v1541 = vsub.f32 %v1229, %v1540
        %1542 = vmatmul.f32.gmra.mxu0 %v1541
        %v1543 = vpop.f32.mrf.mxu0
        %v1544 = vadd.f32 %v1453, %v1543
        %v1545 = vand.u32 %v1232, 4294901760
        %v1546 = vsub.f32 %v1232, %v1545
        %1547 = vmatmul.f32.gmra.mxu0 %v1546
        %v1548 = vpop.f32.mrf.mxu0
        %v1549 = vadd.f32 %v1457, %v1548
        %v1550 = vand.u32 %v1235, 4294901760
        %v1551 = vsub.f32 %v1235, %v1550
        %1552 = vmatmul.f32.gmra.mxu0 %v1551
        %v1553 = vpop.f32.mrf.mxu0
        %v1554 = vadd.f32 %v1461, %v1553
        %v1555 = vand.u32 %v1238, 4294901760
        %v1556 = vsub.f32 %v1238, %v1555
        %1557 = vmatmul.f32.gmra.mxu0 %v1556
        %v1558 = vpop.f32.mrf.mxu0
        %v1559 = vadd.f32 %v1465, %v1558
        %v1560 = vand.u32 %v1241, 4294901760
        %v1561 = vsub.f32 %v1241, %v1560
        %1562 = vmatmul.f32.gmra.mxu0 %v1561
        %v1563 = vpop.f32.mrf.mxu0
        %v1564 = vadd.f32 %v1469, %v1563
        %v1565 = vand.u32 %v1244, 4294901760
        %v1566 = vsub.f32 %v1244, %v1565
        %1567 = vmatmul.f32.gmra.mxu0 %v1566
        %v1568 = vpop.f32.mrf.mxu0
        %v1569 = vadd.f32 %v1473, %v1568
        %v1570 = vand.u32 %v1247, 4294901760
        %v1571 = vsub.f32 %v1247, %v1570
        %1572 = vmatmul.f32.gmra.mxu0 %v1571
        %v1573 = vpop.f32.mrf.mxu0
        %v1574 = vadd.f32 %v1477, %v1573
        %v1575 = vand.u32 %v1250, 4294901760
        %v1576 = vsub.f32 %v1250, %v1575
        %1577 = vmatmul.f32.gmra.mxu0 %v1576
        %v1578 = vpop.f32.mrf.mxu0
        %v1579 = vadd.f32 %v1481, %v1578
        %v1580 = vand.u32 %v1253, 4294901760
        %v1581 = vsub.f32 %v1253, %v1580
        %1582 = vmatmul.f32.gmra.mxu0 %v1581
        %v1583 = vpop.f32.mrf.mxu0
        %v1584 = vadd.f32 %v1485, %v1583
        %1585 = vdwg.mxu0
        %1586 = vmatpush.msra.mxu0 0.0
        %1587 = vmatpush.msra.mxu0 0.0
        %1588 = vmatpush.msra.mxu0 0.0
        %1589 = vmatpush.msra.mxu0 0.0
        %1590 = vmatpush.msra.mxu0 0.0
        %1591 = vmatpush.msra.mxu0 0.0
        %1592 = vmatpush.msra.mxu0 0.0
        %1593 = vmatpush.msra.mxu0 0.0
        %1594 = vmatpush.msra.mxu0 0.0
        %1595 = vmatpush.msra.mxu0 0.0
        %1596 = vmatpush.msra.mxu0 0.0
        %1597 = vmatpush.msra.mxu0 0.0
        %1598 = vmatpush.msra.mxu0 0.0
        %1599 = vmatpush.msra.mxu0 0.0
        %1600 = vmatpush.msra.mxu0 0.0
        %v1601 = vand.u32 %v1201, 4294901760
        %1602 = vmatpush.msra.mxu0 %v1601
        %v1603 = vand.u32 %v1208, 4294901760
        %v1604 = vsub.f32 %v1208, %v1603
        %v1605 = vand.u32 %v1604, 4294901760
        %1606 = vmatmul.f32.gmra.mxu0 %v1605
        %v1607 = vpop.f32.mrf.mxu0
        %v1608 = vadd.f32 %v1509, %v1607
        %v1609 = vand.u32 %v1211, 4294901760
        %v1610 = vsub.f32 %v1211, %v1609
        %v1611 = vand.u32 %v1610, 4294901760
        %1612 = vmatmul.f32.gmra.mxu0 %v1611
        %v1613 = vpop.f32.mrf.mxu0
        %v1614 = vadd.f32 %v1514, %v1613
        %v1615 = vand.u32 %v1214, 4294901760
        %v1616 = vsub.f32 %v1214, %v1615
        %v1617 = vand.u32 %v1616, 4294901760
        %1618 = vmatmul.f32.gmra.mxu0 %v1617
        %v1619 = vpop.f32.mrf.mxu0
        %v1620 = vadd.f32 %v1519, %v1619
        %v1621 = vand.u32 %v1217, 4294901760
        %v1622 = vsub.f32 %v1217, %v1621
        %v1623 = vand.u32 %v1622, 4294901760
        %1624 = vmatmul.f32.gmra.mxu0 %v1623
        %v1625 = vpop.f32.mrf.mxu0
        %v1626 = vadd.f32 %v1524, %v1625
        %v1627 = vand.u32 %v1220, 4294901760
        %v1628 = vsub.f32 %v1220, %v1627
        %v1629 = vand.u32 %v1628, 4294901760
        %1630 = vmatmul.f32.gmra.mxu0 %v1629
        %v1631 = vpop.f32.mrf.mxu0
        %v1632 = vadd.f32 %v1529, %v1631
        %v1633 = vand.u32 %v1223, 4294901760
        %v1634 = vsub.f32 %v1223, %v1633
        %v1635 = vand.u32 %v1634, 4294901760
        %1636 = vmatmul.f32.gmra.mxu0 %v1635
        %v1637 = vpop.f32.mrf.mxu0
        %v1638 = vadd.f32 %v1534, %v1637
        %v1639 = vand.u32 %v1226, 4294901760
        %v1640 = vsub.f32 %v1226, %v1639
        %v1641 = vand.u32 %v1640, 4294901760
        %1642 = vmatmul.f32.gmra.mxu0 %v1641
        %v1643 = vpop.f32.mrf.mxu0
        %v1644 = vadd.f32 %v1539, %v1643
        %v1645 = vand.u32 %v1229, 4294901760
        %v1646 = vsub.f32 %v1229, %v1645
        %v1647 = vand.u32 %v1646, 4294901760
        %1648 = vmatmul.f32.gmra.mxu0 %v1647
        %v1649 = vpop.f32.mrf.mxu0
        %v1650 = vadd.f32 %v1544, %v1649
        %v1651 = vand.u32 %v1232, 4294901760
        %v1652 = vsub.f32 %v1232, %v1651
        %v1653 = vand.u32 %v1652, 4294901760
        %1654 = vmatmul.f32.gmra.mxu0 %v1653
        %v1655 = vpop.f32.mrf.mxu0
        %v1656 = vadd.f32 %v1549, %v1655
        %v1657 = vand.u32 %v1235, 4294901760
        %v1658 = vsub.f32 %v1235, %v1657
        %v1659 = vand.u32 %v1658, 4294901760
        %1660 = vmatmul.f32.gmra.mxu0 %v1659
        %v1661 = vpop.f32.mrf.mxu0
        %v1662 = vadd.f32 %v1554, %v1661
        %v1663 = vand.u32 %v1238, 4294901760
        %v1664 = vsub.f32 %v1238, %v1663
        %v1665 = vand.u32 %v1664, 4294901760
        %1666 = vmatmul.f32.gmra.mxu0 %v1665
        %v1667 = vpop.f32.mrf.mxu0
        %v1668 = vadd.f32 %v1559, %v1667
        %v1669 = vand.u32 %v1241, 4294901760
        %v1670 = vsub.f32 %v1241, %v1669
        %v1671 = vand.u32 %v1670, 4294901760
        %1672 = vmatmul.f32.gmra.mxu0 %v1671
        %v1673 = vpop.f32.mrf.mxu0
        %v1674 = vadd.f32 %v1564, %v1673
        %v1675 = vand.u32 %v1244, 4294901760
        %v1676 = vsub.f32 %v1244, %v1675
        %v1677 = vand.u32 %v1676, 4294901760
        %1678 = vmatmul.f32.gmra.mxu0 %v1677
        %v1679 = vpop.f32.mrf.mxu0
        %v1680 = vadd.f32 %v1569, %v1679
        %v1681 = vand.u32 %v1247, 4294901760
        %v1682 = vsub.f32 %v1247, %v1681
        %v1683 = vand.u32 %v1682, 4294901760
        %1684 = vmatmul.f32.gmra.mxu0 %v1683
        %v1685 = vpop.f32.mrf.mxu0
        %v1686 = vadd.f32 %v1574, %v1685
        %v1687 = vand.u32 %v1250, 4294901760
        %v1688 = vsub.f32 %v1250, %v1687
        %v1689 = vand.u32 %v1688, 4294901760
        %1690 = vmatmul.f32.gmra.mxu0 %v1689
        %v1691 = vpop.f32.mrf.mxu0
        %v1692 = vadd.f32 %v1579, %v1691
        %v1693 = vand.u32 %v1253, 4294901760
        %v1694 = vsub.f32 %v1253, %v1693
        %v1695 = vand.u32 %v1694, 4294901760
        %1696 = vmatmul.f32.gmra.mxu0 %v1695
        %v1697 = vpop.f32.mrf.mxu0
        %v1698 = vadd.f32 %v1584, %v1697
        %1699 = vdwg.mxu0
        %1700 = vmatpush.msra.mxu0 0.0
        %1701 = vmatpush.msra.mxu0 0.0
        %1702 = vmatpush.msra.mxu0 0.0
        %1703 = vmatpush.msra.mxu0 0.0
        %1704 = vmatpush.msra.mxu0 0.0
        %1705 = vmatpush.msra.mxu0 0.0
        %1706 = vmatpush.msra.mxu0 0.0
        %1707 = vmatpush.msra.mxu0 0.0
        %1708 = vmatpush.msra.mxu0 0.0
        %1709 = vmatpush.msra.mxu0 0.0
        %1710 = vmatpush.msra.mxu0 0.0
        %1711 = vmatpush.msra.mxu0 0.0
        %1712 = vmatpush.msra.mxu0 0.0
        %1713 = vmatpush.msra.mxu0 0.0
        %1714 = vmatpush.msra.mxu0 0.0
        %v1715 = vand.u32 %v1201, 4294901760
        %v1716 = vsub.f32 %v1201, %v1715
        %v1717 = vand.u32 %v1716, 4294901760
        %1718 = vmatpush.msra.mxu0 %v1717
        %v1719 = vand.u32 %v1208, 4294901760
        %1720 = vmatmul.f32.gmra.mxu0 %v1719
        %v1721 = vpop.f32.mrf.mxu0
        %v1722 = vadd.f32 %v1608, %v1721
        %v1723 = vand.u32 %v1211, 4294901760
        %1724 = vmatmul.f32.gmra.mxu0 %v1723
        %v1725 = vpop.f32.mrf.mxu0
        %v1726 = vadd.f32 %v1614, %v1725
        %v1727 = vand.u32 %v1214, 4294901760
        %1728 = vmatmul.f32.gmra.mxu0 %v1727
        %v1729 = vpop.f32.mrf.mxu0
        %v1730 = vadd.f32 %v1620, %v1729
        %v1731 = vand.u32 %v1217, 4294901760
        %1732 = vmatmul.f32.gmra.mxu0 %v1731
        %v1733 = vpop.f32.mrf.mxu0
        %v1734 = vadd.f32 %v1626, %v1733
        %v1735 = vand.u32 %v1220, 4294901760
        %1736 = vmatmul.f32.gmra.mxu0 %v1735
        %v1737 = vpop.f32.mrf.mxu0
        %v1738 = vadd.f32 %v1632, %v1737
        %v1739 = vand.u32 %v1223, 4294901760
        %1740 = vmatmul.f32.gmra.mxu0 %v1739
        %v1741 = vpop.f32.mrf.mxu0
        %v1742 = vadd.f32 %v1638, %v1741
        %v1743 = vand.u32 %v1226, 4294901760
        %1744 = vmatmul.f32.gmra.mxu0 %v1743
        %v1745 = vpop.f32.mrf.mxu0
        %v1746 = vadd.f32 %v1644, %v1745
        %v1747 = vand.u32 %v1229, 4294901760
        %1748 = vmatmul.f32.gmra.mxu0 %v1747
        %v1749 = vpop.f32.mrf.mxu0
        %v1750 = vadd.f32 %v1650, %v1749
        %v1751 = vand.u32 %v1232, 4294901760
        %1752 = vmatmul.f32.gmra.mxu0 %v1751
        %v1753 = vpop.f32.mrf.mxu0
        %v1754 = vadd.f32 %v1656, %v1753
        %v1755 = vand.u32 %v1235, 4294901760
        %1756 = vmatmul.f32.gmra.mxu0 %v1755
        %v1757 = vpop.f32.mrf.mxu0
        %v1758 = vadd.f32 %v1662, %v1757
        %v1759 = vand.u32 %v1238, 4294901760
        %1760 = vmatmul.f32.gmra.mxu0 %v1759
        %v1761 = vpop.f32.mrf.mxu0
        %v1762 = vadd.f32 %v1668, %v1761
        %v1763 = vand.u32 %v1241, 4294901760
        %1764 = vmatmul.f32.gmra.mxu0 %v1763
        %v1765 = vpop.f32.mrf.mxu0
        %v1766 = vadd.f32 %v1674, %v1765
        %v1767 = vand.u32 %v1244, 4294901760
        %1768 = vmatmul.f32.gmra.mxu0 %v1767
        %v1769 = vpop.f32.mrf.mxu0
        %v1770 = vadd.f32 %v1680, %v1769
        %v1771 = vand.u32 %v1247, 4294901760
        %1772 = vmatmul.f32.gmra.mxu0 %v1771
        %v1773 = vpop.f32.mrf.mxu0
        %v1774 = vadd.f32 %v1686, %v1773
        %v1775 = vand.u32 %v1250, 4294901760
        %1776 = vmatmul.f32.gmra.mxu0 %v1775
        %v1777 = vpop.f32.mrf.mxu0
        %v1778 = vadd.f32 %v1692, %v1777
        %v1779 = vand.u32 %v1253, 4294901760
        %1780 = vmatmul.f32.gmra.mxu0 %v1779
        %v1781 = vpop.f32.mrf.mxu0
        %v1782 = vadd.f32 %v1698, %v1781
        %1783 = vdwg.mxu0
        %1784 = vmatpush.msra.mxu0 0.0
        %1785 = vmatpush.msra.mxu0 0.0
        %1786 = vmatpush.msra.mxu0 0.0
        %1787 = vmatpush.msra.mxu0 0.0
        %1788 = vmatpush.msra.mxu0 0.0
        %1789 = vmatpush.msra.mxu0 0.0
        %1790 = vmatpush.msra.mxu0 0.0
        %1791 = vmatpush.msra.mxu0 0.0
        %1792 = vmatpush.msra.mxu0 0.0
        %1793 = vmatpush.msra.mxu0 0.0
        %1794 = vmatpush.msra.mxu0 0.0
        %1795 = vmatpush.msra.mxu0 0.0
        %1796 = vmatpush.msra.mxu0 0.0
        %1797 = vmatpush.msra.mxu0 0.0
        %1798 = vmatpush.msra.mxu0 0.0
        %v1799 = vand.u32 %v1201, 4294901760
        %1800 = vmatpush.msra.mxu0 %v1799
        %v1801 = vand.u32 %v1208, 4294901760
        %1802 = vmatmul.f32.gmra.mxu0 %v1801
        %v1803 = vpop.f32.mrf.mxu0
        %v1804 = vadd.f32 %v1722, %v1803
        %v1805 = vand.u32 %v1211, 4294901760
        %1806 = vmatmul.f32.gmra.mxu0 %v1805
        %v1807 = vpop.f32.mrf.mxu0
        %v1808 = vadd.f32 %v1726, %v1807
        %v1809 = vand.u32 %v1214, 4294901760
        %1810 = vmatmul.f32.gmra.mxu0 %v1809
        %v1811 = vpop.f32.mrf.mxu0
        %v1812 = vadd.f32 %v1730, %v1811
        %v1813 = vand.u32 %v1217, 4294901760
        %1814 = vmatmul.f32.gmra.mxu0 %v1813
        %v1815 = vpop.f32.mrf.mxu0
        %v1816 = vadd.f32 %v1734, %v1815
        %v1817 = vand.u32 %v1220, 4294901760
        %1818 = vmatmul.f32.gmra.mxu0 %v1817
        %v1819 = vpop.f32.mrf.mxu0
        %v1820 = vadd.f32 %v1738, %v1819
        %v1821 = vand.u32 %v1223, 4294901760
        %1822 = vmatmul.f32.gmra.mxu0 %v1821
        %v1823 = vpop.f32.mrf.mxu0
        %v1824 = vadd.f32 %v1742, %v1823
        %v1825 = vand.u32 %v1226, 4294901760
        %1826 = vmatmul.f32.gmra.mxu0 %v1825
        %v1827 = vpop.f32.mrf.mxu0
        %v1828 = vadd.f32 %v1746, %v1827
        %v1829 = vand.u32 %v1229, 4294901760
        %1830 = vmatmul.f32.gmra.mxu0 %v1829
        %v1831 = vpop.f32.mrf.mxu0
        %v1832 = vadd.f32 %v1750, %v1831
        %v1833 = vand.u32 %v1232, 4294901760
        %1834 = vmatmul.f32.gmra.mxu0 %v1833
        %v1835 = vpop.f32.mrf.mxu0
        %v1836 = vadd.f32 %v1754, %v1835
        %v1837 = vand.u32 %v1235, 4294901760
        %1838 = vmatmul.f32.gmra.mxu0 %v1837
        %v1839 = vpop.f32.mrf.mxu0
        %v1840 = vadd.f32 %v1758, %v1839
        %v1841 = vand.u32 %v1238, 4294901760
        %1842 = vmatmul.f32.gmra.mxu0 %v1841
        %v1843 = vpop.f32.mrf.mxu0
        %v1844 = vadd.f32 %v1762, %v1843
        %v1845 = vand.u32 %v1241, 4294901760
        %1846 = vmatmul.f32.gmra.mxu0 %v1845
        %v1847 = vpop.f32.mrf.mxu0
        %v1848 = vadd.f32 %v1766, %v1847
        %v1849 = vand.u32 %v1244, 4294901760
        %1850 = vmatmul.f32.gmra.mxu0 %v1849
        %v1851 = vpop.f32.mrf.mxu0
        %v1852 = vadd.f32 %v1770, %v1851
        %v1853 = vand.u32 %v1247, 4294901760
        %1854 = vmatmul.f32.gmra.mxu0 %v1853
        %v1855 = vpop.f32.mrf.mxu0
        %v1856 = vadd.f32 %v1774, %v1855
        %v1857 = vand.u32 %v1250, 4294901760
        %1858 = vmatmul.f32.gmra.mxu0 %v1857
        %v1859 = vpop.f32.mrf.mxu0
        %v1860 = vadd.f32 %v1778, %v1859
        %v1861 = vand.u32 %v1253, 4294901760
        %1862 = vmatmul.f32.gmra.mxu0 %v1861
        %v1863 = vpop.f32.mrf.mxu0
        %v1864 = vadd.f32 %v1782, %v1863
        %1865 = vdwg.mxu0
        %1867 = vset.pattern.permute.xlu0 0
        %1868 = vperm.xlu0 %1867, %v1185
        %v1869 = vpop.permute.xlu0 %1868
        %1872 = vset.pattern.permute.xlu0 0
        %1873 = vperm.xlu0 %1872, %v1186
        %v1874 = vpop.permute.xlu0 %1873
        %1877 = vset.pattern.permute.xlu0 0
        %1878 = vperm.xlu0 %1877, %v1187
        %v1879 = vpop.permute.xlu0 %1878
        %1882 = vset.pattern.permute.xlu0 0
        %1883 = vperm.xlu0 %1882, %v1188
        %v1884 = vpop.permute.xlu0 %1883
        %1887 = vset.pattern.permute.xlu0 0
        %1888 = vperm.xlu0 %1887, %v1189
        %v1889 = vpop.permute.xlu0 %1888
        %1892 = vset.pattern.permute.xlu0 0
        %1893 = vperm.xlu0 %1892, %v1190
        %v1894 = vpop.permute.xlu0 %1893
        %1897 = vset.pattern.permute.xlu0 0
        %1898 = vperm.xlu0 %1897, %v1191
        %v1899 = vpop.permute.xlu0 %1898
        %1902 = vset.pattern.permute.xlu0 0
        %1903 = vperm.xlu0 %1902, %v1192
        %v1904 = vpop.permute.xlu0 %1903
        %1907 = vset.pattern.permute.xlu0 0
        %1908 = vperm.xlu0 %1907, %v1193
        %v1909 = vpop.permute.xlu0 %1908
        %1912 = vset.pattern.permute.xlu0 0
        %1913 = vperm.xlu0 %1912, %v1194
        %v1914 = vpop.permute.xlu0 %1913
        %1917 = vset.pattern.permute.xlu0 0
        %1918 = vperm.xlu0 %1917, %v1195
        %v1919 = vpop.permute.xlu0 %1918
        %1922 = vset.pattern.permute.xlu0 0
        %1923 = vperm.xlu0 %1922, %v1196
        %v1924 = vpop.permute.xlu0 %1923
        %1927 = vset.pattern.permute.xlu0 0
        %1928 = vperm.xlu0 %1927, %v1197
        %v1929 = vpop.permute.xlu0 %1928
        %1932 = vset.pattern.permute.xlu0 0
        %1933 = vperm.xlu0 %1932, %v1198
        %v1934 = vpop.permute.xlu0 %1933
        %1937 = vset.pattern.permute.xlu0 0
        %1938 = vperm.xlu0 %1937, %v1199
        %v1939 = vpop.permute.xlu0 %1938
        %1942 = vset.pattern.permute.xlu0 0
        %1943 = vperm.xlu0 %1942, %v1200
        %v1944 = vpop.permute.xlu0 %1943
        %v1946 = vmul.f32 %v1804, %v1869
        %v1947 = vmul.f32 %v1808, %v1874
        %v1948 = vmul.f32 %v1812, %v1879
        %v1949 = vmul.f32 %v1816, %v1884
        %v1950 = vmul.f32 %v1820, %v1889
        %v1951 = vmul.f32 %v1824, %v1894
        %v1952 = vmul.f32 %v1828, %v1899
        %v1953 = vmul.f32 %v1832, %v1904
        %v1954 = vmul.f32 %v1836, %v1909
        %v1955 = vmul.f32 %v1840, %v1914
        %v1956 = vmul.f32 %v1844, %v1919
        %v1957 = vmul.f32 %v1848, %v1924
        %v1958 = vmul.f32 %v1852, %v1929
        %v1959 = vmul.f32 %v1856, %v1934
        %v1960 = vmul.f32 %v1860, %v1939
        %v1961 = vmul.f32 %v1864, %v1944
        %v1963 = vrot.slane %v1161, 1
        %v1964 = vrot.slane %v1161, 2
        %v1965 = vrot.slane %v1161, 3
        %v1966 = vrot.slane %v1161, 4
        %v1967 = vrot.slane %v1161, 5
        %v1968 = vrot.slane %v1161, 6
        %v1969 = vrot.slane %v1161, 7
        %v1970 = vperm.slane %v1161, 0
        %v1971 = vperm.slane %v1963, 0
        %v1972 = vperm.slane %v1964, 0
        %v1973 = vperm.slane %v1965, 0
        %v1974 = vperm.slane %v1966, 0
        %v1975 = vperm.slane %v1967, 0
        %v1976 = vperm.slane %v1968, 0
        %v1977 = vperm.slane %v1969, 0
        %v1986 = vmul.f32 %v1970, %v986
        %v1987 = vmul.f32 %v1970, %v987
        %v1988 = vmul.f32 %v1971, %v986
        %v1989 = vmul.f32 %v1971, %v987
        %v1990 = vmul.f32 %v1972, %v986
        %v1991 = vmul.f32 %v1972, %v987
        %v1992 = vmul.f32 %v1973, %v986
        %v1993 = vmul.f32 %v1973, %v987
        %v1994 = vmul.f32 %v1974, %v986
        %v1995 = vmul.f32 %v1974, %v987
        %v1996 = vmul.f32 %v1975, %v986
        %v1997 = vmul.f32 %v1975, %v987
        %v1998 = vmul.f32 %v1976, %v986
        %v1999 = vmul.f32 %v1976, %v987
        %v2000 = vmul.f32 %v1977, %v986
        %v2001 = vmul.f32 %v1977, %v987
        %v2002 = vmul.f32 %v1986, 0.5
        %v2003 = vmul.f32 %v1987, 0.5
        %v2004 = vmul.f32 %v1988, 0.5
        %v2005 = vmul.f32 %v1989, 0.5
        %v2006 = vmul.f32 %v1990, 0.5
        %v2007 = vmul.f32 %v1991, 0.5
        %v2008 = vmul.f32 %v1992, 0.5
        %v2009 = vmul.f32 %v1993, 0.5
        %v2010 = vmul.f32 %v1994, 0.5
        %v2011 = vmul.f32 %v1995, 0.5
        %v2012 = vmul.f32 %v1996, 0.5
        %v2013 = vmul.f32 %v1997, 0.5
        %v2014 = vmul.f32 %v1998, 0.5
        %v2015 = vmul.f32 %v1999, 0.5
        %v2016 = vmul.f32 %v2000, 0.5
        %v2017 = vmul.f32 %v2001, 0.5
        %v2018 = vadd.f32 %v1946, 1.0
        %v2019 = vadd.f32 %v1947, 1.0
        %v2020 = vadd.f32 %v1948, 1.0
        %v2021 = vadd.f32 %v1949, 1.0
        %v2022 = vadd.f32 %v1950, 1.0
        %v2023 = vadd.f32 %v1951, 1.0
        %v2024 = vadd.f32 %v1952, 1.0
        %v2025 = vadd.f32 %v1953, 1.0
        %v2026 = vadd.f32 %v1954, 1.0
        %v2027 = vadd.f32 %v1955, 1.0
        %v2028 = vadd.f32 %v1956, 1.0
        %v2029 = vadd.f32 %v1957, 1.0
        %v2030 = vadd.f32 %v1958, 1.0
        %v2031 = vadd.f32 %v1959, 1.0
        %v2032 = vadd.f32 %v1960, 1.0
        %v2033 = vadd.f32 %v1961, 1.0
        %v2034 = vmul.f32 %v2002, %v2018
        %v2035 = vmul.f32 %v2003, %v2019
        %v2036 = vmul.f32 %v2004, %v2020
        %v2037 = vmul.f32 %v2005, %v2021
        %v2038 = vmul.f32 %v2006, %v2022
        %v2039 = vmul.f32 %v2007, %v2023
        %v2040 = vmul.f32 %v2008, %v2024
        %v2041 = vmul.f32 %v2009, %v2025
        %v2042 = vmul.f32 %v2010, %v2026
        %v2043 = vmul.f32 %v2011, %v2027
        %v2044 = vmul.f32 %v2012, %v2028
        %v2045 = vmul.f32 %v2013, %v2029
        %v2046 = vmul.f32 %v2014, %v2030
        %v2047 = vmul.f32 %v2015, %v2031
        %v2048 = vmul.f32 %v2016, %v2032
        %v2049 = vmul.f32 %v2017, %v2033
        %2066 = vrot.lane.b32.xlu0 %v1946, 112
        %v2067 = vpop.permute.xlu0 %2066
        %2068 = vrot.lane.b32.xlu0 %v1947, 112
        %v2069 = vpop.permute.xlu0 %2068
        %2070 = vrot.lane.b32.xlu0 %v1948, 112
        %v2071 = vpop.permute.xlu0 %2070
        %2072 = vrot.lane.b32.xlu0 %v1949, 112
        %v2073 = vpop.permute.xlu0 %2072
        %2074 = vrot.lane.b32.xlu0 %v1950, 112
        %v2075 = vpop.permute.xlu0 %2074
        %2076 = vrot.lane.b32.xlu0 %v1951, 112
        %v2077 = vpop.permute.xlu0 %2076
        %2078 = vrot.lane.b32.xlu0 %v1952, 112
        %v2079 = vpop.permute.xlu0 %2078
        %2080 = vrot.lane.b32.xlu0 %v1953, 112
        %v2081 = vpop.permute.xlu0 %2080
        %2082 = vrot.lane.b32.xlu0 %v1954, 112
        %v2083 = vpop.permute.xlu0 %2082
        %2084 = vrot.lane.b32.xlu0 %v1955, 112
        %v2085 = vpop.permute.xlu0 %2084
        %2086 = vrot.lane.b32.xlu0 %v1956, 112
        %v2087 = vpop.permute.xlu0 %2086
        %2088 = vrot.lane.b32.xlu0 %v1957, 112
        %v2089 = vpop.permute.xlu0 %2088
        %2090 = vrot.lane.b32.xlu0 %v1958, 112
        %v2091 = vpop.permute.xlu0 %2090
        %2092 = vrot.lane.b32.xlu0 %v1959, 112
        %v2093 = vpop.permute.xlu0 %2092
        %2094 = vrot.lane.b32.xlu0 %v1960, 112
        %v2095 = vpop.permute.xlu0 %2094
        %2096 = vrot.lane.b32.xlu0 %v1961, 112
        %v2097 = vpop.permute.xlu0 %2096
        %v2114 = vadd.f32 %v2034, %v2067
        %v2115 = vadd.f32 %v2035, %v2069
        %v2116 = vadd.f32 %v2036, %v2071
        %v2117 = vadd.f32 %v2037, %v2073
        %v2118 = vadd.f32 %v2038, %v2075
        %v2119 = vadd.f32 %v2039, %v2077
        %v2120 = vadd.f32 %v2040, %v2079
        %v2121 = vadd.f32 %v2041, %v2081
        %v2122 = vadd.f32 %v2042, %v2083
        %v2123 = vadd.f32 %v2043, %v2085
        %v2124 = vadd.f32 %v2044, %v2087
        %v2125 = vadd.f32 %v2045, %v2089
        %v2126 = vadd.f32 %v2046, %v2091
        %v2127 = vadd.f32 %v2047, %v2093
        %v2128 = vadd.f32 %v2048, %v2095
        %v2129 = vadd.f32 %v2049, %v2097
        %v2130 = vld [vmem:[%s13] sm:$0xff]
        %v2131 = vld [vmem:[%s13 + $0x8] sm:$0xff]
        %v2132 = vld [vmem:[%s14] sm:$0x1]
        %v2134 = vperm.slane %v2132, 0
        %v2137 = vsel %vm779, %v2114, 0
        %v2140 = vsel %vm779, %v2115, 0
        %v2143 = vsel %vm779, %v2116, 0
        %v2146 = vsel %vm779, %v2117, 0
        %v2149 = vsel %vm779, %v2118, 0
        %v2152 = vsel %vm779, %v2119, 0
        %v2155 = vsel %vm779, %v2120, 0
        %v2158 = vsel %vm779, %v2121, 0
        %v2161 = vsel %vm779, %v2122, 0
        %v2164 = vsel %vm779, %v2123, 0
        %v2167 = vsel %vm779, %v2124, 0
        %v2170 = vsel %vm779, %v2125, 0
        %v2173 = vsel %vm779, %v2126, 0
        %v2176 = vsel %vm779, %v2127, 0
        %v2179 = vsel %vm779, %v2128, 0
        %v2182 = vsel %vm779, %v2129, 0
        %2184 = vmatpush.msra.mxu0 0.0
        %2185 = vmatpush.msra.mxu0 0.0
        %2186 = vmatpush.msra.mxu0 0.0
        %2187 = vmatpush.msra.mxu0 0.0
        %2188 = vmatpush.msra.mxu0 0.0
        %2189 = vmatpush.msra.mxu0 0.0
        %2190 = vmatpush.msra.mxu0 0.0
        %2191 = vmatpush.msra.mxu0 0.0
        %2192 = vmatpush.msra.mxu0 0.0
        %2193 = vmatpush.msra.mxu0 0.0
        %2194 = vmatpush.msra.mxu0 0.0
        %2195 = vmatpush.msra.mxu0 0.0
        %2196 = vmatpush.msra.mxu0 0.0
        %2197 = vmatpush.msra.mxu0 0.0
        %v2198 = vand.u32 %v2131, 4294901760
        %2199 = vmatpush.msra.mxu0 %v2198
        %v2200 = vand.u32 %v2130, 4294901760
        %2201 = vmatpush.msra.mxu0 %v2200
        %v2202 = vand.u32 %v2137, 4294901760
        %v2203 = vsub.f32 %v2137, %v2202
        %v2204 = vand.u32 %v2203, 4294901760
        %v2205 = vsub.f32 %v2203, %v2204
        %v2206 = vand.u32 %v2205, 4294901760
        %2207 = vmatmul.f32.gmra.mxu0 %v2206
        %v2208 = vpop.f32.mrf.mxu0
        %v2209 = vadd.f32 %v2134, %v2208
        %v2210 = vand.u32 %v2140, 4294901760
        %v2211 = vsub.f32 %v2140, %v2210
        %v2212 = vand.u32 %v2211, 4294901760
        %v2213 = vsub.f32 %v2211, %v2212
        %v2214 = vand.u32 %v2213, 4294901760
        %2215 = vmatmul.f32.gmra.mxu0 %v2214
        %v2216 = vpop.f32.mrf.mxu0
        %v2217 = vadd.f32 %v2134, %v2216
        %v2218 = vand.u32 %v2143, 4294901760
        %v2219 = vsub.f32 %v2143, %v2218
        %v2220 = vand.u32 %v2219, 4294901760
        %v2221 = vsub.f32 %v2219, %v2220
        %v2222 = vand.u32 %v2221, 4294901760
        %2223 = vmatmul.f32.gmra.mxu0 %v2222
        %v2224 = vpop.f32.mrf.mxu0
        %v2225 = vadd.f32 %v2134, %v2224
        %v2226 = vand.u32 %v2146, 4294901760
        %v2227 = vsub.f32 %v2146, %v2226
        %v2228 = vand.u32 %v2227, 4294901760
        %v2229 = vsub.f32 %v2227, %v2228
        %v2230 = vand.u32 %v2229, 4294901760
        %2231 = vmatmul.f32.gmra.mxu0 %v2230
        %v2232 = vpop.f32.mrf.mxu0
        %v2233 = vadd.f32 %v2134, %v2232
        %v2234 = vand.u32 %v2149, 4294901760
        %v2235 = vsub.f32 %v2149, %v2234
        %v2236 = vand.u32 %v2235, 4294901760
        %v2237 = vsub.f32 %v2235, %v2236
        %v2238 = vand.u32 %v2237, 4294901760
        %2239 = vmatmul.f32.gmra.mxu0 %v2238
        %v2240 = vpop.f32.mrf.mxu0
        %v2241 = vadd.f32 %v2134, %v2240
        %v2242 = vand.u32 %v2152, 4294901760
        %v2243 = vsub.f32 %v2152, %v2242
        %v2244 = vand.u32 %v2243, 4294901760
        %v2245 = vsub.f32 %v2243, %v2244
        %v2246 = vand.u32 %v2245, 4294901760
        %2247 = vmatmul.f32.gmra.mxu0 %v2246
        %v2248 = vpop.f32.mrf.mxu0
        %v2249 = vadd.f32 %v2134, %v2248
        %v2250 = vand.u32 %v2155, 4294901760
        %v2251 = vsub.f32 %v2155, %v2250
        %v2252 = vand.u32 %v2251, 4294901760
        %v2253 = vsub.f32 %v2251, %v2252
        %v2254 = vand.u32 %v2253, 4294901760
        %2255 = vmatmul.f32.gmra.mxu0 %v2254
        %v2256 = vpop.f32.mrf.mxu0
        %v2257 = vadd.f32 %v2134, %v2256
        %v2258 = vand.u32 %v2158, 4294901760
        %v2259 = vsub.f32 %v2158, %v2258
        %v2260 = vand.u32 %v2259, 4294901760
        %v2261 = vsub.f32 %v2259, %v2260
        %v2262 = vand.u32 %v2261, 4294901760
        %2263 = vmatmul.f32.gmra.mxu0 %v2262
        %v2264 = vpop.f32.mrf.mxu0
        %v2265 = vadd.f32 %v2134, %v2264
        %v2266 = vand.u32 %v2161, 4294901760
        %v2267 = vsub.f32 %v2161, %v2266
        %v2268 = vand.u32 %v2267, 4294901760
        %v2269 = vsub.f32 %v2267, %v2268
        %v2270 = vand.u32 %v2269, 4294901760
        %2271 = vmatmul.f32.gmra.mxu0 %v2270
        %v2272 = vpop.f32.mrf.mxu0
        %v2273 = vadd.f32 %v2134, %v2272
        %v2274 = vand.u32 %v2164, 4294901760
        %v2275 = vsub.f32 %v2164, %v2274
        %v2276 = vand.u32 %v2275, 4294901760
        %v2277 = vsub.f32 %v2275, %v2276
        %v2278 = vand.u32 %v2277, 4294901760
        %2279 = vmatmul.f32.gmra.mxu0 %v2278
        %v2280 = vpop.f32.mrf.mxu0
        %v2281 = vadd.f32 %v2134, %v2280
        %v2282 = vand.u32 %v2167, 4294901760
        %v2283 = vsub.f32 %v2167, %v2282
        %v2284 = vand.u32 %v2283, 4294901760
        %v2285 = vsub.f32 %v2283, %v2284
        %v2286 = vand.u32 %v2285, 4294901760
        %2287 = vmatmul.f32.gmra.mxu0 %v2286
        %v2288 = vpop.f32.mrf.mxu0
        %v2289 = vadd.f32 %v2134, %v2288
        %v2290 = vand.u32 %v2170, 4294901760
        %v2291 = vsub.f32 %v2170, %v2290
        %v2292 = vand.u32 %v2291, 4294901760
        %v2293 = vsub.f32 %v2291, %v2292
        %v2294 = vand.u32 %v2293, 4294901760
        %2295 = vmatmul.f32.gmra.mxu0 %v2294
        %v2296 = vpop.f32.mrf.mxu0
        %v2297 = vadd.f32 %v2134, %v2296
        %v2298 = vand.u32 %v2173, 4294901760
        %v2299 = vsub.f32 %v2173, %v2298
        %v2300 = vand.u32 %v2299, 4294901760
        %v2301 = vsub.f32 %v2299, %v2300
        %v2302 = vand.u32 %v2301, 4294901760
        %2303 = vmatmul.f32.gmra.mxu0 %v2302
        %v2304 = vpop.f32.mrf.mxu0
        %v2305 = vadd.f32 %v2134, %v2304
        %v2306 = vand.u32 %v2176, 4294901760
        %v2307 = vsub.f32 %v2176, %v2306
        %v2308 = vand.u32 %v2307, 4294901760
        %v2309 = vsub.f32 %v2307, %v2308
        %v2310 = vand.u32 %v2309, 4294901760
        %2311 = vmatmul.f32.gmra.mxu0 %v2310
        %v2312 = vpop.f32.mrf.mxu0
        %v2313 = vadd.f32 %v2134, %v2312
        %v2314 = vand.u32 %v2179, 4294901760
        %v2315 = vsub.f32 %v2179, %v2314
        %v2316 = vand.u32 %v2315, 4294901760
        %v2317 = vsub.f32 %v2315, %v2316
        %v2318 = vand.u32 %v2317, 4294901760
        %2319 = vmatmul.f32.gmra.mxu0 %v2318
        %v2320 = vpop.f32.mrf.mxu0
        %v2321 = vadd.f32 %v2134, %v2320
        %v2322 = vand.u32 %v2182, 4294901760
        %v2323 = vsub.f32 %v2182, %v2322
        %v2324 = vand.u32 %v2323, 4294901760
        %v2325 = vsub.f32 %v2323, %v2324
        %v2326 = vand.u32 %v2325, 4294901760
        %2327 = vmatmul.f32.gmra.mxu0 %v2326
        %v2328 = vpop.f32.mrf.mxu0
        %v2329 = vadd.f32 %v2134, %v2328
        %2330 = vdwg.mxu0
        %2331 = vmatpush.msra.mxu0 0.0
        %2332 = vmatpush.msra.mxu0 0.0
        %2333 = vmatpush.msra.mxu0 0.0
        %2334 = vmatpush.msra.mxu0 0.0
        %2335 = vmatpush.msra.mxu0 0.0
        %2336 = vmatpush.msra.mxu0 0.0
        %2337 = vmatpush.msra.mxu0 0.0
        %2338 = vmatpush.msra.mxu0 0.0
        %2339 = vmatpush.msra.mxu0 0.0
        %2340 = vmatpush.msra.mxu0 0.0
        %2341 = vmatpush.msra.mxu0 0.0
        %2342 = vmatpush.msra.mxu0 0.0
        %2343 = vmatpush.msra.mxu0 0.0
        %2344 = vmatpush.msra.mxu0 0.0
        %v2345 = vand.u32 %v2131, 4294901760
        %v2346 = vsub.f32 %v2131, %v2345
        %v2347 = vand.u32 %v2346, 4294901760
        %v2348 = vsub.f32 %v2346, %v2347
        %v2349 = vand.u32 %v2348, 4294901760
        %2350 = vmatpush.msra.mxu0 %v2349
        %v2351 = vand.u32 %v2130, 4294901760
        %v2352 = vsub.f32 %v2130, %v2351
        %v2353 = vand.u32 %v2352, 4294901760
        %v2354 = vsub.f32 %v2352, %v2353
        %v2355 = vand.u32 %v2354, 4294901760
        %2356 = vmatpush.msra.mxu0 %v2355
        %v2357 = vand.u32 %v2137, 4294901760
        %2358 = vmatmul.f32.gmra.mxu0 %v2357
        %v2359 = vpop.f32.mrf.mxu0
        %v2360 = vadd.f32 %v2209, %v2359
        %v2361 = vand.u32 %v2140, 4294901760
        %2362 = vmatmul.f32.gmra.mxu0 %v2361
        %v2363 = vpop.f32.mrf.mxu0
        %v2364 = vadd.f32 %v2217, %v2363
        %v2365 = vand.u32 %v2143, 4294901760
        %2366 = vmatmul.f32.gmra.mxu0 %v2365
        %v2367 = vpop.f32.mrf.mxu0
        %v2368 = vadd.f32 %v2225, %v2367
        %v2369 = vand.u32 %v2146, 4294901760
        %2370 = vmatmul.f32.gmra.mxu0 %v2369
        %v2371 = vpop.f32.mrf.mxu0
        %v2372 = vadd.f32 %v2233, %v2371
        %v2373 = vand.u32 %v2149, 4294901760
        %2374 = vmatmul.f32.gmra.mxu0 %v2373
        %v2375 = vpop.f32.mrf.mxu0
        %v2376 = vadd.f32 %v2241, %v2375
        %v2377 = vand.u32 %v2152, 4294901760
        %2378 = vmatmul.f32.gmra.mxu0 %v2377
        %v2379 = vpop.f32.mrf.mxu0
        %v2380 = vadd.f32 %v2249, %v2379
        %v2381 = vand.u32 %v2155, 4294901760
        %2382 = vmatmul.f32.gmra.mxu0 %v2381
        %v2383 = vpop.f32.mrf.mxu0
        %v2384 = vadd.f32 %v2257, %v2383
        %v2385 = vand.u32 %v2158, 4294901760
        %2386 = vmatmul.f32.gmra.mxu0 %v2385
        %v2387 = vpop.f32.mrf.mxu0
        %v2388 = vadd.f32 %v2265, %v2387
        %v2389 = vand.u32 %v2161, 4294901760
        %2390 = vmatmul.f32.gmra.mxu0 %v2389
        %v2391 = vpop.f32.mrf.mxu0
        %v2392 = vadd.f32 %v2273, %v2391
        %v2393 = vand.u32 %v2164, 4294901760
        %2394 = vmatmul.f32.gmra.mxu0 %v2393
        %v2395 = vpop.f32.mrf.mxu0
        %v2396 = vadd.f32 %v2281, %v2395
        %v2397 = vand.u32 %v2167, 4294901760
        %2398 = vmatmul.f32.gmra.mxu0 %v2397
        %v2399 = vpop.f32.mrf.mxu0
        %v2400 = vadd.f32 %v2289, %v2399
        %v2401 = vand.u32 %v2170, 4294901760
        %2402 = vmatmul.f32.gmra.mxu0 %v2401
        %v2403 = vpop.f32.mrf.mxu0
        %v2404 = vadd.f32 %v2297, %v2403
        %v2405 = vand.u32 %v2173, 4294901760
        %2406 = vmatmul.f32.gmra.mxu0 %v2405
        %v2407 = vpop.f32.mrf.mxu0
        %v2408 = vadd.f32 %v2305, %v2407
        %v2409 = vand.u32 %v2176, 4294901760
        %2410 = vmatmul.f32.gmra.mxu0 %v2409
        %v2411 = vpop.f32.mrf.mxu0
        %v2412 = vadd.f32 %v2313, %v2411
        %v2413 = vand.u32 %v2179, 4294901760
        %2414 = vmatmul.f32.gmra.mxu0 %v2413
        %v2415 = vpop.f32.mrf.mxu0
        %v2416 = vadd.f32 %v2321, %v2415
        %v2417 = vand.u32 %v2182, 4294901760
        %2418 = vmatmul.f32.gmra.mxu0 %v2417
        %v2419 = vpop.f32.mrf.mxu0
        %v2420 = vadd.f32 %v2329, %v2419
        %2421 = vdwg.mxu0
        %2422 = vmatpush.msra.mxu0 0.0
        %2423 = vmatpush.msra.mxu0 0.0
        %2424 = vmatpush.msra.mxu0 0.0
        %2425 = vmatpush.msra.mxu0 0.0
        %2426 = vmatpush.msra.mxu0 0.0
        %2427 = vmatpush.msra.mxu0 0.0
        %2428 = vmatpush.msra.mxu0 0.0
        %2429 = vmatpush.msra.mxu0 0.0
        %2430 = vmatpush.msra.mxu0 0.0
        %2431 = vmatpush.msra.mxu0 0.0
        %2432 = vmatpush.msra.mxu0 0.0
        %2433 = vmatpush.msra.mxu0 0.0
        %2434 = vmatpush.msra.mxu0 0.0
        %2435 = vmatpush.msra.mxu0 0.0
        %v2436 = vand.u32 %v2131, 4294901760
        %v2437 = vsub.f32 %v2131, %v2436
        %2438 = vmatpush.msra.mxu0 %v2437
        %v2439 = vand.u32 %v2130, 4294901760
        %v2440 = vsub.f32 %v2130, %v2439
        %2441 = vmatpush.msra.mxu0 %v2440
        %v2442 = vand.u32 %v2137, 4294901760
        %v2443 = vsub.f32 %v2137, %v2442
        %2444 = vmatmul.f32.gmra.mxu0 %v2443
        %v2445 = vpop.f32.mrf.mxu0
        %v2446 = vadd.f32 %v2360, %v2445
        %v2447 = vand.u32 %v2140, 4294901760
        %v2448 = vsub.f32 %v2140, %v2447
        %2449 = vmatmul.f32.gmra.mxu0 %v2448
        %v2450 = vpop.f32.mrf.mxu0
        %v2451 = vadd.f32 %v2364, %v2450
        %v2452 = vand.u32 %v2143, 4294901760
        %v2453 = vsub.f32 %v2143, %v2452
        %2454 = vmatmul.f32.gmra.mxu0 %v2453
        %v2455 = vpop.f32.mrf.mxu0
        %v2456 = vadd.f32 %v2368, %v2455
        %v2457 = vand.u32 %v2146, 4294901760
        %v2458 = vsub.f32 %v2146, %v2457
        %2459 = vmatmul.f32.gmra.mxu0 %v2458
        %v2460 = vpop.f32.mrf.mxu0
        %v2461 = vadd.f32 %v2372, %v2460
        %v2462 = vand.u32 %v2149, 4294901760
        %v2463 = vsub.f32 %v2149, %v2462
        %2464 = vmatmul.f32.gmra.mxu0 %v2463
        %v2465 = vpop.f32.mrf.mxu0
        %v2466 = vadd.f32 %v2376, %v2465
        %v2467 = vand.u32 %v2152, 4294901760
        %v2468 = vsub.f32 %v2152, %v2467
        %2469 = vmatmul.f32.gmra.mxu0 %v2468
        %v2470 = vpop.f32.mrf.mxu0
        %v2471 = vadd.f32 %v2380, %v2470
        %v2472 = vand.u32 %v2155, 4294901760
        %v2473 = vsub.f32 %v2155, %v2472
        %2474 = vmatmul.f32.gmra.mxu0 %v2473
        %v2475 = vpop.f32.mrf.mxu0
        %v2476 = vadd.f32 %v2384, %v2475
        %v2477 = vand.u32 %v2158, 4294901760
        %v2478 = vsub.f32 %v2158, %v2477
        %2479 = vmatmul.f32.gmra.mxu0 %v2478
        %v2480 = vpop.f32.mrf.mxu0
        %v2481 = vadd.f32 %v2388, %v2480
        %v2482 = vand.u32 %v2161, 4294901760
        %v2483 = vsub.f32 %v2161, %v2482
        %2484 = vmatmul.f32.gmra.mxu0 %v2483
        %v2485 = vpop.f32.mrf.mxu0
        %v2486 = vadd.f32 %v2392, %v2485
        %v2487 = vand.u32 %v2164, 4294901760
        %v2488 = vsub.f32 %v2164, %v2487
        %2489 = vmatmul.f32.gmra.mxu0 %v2488
        %v2490 = vpop.f32.mrf.mxu0
        %v2491 = vadd.f32 %v2396, %v2490
        %v2492 = vand.u32 %v2167, 4294901760
        %v2493 = vsub.f32 %v2167, %v2492
        %2494 = vmatmul.f32.gmra.mxu0 %v2493
        %v2495 = vpop.f32.mrf.mxu0
        %v2496 = vadd.f32 %v2400, %v2495
        %v2497 = vand.u32 %v2170, 4294901760
        %v2498 = vsub.f32 %v2170, %v2497
        %2499 = vmatmul.f32.gmra.mxu0 %v2498
        %v2500 = vpop.f32.mrf.mxu0
        %v2501 = vadd.f32 %v2404, %v2500
        %v2502 = vand.u32 %v2173, 4294901760
        %v2503 = vsub.f32 %v2173, %v2502
        %2504 = vmatmul.f32.gmra.mxu0 %v2503
        %v2505 = vpop.f32.mrf.mxu0
        %v2506 = vadd.f32 %v2408, %v2505
        %v2507 = vand.u32 %v2176, 4294901760
        %v2508 = vsub.f32 %v2176, %v2507
        %2509 = vmatmul.f32.gmra.mxu0 %v2508
        %v2510 = vpop.f32.mrf.mxu0
        %v2511 = vadd.f32 %v2412, %v2510
        %v2512 = vand.u32 %v2179, 4294901760
        %v2513 = vsub.f32 %v2179, %v2512
        %2514 = vmatmul.f32.gmra.mxu0 %v2513
        %v2515 = vpop.f32.mrf.mxu0
        %v2516 = vadd.f32 %v2416, %v2515
        %v2517 = vand.u32 %v2182, 4294901760
        %v2518 = vsub.f32 %v2182, %v2517
        %2519 = vmatmul.f32.gmra.mxu0 %v2518
        %v2520 = vpop.f32.mrf.mxu0
        %v2521 = vadd.f32 %v2420, %v2520
        %2522 = vdwg.mxu0
        %2523 = vmatpush.msra.mxu0 0.0
        %2524 = vmatpush.msra.mxu0 0.0
        %2525 = vmatpush.msra.mxu0 0.0
        %2526 = vmatpush.msra.mxu0 0.0
        %2527 = vmatpush.msra.mxu0 0.0
        %2528 = vmatpush.msra.mxu0 0.0
        %2529 = vmatpush.msra.mxu0 0.0
        %2530 = vmatpush.msra.mxu0 0.0
        %2531 = vmatpush.msra.mxu0 0.0
        %2532 = vmatpush.msra.mxu0 0.0
        %2533 = vmatpush.msra.mxu0 0.0
        %2534 = vmatpush.msra.mxu0 0.0
        %2535 = vmatpush.msra.mxu0 0.0
        %2536 = vmatpush.msra.mxu0 0.0
        %v2537 = vand.u32 %v2131, 4294901760
        %2538 = vmatpush.msra.mxu0 %v2537
        %v2539 = vand.u32 %v2130, 4294901760
        %2540 = vmatpush.msra.mxu0 %v2539
        %v2541 = vand.u32 %v2137, 4294901760
        %v2542 = vsub.f32 %v2137, %v2541
        %v2543 = vand.u32 %v2542, 4294901760
        %2544 = vmatmul.f32.gmra.mxu0 %v2543
        %v2545 = vpop.f32.mrf.mxu0
        %v2546 = vadd.f32 %v2446, %v2545
        %v2547 = vand.u32 %v2140, 4294901760
        %v2548 = vsub.f32 %v2140, %v2547
        %v2549 = vand.u32 %v2548, 4294901760
        %2550 = vmatmul.f32.gmra.mxu0 %v2549
        %v2551 = vpop.f32.mrf.mxu0
        %v2552 = vadd.f32 %v2451, %v2551
        %v2553 = vand.u32 %v2143, 4294901760
        %v2554 = vsub.f32 %v2143, %v2553
        %v2555 = vand.u32 %v2554, 4294901760
        %2556 = vmatmul.f32.gmra.mxu0 %v2555
        %v2557 = vpop.f32.mrf.mxu0
        %v2558 = vadd.f32 %v2456, %v2557
        %v2559 = vand.u32 %v2146, 4294901760
        %v2560 = vsub.f32 %v2146, %v2559
        %v2561 = vand.u32 %v2560, 4294901760
        %2562 = vmatmul.f32.gmra.mxu0 %v2561
        %v2563 = vpop.f32.mrf.mxu0
        %v2564 = vadd.f32 %v2461, %v2563
        %v2565 = vand.u32 %v2149, 4294901760
        %v2566 = vsub.f32 %v2149, %v2565
        %v2567 = vand.u32 %v2566, 4294901760
        %2568 = vmatmul.f32.gmra.mxu0 %v2567
        %v2569 = vpop.f32.mrf.mxu0
        %v2570 = vadd.f32 %v2466, %v2569
        %v2571 = vand.u32 %v2152, 4294901760
        %v2572 = vsub.f32 %v2152, %v2571
        %v2573 = vand.u32 %v2572, 4294901760
        %2574 = vmatmul.f32.gmra.mxu0 %v2573
        %v2575 = vpop.f32.mrf.mxu0
        %v2576 = vadd.f32 %v2471, %v2575
        %v2577 = vand.u32 %v2155, 4294901760
        %v2578 = vsub.f32 %v2155, %v2577
        %v2579 = vand.u32 %v2578, 4294901760
        %2580 = vmatmul.f32.gmra.mxu0 %v2579
        %v2581 = vpop.f32.mrf.mxu0
        %v2582 = vadd.f32 %v2476, %v2581
        %v2583 = vand.u32 %v2158, 4294901760
        %v2584 = vsub.f32 %v2158, %v2583
        %v2585 = vand.u32 %v2584, 4294901760
        %2586 = vmatmul.f32.gmra.mxu0 %v2585
        %v2587 = vpop.f32.mrf.mxu0
        %v2588 = vadd.f32 %v2481, %v2587
        %v2589 = vand.u32 %v2161, 4294901760
        %v2590 = vsub.f32 %v2161, %v2589
        %v2591 = vand.u32 %v2590, 4294901760
        %2592 = vmatmul.f32.gmra.mxu0 %v2591
        %v2593 = vpop.f32.mrf.mxu0
        %v2594 = vadd.f32 %v2486, %v2593
        %v2595 = vand.u32 %v2164, 4294901760
        %v2596 = vsub.f32 %v2164, %v2595
        %v2597 = vand.u32 %v2596, 4294901760
        %2598 = vmatmul.f32.gmra.mxu0 %v2597
        %v2599 = vpop.f32.mrf.mxu0
        %v2600 = vadd.f32 %v2491, %v2599
        %v2601 = vand.u32 %v2167, 4294901760
        %v2602 = vsub.f32 %v2167, %v2601
        %v2603 = vand.u32 %v2602, 4294901760
        %2604 = vmatmul.f32.gmra.mxu0 %v2603
        %v2605 = vpop.f32.mrf.mxu0
        %v2606 = vadd.f32 %v2496, %v2605
        %v2607 = vand.u32 %v2170, 4294901760
        %v2608 = vsub.f32 %v2170, %v2607
        %v2609 = vand.u32 %v2608, 4294901760
        %2610 = vmatmul.f32.gmra.mxu0 %v2609
        %v2611 = vpop.f32.mrf.mxu0
        %v2612 = vadd.f32 %v2501, %v2611
        %v2613 = vand.u32 %v2173, 4294901760
        %v2614 = vsub.f32 %v2173, %v2613
        %v2615 = vand.u32 %v2614, 4294901760
        %2616 = vmatmul.f32.gmra.mxu0 %v2615
        %v2617 = vpop.f32.mrf.mxu0
        %v2618 = vadd.f32 %v2506, %v2617
        %v2619 = vand.u32 %v2176, 4294901760
        %v2620 = vsub.f32 %v2176, %v2619
        %v2621 = vand.u32 %v2620, 4294901760
        %2622 = vmatmul.f32.gmra.mxu0 %v2621
        %v2623 = vpop.f32.mrf.mxu0
        %v2624 = vadd.f32 %v2511, %v2623
        %v2625 = vand.u32 %v2179, 4294901760
        %v2626 = vsub.f32 %v2179, %v2625
        %v2627 = vand.u32 %v2626, 4294901760
        %2628 = vmatmul.f32.gmra.mxu0 %v2627
        %v2629 = vpop.f32.mrf.mxu0
        %v2630 = vadd.f32 %v2516, %v2629
        %v2631 = vand.u32 %v2182, 4294901760
        %v2632 = vsub.f32 %v2182, %v2631
        %v2633 = vand.u32 %v2632, 4294901760
        %2634 = vmatmul.f32.gmra.mxu0 %v2633
        %v2635 = vpop.f32.mrf.mxu0
        %v2636 = vadd.f32 %v2521, %v2635
        %2637 = vdwg.mxu0
        %2638 = vmatpush.msra.mxu0 0.0
        %2639 = vmatpush.msra.mxu0 0.0
        %2640 = vmatpush.msra.mxu0 0.0
        %2641 = vmatpush.msra.mxu0 0.0
        %2642 = vmatpush.msra.mxu0 0.0
        %2643 = vmatpush.msra.mxu0 0.0
        %2644 = vmatpush.msra.mxu0 0.0
        %2645 = vmatpush.msra.mxu0 0.0
        %2646 = vmatpush.msra.mxu0 0.0
        %2647 = vmatpush.msra.mxu0 0.0
        %2648 = vmatpush.msra.mxu0 0.0
        %2649 = vmatpush.msra.mxu0 0.0
        %2650 = vmatpush.msra.mxu0 0.0
        %2651 = vmatpush.msra.mxu0 0.0
        %v2652 = vand.u32 %v2131, 4294901760
        %v2653 = vsub.f32 %v2131, %v2652
        %v2654 = vand.u32 %v2653, 4294901760
        %2655 = vmatpush.msra.mxu0 %v2654
        %v2656 = vand.u32 %v2130, 4294901760
        %v2657 = vsub.f32 %v2130, %v2656
        %v2658 = vand.u32 %v2657, 4294901760
        %2659 = vmatpush.msra.mxu0 %v2658
        %v2660 = vand.u32 %v2137, 4294901760
        %2661 = vmatmul.f32.gmra.mxu0 %v2660
        %v2662 = vpop.f32.mrf.mxu0
        %v2663 = vadd.f32 %v2546, %v2662
        %v2664 = vand.u32 %v2140, 4294901760
        %2665 = vmatmul.f32.gmra.mxu0 %v2664
        %v2666 = vpop.f32.mrf.mxu0
        %v2667 = vadd.f32 %v2552, %v2666
        %v2668 = vand.u32 %v2143, 4294901760
        %2669 = vmatmul.f32.gmra.mxu0 %v2668
        %v2670 = vpop.f32.mrf.mxu0
        %v2671 = vadd.f32 %v2558, %v2670
        %v2672 = vand.u32 %v2146, 4294901760
        %2673 = vmatmul.f32.gmra.mxu0 %v2672
        %v2674 = vpop.f32.mrf.mxu0
        %v2675 = vadd.f32 %v2564, %v2674
        %v2676 = vand.u32 %v2149, 4294901760
        %2677 = vmatmul.f32.gmra.mxu0 %v2676
        %v2678 = vpop.f32.mrf.mxu0
        %v2679 = vadd.f32 %v2570, %v2678
        %v2680 = vand.u32 %v2152, 4294901760
        %2681 = vmatmul.f32.gmra.mxu0 %v2680
        %v2682 = vpop.f32.mrf.mxu0
        %v2683 = vadd.f32 %v2576, %v2682
        %v2684 = vand.u32 %v2155, 4294901760
        %2685 = vmatmul.f32.gmra.mxu0 %v2684
        %v2686 = vpop.f32.mrf.mxu0
        %v2687 = vadd.f32 %v2582, %v2686
        %v2688 = vand.u32 %v2158, 4294901760
        %2689 = vmatmul.f32.gmra.mxu0 %v2688
        %v2690 = vpop.f32.mrf.mxu0
        %v2691 = vadd.f32 %v2588, %v2690
        %v2692 = vand.u32 %v2161, 4294901760
        %2693 = vmatmul.f32.gmra.mxu0 %v2692
        %v2694 = vpop.f32.mrf.mxu0
        %v2695 = vadd.f32 %v2594, %v2694
        %v2696 = vand.u32 %v2164, 4294901760
        %2697 = vmatmul.f32.gmra.mxu0 %v2696
        %v2698 = vpop.f32.mrf.mxu0
        %v2699 = vadd.f32 %v2600, %v2698
        %v2700 = vand.u32 %v2167, 4294901760
        %2701 = vmatmul.f32.gmra.mxu0 %v2700
        %v2702 = vpop.f32.mrf.mxu0
        %v2703 = vadd.f32 %v2606, %v2702
        %v2704 = vand.u32 %v2170, 4294901760
        %2705 = vmatmul.f32.gmra.mxu0 %v2704
        %v2706 = vpop.f32.mrf.mxu0
        %v2707 = vadd.f32 %v2612, %v2706
        %v2708 = vand.u32 %v2173, 4294901760
        %2709 = vmatmul.f32.gmra.mxu0 %v2708
        %v2710 = vpop.f32.mrf.mxu0
        %v2711 = vadd.f32 %v2618, %v2710
        %v2712 = vand.u32 %v2176, 4294901760
        %2713 = vmatmul.f32.gmra.mxu0 %v2712
        %v2714 = vpop.f32.mrf.mxu0
        %v2715 = vadd.f32 %v2624, %v2714
        %v2716 = vand.u32 %v2179, 4294901760
        %2717 = vmatmul.f32.gmra.mxu0 %v2716
        %v2718 = vpop.f32.mrf.mxu0
        %v2719 = vadd.f32 %v2630, %v2718
        %v2720 = vand.u32 %v2182, 4294901760
        %2721 = vmatmul.f32.gmra.mxu0 %v2720
        %v2722 = vpop.f32.mrf.mxu0
        %v2723 = vadd.f32 %v2636, %v2722
        %2724 = vdwg.mxu0
        %2725 = vmatpush.msra.mxu0 0.0
        %2726 = vmatpush.msra.mxu0 0.0
        %2727 = vmatpush.msra.mxu0 0.0
        %2728 = vmatpush.msra.mxu0 0.0
        %2729 = vmatpush.msra.mxu0 0.0
        %2730 = vmatpush.msra.mxu0 0.0
        %2731 = vmatpush.msra.mxu0 0.0
        %2732 = vmatpush.msra.mxu0 0.0
        %2733 = vmatpush.msra.mxu0 0.0
        %2734 = vmatpush.msra.mxu0 0.0
        %2735 = vmatpush.msra.mxu0 0.0
        %2736 = vmatpush.msra.mxu0 0.0
        %2737 = vmatpush.msra.mxu0 0.0
        %2738 = vmatpush.msra.mxu0 0.0
        %v2739 = vand.u32 %v2131, 4294901760
        %2740 = vmatpush.msra.mxu0 %v2739
        %v2741 = vand.u32 %v2130, 4294901760
        %2742 = vmatpush.msra.mxu0 %v2741
        %v2743 = vand.u32 %v2137, 4294901760
        %2744 = vmatmul.f32.gmra.mxu0 %v2743
        %v2745 = vpop.f32.mrf.mxu0
        %v2746 = vadd.f32 %v2663, %v2745
        %v2747 = vand.u32 %v2140, 4294901760
        %2748 = vmatmul.f32.gmra.mxu0 %v2747
        %v2749 = vpop.f32.mrf.mxu0
        %v2750 = vadd.f32 %v2667, %v2749
        %v2751 = vand.u32 %v2143, 4294901760
        %2752 = vmatmul.f32.gmra.mxu0 %v2751
        %v2753 = vpop.f32.mrf.mxu0
        %v2754 = vadd.f32 %v2671, %v2753
        %v2755 = vand.u32 %v2146, 4294901760
        %2756 = vmatmul.f32.gmra.mxu0 %v2755
        %v2757 = vpop.f32.mrf.mxu0
        %v2758 = vadd.f32 %v2675, %v2757
        %v2759 = vand.u32 %v2149, 4294901760
        %2760 = vmatmul.f32.gmra.mxu0 %v2759
        %v2761 = vpop.f32.mrf.mxu0
        %v2762 = vadd.f32 %v2679, %v2761
        %v2763 = vand.u32 %v2152, 4294901760
        %2764 = vmatmul.f32.gmra.mxu0 %v2763
        %v2765 = vpop.f32.mrf.mxu0
        %v2766 = vadd.f32 %v2683, %v2765
        %v2767 = vand.u32 %v2155, 4294901760
        %2768 = vmatmul.f32.gmra.mxu0 %v2767
        %v2769 = vpop.f32.mrf.mxu0
        %v2770 = vadd.f32 %v2687, %v2769
        %v2771 = vand.u32 %v2158, 4294901760
        %2772 = vmatmul.f32.gmra.mxu0 %v2771
        %v2773 = vpop.f32.mrf.mxu0
        %v2774 = vadd.f32 %v2691, %v2773
        %v2775 = vand.u32 %v2161, 4294901760
        %2776 = vmatmul.f32.gmra.mxu0 %v2775
        %v2777 = vpop.f32.mrf.mxu0
        %v2778 = vadd.f32 %v2695, %v2777
        %v2779 = vand.u32 %v2164, 4294901760
        %2780 = vmatmul.f32.gmra.mxu0 %v2779
        %v2781 = vpop.f32.mrf.mxu0
        %v2782 = vadd.f32 %v2699, %v2781
        %v2783 = vand.u32 %v2167, 4294901760
        %2784 = vmatmul.f32.gmra.mxu0 %v2783
        %v2785 = vpop.f32.mrf.mxu0
        %v2786 = vadd.f32 %v2703, %v2785
        %v2787 = vand.u32 %v2170, 4294901760
        %2788 = vmatmul.f32.gmra.mxu0 %v2787
        %v2789 = vpop.f32.mrf.mxu0
        %v2790 = vadd.f32 %v2707, %v2789
        %v2791 = vand.u32 %v2173, 4294901760
        %2792 = vmatmul.f32.gmra.mxu0 %v2791
        %v2793 = vpop.f32.mrf.mxu0
        %v2794 = vadd.f32 %v2711, %v2793
        %v2795 = vand.u32 %v2176, 4294901760
        %2796 = vmatmul.f32.gmra.mxu0 %v2795
        %v2797 = vpop.f32.mrf.mxu0
        %v2798 = vadd.f32 %v2715, %v2797
        %v2799 = vand.u32 %v2179, 4294901760
        %2800 = vmatmul.f32.gmra.mxu0 %v2799
        %v2801 = vpop.f32.mrf.mxu0
        %v2802 = vadd.f32 %v2719, %v2801
        %v2803 = vand.u32 %v2182, 4294901760
        %2804 = vmatmul.f32.gmra.mxu0 %v2803
        %v2805 = vpop.f32.mrf.mxu0
        %v2806 = vadd.f32 %v2723, %v2805
        %2807 = vdwg.mxu0
        %v2808 = vmul.f32 %v2746, %v1869
        %v2809 = vmul.f32 %v2750, %v1874
        %v2810 = vmul.f32 %v2754, %v1879
        %v2811 = vmul.f32 %v2758, %v1884
        %v2812 = vmul.f32 %v2762, %v1889
        %v2813 = vmul.f32 %v2766, %v1894
        %v2814 = vmul.f32 %v2770, %v1899
        %v2815 = vmul.f32 %v2774, %v1904
        %v2816 = vmul.f32 %v2778, %v1909
        %v2817 = vmul.f32 %v2782, %v1914
        %v2818 = vmul.f32 %v2786, %v1919
        %v2819 = vmul.f32 %v2790, %v1924
        %v2820 = vmul.f32 %v2794, %v1929
        %v2821 = vmul.f32 %v2798, %v1934
        %v2822 = vmul.f32 %v2802, %v1939
        %v2823 = vmul.f32 %v2806, %v1944
        %2824 = vst [vmem:[%s706] sm:$0xff] %v2808
        %2825 = vst [vmem:[%s706 + $0x8] sm:$0xff] %v2809
        %2826 = vst [vmem:[%s706 + $0x10] sm:$0xff] %v2810
        %2827 = vst [vmem:[%s706 + $0x18] sm:$0xff] %v2811
        %2828 = vst [vmem:[%s706 + $0x20] sm:$0xff] %v2812
        %2829 = vst [vmem:[%s706 + $0x28] sm:$0xff] %v2813
        %2830 = vst [vmem:[%s706 + $0x30] sm:$0xff] %v2814
        %2831 = vst [vmem:[%s706 + $0x38] sm:$0xff] %v2815
        %2832 = vst [vmem:[%s706 + $0x40] sm:$0xff] %v2816
        %2833 = vst [vmem:[%s706 + $0x48] sm:$0xff] %v2817
        %2834 = vst [vmem:[%s706 + $0x50] sm:$0xff] %v2818
        %2835 = vst [vmem:[%s706 + $0x58] sm:$0xff] %v2819
        %2836 = vst [vmem:[%s706 + $0x60] sm:$0xff] %v2820
        %2837 = vst [vmem:[%s706 + $0x68] sm:$0xff] %v2821
        %2838 = vst [vmem:[%s706 + $0x70] sm:$0xff] %v2822
        %2839 = vst [vmem:[%s706 + $0x78] sm:$0xff] %v2823
        %vm2840 = vcmask 31744
        %v2841 = vsel %vm2840, %v2114, 0.0
        %2842 = vadd.xlane.f32.xlu0 %v2841
        %v2843 = vpop.xlane.xlu0 %2842
        %v2844 = vsel %vm2840, %v2115, 0.0
        %2845 = vadd.xlane.f32.xlu0 %v2844
        %v2846 = vpop.xlane.xlu0 %2845
        %v2847 = vsel %vm2840, %v2116, 0.0
        %2848 = vadd.xlane.f32.xlu0 %v2847
        %v2849 = vpop.xlane.xlu0 %2848
        %v2850 = vsel %vm2840, %v2117, 0.0
        %2851 = vadd.xlane.f32.xlu0 %v2850
        %v2852 = vpop.xlane.xlu0 %2851
        %v2853 = vsel %vm2840, %v2118, 0.0
        %2854 = vadd.xlane.f32.xlu0 %v2853
        %v2855 = vpop.xlane.xlu0 %2854
        %v2856 = vsel %vm2840, %v2119, 0.0
        %2857 = vadd.xlane.f32.xlu0 %v2856
        %v2858 = vpop.xlane.xlu0 %2857
        %v2859 = vsel %vm2840, %v2120, 0.0
        %2860 = vadd.xlane.f32.xlu0 %v2859
        %v2861 = vpop.xlane.xlu0 %2860
        %v2862 = vsel %vm2840, %v2121, 0.0
        %2863 = vadd.xlane.f32.xlu0 %v2862
        %v2864 = vpop.xlane.xlu0 %2863
        %v2865 = vsel %vm2840, %v2122, 0.0
        %2866 = vadd.xlane.f32.xlu0 %v2865
        %v2867 = vpop.xlane.xlu0 %2866
        %v2868 = vsel %vm2840, %v2123, 0.0
        %2869 = vadd.xlane.f32.xlu0 %v2868
        %v2870 = vpop.xlane.xlu0 %2869
        %v2871 = vsel %vm2840, %v2124, 0.0
        %2872 = vadd.xlane.f32.xlu0 %v2871
        %v2873 = vpop.xlane.xlu0 %2872
        %v2874 = vsel %vm2840, %v2125, 0.0
        %2875 = vadd.xlane.f32.xlu0 %v2874
        %v2876 = vpop.xlane.xlu0 %2875
        %v2877 = vsel %vm2840, %v2126, 0.0
        %2878 = vadd.xlane.f32.xlu0 %v2877
        %v2879 = vpop.xlane.xlu0 %2878
        %v2880 = vsel %vm2840, %v2127, 0.0
        %2881 = vadd.xlane.f32.xlu0 %v2880
        %v2882 = vpop.xlane.xlu0 %2881
        %v2883 = vsel %vm2840, %v2128, 0.0
        %2884 = vadd.xlane.f32.xlu0 %v2883
        %v2885 = vpop.xlane.xlu0 %2884
        %v2886 = vsel %vm2840, %v2129, 0.0
        %2887 = vadd.xlane.f32.xlu0 %v2886
        %v2888 = vpop.xlane.xlu0 %2887
        %v2905 = vlaneseq
        %v2906 = vand.u32 %v2905, 127
        %v2907 = vperm.slane %v2843, %v2906
        %v2908 = vadd.s32 %v2906, 4294967288
        %v2909 = vperm.slane %v2846, %v2908
        %vm2910 = vcmask 130112
        %v2911 = vsel %vm2910, %v2909, %v2907
        %v2912 = vperm.slane %v2849, %v2906
        %v2913 = vperm.slane %v2852, %v2908
        %v2914 = vsel %vm2910, %v2913, %v2912
        %v2915 = vperm.slane %v2855, %v2906
        %v2916 = vperm.slane %v2858, %v2908
        %v2917 = vsel %vm2910, %v2916, %v2915
        %v2918 = vperm.slane %v2861, %v2906
        %v2919 = vperm.slane %v2864, %v2908
        %v2920 = vsel %vm2910, %v2919, %v2918
        %v2921 = vperm.slane %v2867, %v2906
        %v2922 = vperm.slane %v2870, %v2908
        %v2923 = vsel %vm2910, %v2922, %v2921
        %v2924 = vperm.slane %v2873, %v2906
        %v2925 = vperm.slane %v2876, %v2908
        %v2926 = vsel %vm2910, %v2925, %v2924
        %v2927 = vperm.slane %v2879, %v2906
        %v2928 = vperm.slane %v2882, %v2908
        %v2929 = vsel %vm2910, %v2928, %v2927
        %v2930 = vperm.slane %v2885, %v2906
        %v2931 = vperm.slane %v2888, %v2908
        %v2932 = vsel %vm2910, %v2931, %v2930
        %vm2933 = vcmask 1041409
        %v2934 = vsel %vm2933, %v2914, %v2911
        %vm2935 = vcmask 1042434
        %v2936 = vsel %vm2935, %v2917, %v2934
        %vm2937 = vcmask 1043459
        %v2938 = vsel %vm2937, %v2920, %v2936
        %vm2939 = vcmask 1044484
        %v2940 = vsel %vm2939, %v2923, %v2938
        %vm2941 = vcmask 1045509
        %v2942 = vsel %vm2941, %v2926, %v2940
        %vm2943 = vcmask 1046534
        %v2944 = vsel %vm2943, %v2929, %v2942
        %vm2945 = vcmask 1047559
        %v2946 = vsel %vm2945, %v2932, %v2944
        %v2948 = vsel %vm779, %v2946, -inf
        %2949 = vmax.xlane.f32.xlu0 %v2948
        %v2950 = vpop.xlane.xlu0 %2949
        %v2952 = vperm.slane %v2950, 0
        %v2953 = vperm.slane %v2950, 1
        %v2954 = vperm.slane %v2950, 2
        %v2955 = vperm.slane %v2950, 3
        %v2956 = vperm.slane %v2950, 4
        %v2957 = vperm.slane %v2950, 5
        %v2958 = vperm.slane %v2950, 6
        %v2959 = vperm.slane %v2950, 7
        %v2968 = vsub.f32 %v2843, %v2952
        %v2969 = vsub.f32 %v2846, %v2952
        %v2970 = vsub.f32 %v2849, %v2953
        %v2971 = vsub.f32 %v2852, %v2953
        %v2972 = vsub.f32 %v2855, %v2954
        %v2973 = vsub.f32 %v2858, %v2954
        %v2974 = vsub.f32 %v2861, %v2955
        %v2975 = vsub.f32 %v2864, %v2955
        %v2976 = vsub.f32 %v2867, %v2956
        %v2977 = vsub.f32 %v2870, %v2956
        %v2978 = vsub.f32 %v2873, %v2957
        %v2979 = vsub.f32 %v2876, %v2957
        %v2980 = vsub.f32 %v2879, %v2958
        %v2981 = vsub.f32 %v2882, %v2958
        %v2982 = vsub.f32 %v2885, %v2959
        %v2983 = vsub.f32 %v2888, %v2959
        %v2984 = vmul.f32 %v2968, 1.442695
        %v2985 = vpow.pop %v2984
        %v2986 = vmul.f32 %v2969, 1.442695
        %v2987 = vpow.pop %v2986
        %v2988 = vmul.f32 %v2970, 1.442695
        %v2989 = vpow.pop %v2988
        %v2990 = vmul.f32 %v2971, 1.442695
        %v2991 = vpow.pop %v2990
        %v2992 = vmul.f32 %v2972, 1.442695
        %v2993 = vpow.pop %v2992
        %v2994 = vmul.f32 %v2973, 1.442695
        %v2995 = vpow.pop %v2994
        %v2996 = vmul.f32 %v2974, 1.442695
        %v2997 = vpow.pop %v2996
        %v2998 = vmul.f32 %v2975, 1.442695
        %v2999 = vpow.pop %v2998
        %v3000 = vmul.f32 %v2976, 1.442695
        %v3001 = vpow.pop %v3000
        %v3002 = vmul.f32 %v2977, 1.442695
        %v3003 = vpow.pop %v3002
        %v3004 = vmul.f32 %v2978, 1.442695
        %v3005 = vpow.pop %v3004
        %v3006 = vmul.f32 %v2979, 1.442695
        %v3007 = vpow.pop %v3006
        %v3008 = vmul.f32 %v2980, 1.442695
        %v3009 = vpow.pop %v3008
        %v3010 = vmul.f32 %v2981, 1.442695
        %v3011 = vpow.pop %v3010
        %v3012 = vmul.f32 %v2982, 1.442695
        %v3013 = vpow.pop %v3012
        %v3014 = vmul.f32 %v2983, 1.442695
        %v3015 = vpow.pop %v3014
        %3032 = vset.pattern.permute.xlu0 0
        %3033 = vperm.xlu0 %3032, %v2985
        %v3034 = vpop.permute.xlu0 %3033
        %3035 = vset.pattern.permute.xlu0 0
        %3036 = vperm.xlu0 %3035, %v2987
        %v3037 = vpop.permute.xlu0 %3036
        %3038 = vset.pattern.permute.xlu0 0
        %3039 = vperm.xlu0 %3038, %v2989
        %v3040 = vpop.permute.xlu0 %3039
        %3041 = vset.pattern.permute.xlu0 0
        %3042 = vperm.xlu0 %3041, %v2991
        %v3043 = vpop.permute.xlu0 %3042
        %3044 = vset.pattern.permute.xlu0 0
        %3045 = vperm.xlu0 %3044, %v2993
        %v3046 = vpop.permute.xlu0 %3045
        %3047 = vset.pattern.permute.xlu0 0
        %3048 = vperm.xlu0 %3047, %v2995
        %v3049 = vpop.permute.xlu0 %3048
        %3050 = vset.pattern.permute.xlu0 0
        %3051 = vperm.xlu0 %3050, %v2997
        %v3052 = vpop.permute.xlu0 %3051
        %3053 = vset.pattern.permute.xlu0 0
        %3054 = vperm.xlu0 %3053, %v2999
        %v3055 = vpop.permute.xlu0 %3054
        %3056 = vset.pattern.permute.xlu0 0
        %3057 = vperm.xlu0 %3056, %v3001
        %v3058 = vpop.permute.xlu0 %3057
        %3059 = vset.pattern.permute.xlu0 0
        %3060 = vperm.xlu0 %3059, %v3003
        %v3061 = vpop.permute.xlu0 %3060
        %3062 = vset.pattern.permute.xlu0 0
        %3063 = vperm.xlu0 %3062, %v3005
        %v3064 = vpop.permute.xlu0 %3063
        %3065 = vset.pattern.permute.xlu0 0
        %3066 = vperm.xlu0 %3065, %v3007
        %v3067 = vpop.permute.xlu0 %3066
        %3068 = vset.pattern.permute.xlu0 0
        %3069 = vperm.xlu0 %3068, %v3009
        %v3070 = vpop.permute.xlu0 %3069
        %3071 = vset.pattern.permute.xlu0 0
        %3072 = vperm.xlu0 %3071, %v3011
        %v3073 = vpop.permute.xlu0 %3072
        %3074 = vset.pattern.permute.xlu0 0
        %3075 = vperm.xlu0 %3074, %v3013
        %v3076 = vpop.permute.xlu0 %3075
        %3077 = vset.pattern.permute.xlu0 0
        %3078 = vperm.xlu0 %3077, %v3015
        %v3079 = vpop.permute.xlu0 %3078
        %v3080 = vperm.slane %v3034, %v2906
        %v3081 = vperm.slane %v3037, %v2908
        %v3082 = vsel %vm2910, %v3081, %v3080
        %v3083 = vperm.slane %v3040, %v2906
        %v3084 = vperm.slane %v3043, %v2908
        %v3085 = vsel %vm2910, %v3084, %v3083
        %v3086 = vperm.slane %v3046, %v2906
        %v3087 = vperm.slane %v3049, %v2908
        %v3088 = vsel %vm2910, %v3087, %v3086
        %v3089 = vperm.slane %v3052, %v2906
        %v3090 = vperm.slane %v3055, %v2908
        %v3091 = vsel %vm2910, %v3090, %v3089
        %v3092 = vperm.slane %v3058, %v2906
        %v3093 = vperm.slane %v3061, %v2908
        %v3094 = vsel %vm2910, %v3093, %v3092
        %v3095 = vperm.slane %v3064, %v2906
        %v3096 = vperm.slane %v3067, %v2908
        %v3097 = vsel %vm2910, %v3096, %v3095
        %v3098 = vperm.slane %v3070, %v2906
        %v3099 = vperm.slane %v3073, %v2908
        %v3100 = vsel %vm2910, %v3099, %v3098
        %v3101 = vperm.slane %v3076, %v2906
        %v3102 = vperm.slane %v3079, %v2908
        %v3103 = vsel %vm2910, %v3102, %v3101
        %v3104 = vsel %vm2933, %v3085, %v3082
        %v3105 = vsel %vm2935, %v3088, %v3104
        %v3106 = vsel %vm2937, %v3091, %v3105
        %v3107 = vsel %vm2939, %v3094, %v3106
        %v3108 = vsel %vm2941, %v3097, %v3107
        %v3109 = vsel %vm2943, %v3100, %v3108
        %v3110 = vsel %vm2945, %v3103, %v3109
        %v3112 = vsel %vm779, %v3110, 0.0
        %3113 = vadd.xlane.f32.xlu0 %v3112
        %v3114 = vpop.xlane.xlu0 %3113
        %v3115 = vrcp.pop %v3114
        %v3117 = vperm.slane %v3115, 0
        %v3118 = vperm.slane %v3115, 1
        %v3119 = vperm.slane %v3115, 2
        %v3120 = vperm.slane %v3115, 3
        %v3121 = vperm.slane %v3115, 4
        %v3122 = vperm.slane %v3115, 5
        %v3123 = vperm.slane %v3115, 6
        %v3124 = vperm.slane %v3115, 7
        %v3133 = vmul.f32 %v2985, %v3117
        %v3134 = vmul.f32 %v2987, %v3117
        %v3135 = vmul.f32 %v2989, %v3118
        %v3136 = vmul.f32 %v2991, %v3118
        %v3137 = vmul.f32 %v2993, %v3119
        %v3138 = vmul.f32 %v2995, %v3119
        %v3139 = vmul.f32 %v2997, %v3120
        %v3140 = vmul.f32 %v2999, %v3120
        %v3141 = vmul.f32 %v3001, %v3121
        %v3142 = vmul.f32 %v3003, %v3121
        %v3143 = vmul.f32 %v3005, %v3122
        %v3144 = vmul.f32 %v3007, %v3122
        %v3145 = vmul.f32 %v3009, %v3123
        %v3146 = vmul.f32 %v3011, %v3123
        %v3147 = vmul.f32 %v3013, %v3124
        %v3148 = vmul.f32 %v3015, %v3124
        %3165 = vset.pattern.permute.xlu0 0
        %3166 = vperm.xlu0 %3165, %v3133
        %v3167 = vpop.permute.xlu0 %3166
        %3168 = vset.pattern.permute.xlu0 0
        %3169 = vperm.xlu0 %3168, %v3134
        %v3170 = vpop.permute.xlu0 %3169
        %3171 = vset.pattern.permute.xlu0 0
        %3172 = vperm.xlu0 %3171, %v3135
        %v3173 = vpop.permute.xlu0 %3172
        %3174 = vset.pattern.permute.xlu0 0
        %3175 = vperm.xlu0 %3174, %v3136
        %v3176 = vpop.permute.xlu0 %3175
        %3177 = vset.pattern.permute.xlu0 0
        %3178 = vperm.xlu0 %3177, %v3137
        %v3179 = vpop.permute.xlu0 %3178
        %3180 = vset.pattern.permute.xlu0 0
        %3181 = vperm.xlu0 %3180, %v3138
        %v3182 = vpop.permute.xlu0 %3181
        %3183 = vset.pattern.permute.xlu0 0
        %3184 = vperm.xlu0 %3183, %v3139
        %v3185 = vpop.permute.xlu0 %3184
        %3186 = vset.pattern.permute.xlu0 0
        %3187 = vperm.xlu0 %3186, %v3140
        %v3188 = vpop.permute.xlu0 %3187
        %3189 = vset.pattern.permute.xlu0 0
        %3190 = vperm.xlu0 %3189, %v3141
        %v3191 = vpop.permute.xlu0 %3190
        %3192 = vset.pattern.permute.xlu0 0
        %3193 = vperm.xlu0 %3192, %v3142
        %v3194 = vpop.permute.xlu0 %3193
        %3195 = vset.pattern.permute.xlu0 0
        %3196 = vperm.xlu0 %3195, %v3143
        %v3197 = vpop.permute.xlu0 %3196
        %3198 = vset.pattern.permute.xlu0 0
        %3199 = vperm.xlu0 %3198, %v3144
        %v3200 = vpop.permute.xlu0 %3199
        %3201 = vset.pattern.permute.xlu0 0
        %3202 = vperm.xlu0 %3201, %v3145
        %v3203 = vpop.permute.xlu0 %3202
        %3204 = vset.pattern.permute.xlu0 0
        %3205 = vperm.xlu0 %3204, %v3146
        %v3206 = vpop.permute.xlu0 %3205
        %3207 = vset.pattern.permute.xlu0 0
        %3208 = vperm.xlu0 %3207, %v3147
        %v3209 = vpop.permute.xlu0 %3208
        %3210 = vset.pattern.permute.xlu0 0
        %3211 = vperm.xlu0 %3210, %v3148
        %v3212 = vpop.permute.xlu0 %3211
        %v3213 = vperm.slane %v3167, %v2906
        %v3214 = vperm.slane %v3170, %v2908
        %v3215 = vsel %vm2910, %v3214, %v3213
        %v3216 = vperm.slane %v3173, %v2906
        %v3217 = vperm.slane %v3176, %v2908
        %v3218 = vsel %vm2910, %v3217, %v3216
        %v3219 = vperm.slane %v3179, %v2906
        %v3220 = vperm.slane %v3182, %v2908
        %v3221 = vsel %vm2910, %v3220, %v3219
        %v3222 = vperm.slane %v3185, %v2906
        %v3223 = vperm.slane %v3188, %v2908
        %v3224 = vsel %vm2910, %v3223, %v3222
        %v3225 = vperm.slane %v3191, %v2906
        %v3226 = vperm.slane %v3194, %v2908
        %v3227 = vsel %vm2910, %v3226, %v3225
        %v3228 = vperm.slane %v3197, %v2906
        %v3229 = vperm.slane %v3200, %v2908
        %v3230 = vsel %vm2910, %v3229, %v3228
        %v3231 = vperm.slane %v3203, %v2906
        %v3232 = vperm.slane %v3206, %v2908
        %v3233 = vsel %vm2910, %v3232, %v3231
        %v3234 = vperm.slane %v3209, %v2906
        %v3235 = vperm.slane %v3212, %v2908
        %v3236 = vsel %vm2910, %v3235, %v3234
        %v3237 = vsel %vm2933, %v3218, %v3215
        %v3238 = vsel %vm2935, %v3221, %v3237
        %v3239 = vsel %vm2937, %v3224, %v3238
        %v3240 = vsel %vm2939, %v3227, %v3239
        %v3241 = vsel %vm2941, %v3230, %v3240
        %v3242 = vsel %vm2943, %v3233, %v3241
        %v3243 = vsel %vm2945, %v3236, %v3242
        %3246 = vrot.lane.b32.xlu0 %v986, 112
        %v3247 = vpop.permute.xlu0 %3246
        %3248 = vrot.lane.b32.xlu0 %v987, 112
        %v3249 = vpop.permute.xlu0 %3248
        %v3252 = vsel %vm779, %v3243, 0
        %3254 = vmatpush.msra.mxu0 0.0
        %3255 = vmatpush.msra.mxu0 0.0
        %3256 = vmatpush.msra.mxu0 0.0
        %3257 = vmatpush.msra.mxu0 0.0
        %3258 = vmatpush.msra.mxu0 0.0
        %3259 = vmatpush.msra.mxu0 0.0
        %3260 = vmatpush.msra.mxu0 0.0
        %3261 = vmatpush.msra.mxu0 0.0
        %3262 = vmatpush.msra.mxu0 0.0
        %3263 = vmatpush.msra.mxu0 0.0
        %3264 = vmatpush.msra.mxu0 0.0
        %3265 = vmatpush.msra.mxu0 0.0
        %3266 = vmatpush.msra.mxu0 0.0
        %3267 = vmatpush.msra.mxu0 0.0
        %v3268 = vand.u32 %v3249, 4294901760
        %3269 = vmatpush.msra.mxu0 %v3268
        %v3270 = vand.u32 %v3247, 4294901760
        %3271 = vmatpush.msra.mxu0 %v3270
        %v3272 = vand.u32 %v3252, 4294901760
        %v3273 = vsub.f32 %v3252, %v3272
        %v3274 = vand.u32 %v3273, 4294901760
        %v3275 = vsub.f32 %v3273, %v3274
        %v3276 = vand.u32 %v3275, 4294901760
        %3277 = vmatmul.f32.gmra.mxu0 %v3276
        %v3278 = vpop.f32.mrf.mxu0
        %v3279 = vadd.f32 0.0, %v3278
        %3280 = vdwg.mxu0
        %3281 = vmatpush.msra.mxu0 0.0
        %3282 = vmatpush.msra.mxu0 0.0
        %3283 = vmatpush.msra.mxu0 0.0
        %3284 = vmatpush.msra.mxu0 0.0
        %3285 = vmatpush.msra.mxu0 0.0
        %3286 = vmatpush.msra.mxu0 0.0
        %3287 = vmatpush.msra.mxu0 0.0
        %3288 = vmatpush.msra.mxu0 0.0
        %3289 = vmatpush.msra.mxu0 0.0
        %3290 = vmatpush.msra.mxu0 0.0
        %3291 = vmatpush.msra.mxu0 0.0
        %3292 = vmatpush.msra.mxu0 0.0
        %3293 = vmatpush.msra.mxu0 0.0
        %3294 = vmatpush.msra.mxu0 0.0
        %v3295 = vand.u32 %v3249, 4294901760
        %v3296 = vsub.f32 %v3249, %v3295
        %v3297 = vand.u32 %v3296, 4294901760
        %v3298 = vsub.f32 %v3296, %v3297
        %v3299 = vand.u32 %v3298, 4294901760
        %3300 = vmatpush.msra.mxu0 %v3299
        %v3301 = vand.u32 %v3247, 4294901760
        %v3302 = vsub.f32 %v3247, %v3301
        %v3303 = vand.u32 %v3302, 4294901760
        %v3304 = vsub.f32 %v3302, %v3303
        %v3305 = vand.u32 %v3304, 4294901760
        %3306 = vmatpush.msra.mxu0 %v3305
        %v3307 = vand.u32 %v3252, 4294901760
        %3308 = vmatmul.f32.gmra.mxu0 %v3307
        %v3309 = vpop.f32.mrf.mxu0
        %v3310 = vadd.f32 %v3279, %v3309
        %3311 = vdwg.mxu0
        %3312 = vmatpush.msra.mxu0 0.0
        %3313 = vmatpush.msra.mxu0 0.0
        %3314 = vmatpush.msra.mxu0 0.0
        %3315 = vmatpush.msra.mxu0 0.0
        %3316 = vmatpush.msra.mxu0 0.0
        %3317 = vmatpush.msra.mxu0 0.0
        %3318 = vmatpush.msra.mxu0 0.0
        %3319 = vmatpush.msra.mxu0 0.0
        %3320 = vmatpush.msra.mxu0 0.0
        %3321 = vmatpush.msra.mxu0 0.0
        %3322 = vmatpush.msra.mxu0 0.0
        %3323 = vmatpush.msra.mxu0 0.0
        %3324 = vmatpush.msra.mxu0 0.0
        %3325 = vmatpush.msra.mxu0 0.0
        %v3326 = vand.u32 %v3249, 4294901760
        %v3327 = vsub.f32 %v3249, %v3326
        %3328 = vmatpush.msra.mxu0 %v3327
        %v3329 = vand.u32 %v3247, 4294901760
        %v3330 = vsub.f32 %v3247, %v3329
        %3331 = vmatpush.msra.mxu0 %v3330
        %v3332 = vand.u32 %v3252, 4294901760
        %v3333 = vsub.f32 %v3252, %v3332
        %3334 = vmatmul.f32.gmra.mxu0 %v3333
        %v3335 = vpop.f32.mrf.mxu0
        %v3336 = vadd.f32 %v3310, %v3335
        %3337 = vdwg.mxu0
        %3338 = vmatpush.msra.mxu0 0.0
        %3339 = vmatpush.msra.mxu0 0.0
        %3340 = vmatpush.msra.mxu0 0.0
        %3341 = vmatpush.msra.mxu0 0.0
        %3342 = vmatpush.msra.mxu0 0.0
        %3343 = vmatpush.msra.mxu0 0.0
        %3344 = vmatpush.msra.mxu0 0.0
        %3345 = vmatpush.msra.mxu0 0.0
        %3346 = vmatpush.msra.mxu0 0.0
        %3347 = vmatpush.msra.mxu0 0.0
        %3348 = vmatpush.msra.mxu0 0.0
        %3349 = vmatpush.msra.mxu0 0.0
        %3350 = vmatpush.msra.mxu0 0.0
        %3351 = vmatpush.msra.mxu0 0.0
        %v3352 = vand.u32 %v3249, 4294901760
        %3353 = vmatpush.msra.mxu0 %v3352
        %v3354 = vand.u32 %v3247, 4294901760
        %3355 = vmatpush.msra.mxu0 %v3354
        %v3356 = vand.u32 %v3252, 4294901760
        %v3357 = vsub.f32 %v3252, %v3356
        %v3358 = vand.u32 %v3357, 4294901760
        %3359 = vmatmul.f32.gmra.mxu0 %v3358
        %v3360 = vpop.f32.mrf.mxu0
        %v3361 = vadd.f32 %v3336, %v3360
        %3362 = vdwg.mxu0
        %3363 = vmatpush.msra.mxu0 0.0
        %3364 = vmatpush.msra.mxu0 0.0
        %3365 = vmatpush.msra.mxu0 0.0
        %3366 = vmatpush.msra.mxu0 0.0
        %3367 = vmatpush.msra.mxu0 0.0
        %3368 = vmatpush.msra.mxu0 0.0
        %3369 = vmatpush.msra.mxu0 0.0
        %3370 = vmatpush.msra.mxu0 0.0
        %3371 = vmatpush.msra.mxu0 0.0
        %3372 = vmatpush.msra.mxu0 0.0
        %3373 = vmatpush.msra.mxu0 0.0
        %3374 = vmatpush.msra.mxu0 0.0
        %3375 = vmatpush.msra.mxu0 0.0
        %3376 = vmatpush.msra.mxu0 0.0
        %v3377 = vand.u32 %v3249, 4294901760
        %v3378 = vsub.f32 %v3249, %v3377
        %v3379 = vand.u32 %v3378, 4294901760
        %3380 = vmatpush.msra.mxu0 %v3379
        %v3381 = vand.u32 %v3247, 4294901760
        %v3382 = vsub.f32 %v3247, %v3381
        %v3383 = vand.u32 %v3382, 4294901760
        %3384 = vmatpush.msra.mxu0 %v3383
        %v3385 = vand.u32 %v3252, 4294901760
        %3386 = vmatmul.f32.gmra.mxu0 %v3385
        %v3387 = vpop.f32.mrf.mxu0
        %v3388 = vadd.f32 %v3361, %v3387
        %3389 = vdwg.mxu0
        %3390 = vmatpush.msra.mxu0 0.0
        %3391 = vmatpush.msra.mxu0 0.0
        %3392 = vmatpush.msra.mxu0 0.0
        %3393 = vmatpush.msra.mxu0 0.0
        %3394 = vmatpush.msra.mxu0 0.0
        %3395 = vmatpush.msra.mxu0 0.0
        %3396 = vmatpush.msra.mxu0 0.0
        %3397 = vmatpush.msra.mxu0 0.0
        %3398 = vmatpush.msra.mxu0 0.0
        %3399 = vmatpush.msra.mxu0 0.0
        %3400 = vmatpush.msra.mxu0 0.0
        %3401 = vmatpush.msra.mxu0 0.0
        %3402 = vmatpush.msra.mxu0 0.0
        %3403 = vmatpush.msra.mxu0 0.0
        %v3404 = vand.u32 %v3249, 4294901760
        %3405 = vmatpush.msra.mxu0 %v3404
        %v3406 = vand.u32 %v3247, 4294901760
        %3407 = vmatpush.msra.mxu0 %v3406
        %v3408 = vand.u32 %v3252, 4294901760
        %3409 = vmatmul.f32.gmra.mxu0 %v3408
        %v3410 = vpop.f32.mrf.mxu0
        %v3411 = vadd.f32 %v3388, %v3410
        %3412 = vdwg.mxu0
        %3413 = vrot.lane.b32.xlu0 %v2114, 124
        %v3414 = vpop.permute.xlu0 %3413
        %3415 = vrot.lane.b32.xlu0 %v2115, 124
        %v3416 = vpop.permute.xlu0 %3415
        %3417 = vrot.lane.b32.xlu0 %v2116, 124
        %v3418 = vpop.permute.xlu0 %3417
        %3419 = vrot.lane.b32.xlu0 %v2117, 124
        %v3420 = vpop.permute.xlu0 %3419
        %3421 = vrot.lane.b32.xlu0 %v2118, 124
        %v3422 = vpop.permute.xlu0 %3421
        %3423 = vrot.lane.b32.xlu0 %v2119, 124
        %v3424 = vpop.permute.xlu0 %3423
        %3425 = vrot.lane.b32.xlu0 %v2120, 124
        %v3426 = vpop.permute.xlu0 %3425
        %3427 = vrot.lane.b32.xlu0 %v2121, 124
        %v3428 = vpop.permute.xlu0 %3427
        %3429 = vrot.lane.b32.xlu0 %v2122, 124
        %v3430 = vpop.permute.xlu0 %3429
        %3431 = vrot.lane.b32.xlu0 %v2123, 124
        %v3432 = vpop.permute.xlu0 %3431
        %3433 = vrot.lane.b32.xlu0 %v2124, 124
        %v3434 = vpop.permute.xlu0 %3433
        %3435 = vrot.lane.b32.xlu0 %v2125, 124
        %v3436 = vpop.permute.xlu0 %3435
        %3437 = vrot.lane.b32.xlu0 %v2126, 124
        %v3438 = vpop.permute.xlu0 %3437
        %3439 = vrot.lane.b32.xlu0 %v2127, 124
        %v3440 = vpop.permute.xlu0 %3439
        %3441 = vrot.lane.b32.xlu0 %v2128, 124
        %v3442 = vpop.permute.xlu0 %3441
        %3443 = vrot.lane.b32.xlu0 %v2129, 124
        %v3444 = vpop.permute.xlu0 %3443
        %v3461 = vsel %vm2840, %v3414, 0.0
        %3462 = vadd.xlane.f32.xlu0 %v3461
        %v3463 = vpop.xlane.xlu0 %3462
        %v3464 = vsel %vm2840, %v3416, 0.0
        %3465 = vadd.xlane.f32.xlu0 %v3464
        %v3466 = vpop.xlane.xlu0 %3465
        %v3467 = vsel %vm2840, %v3418, 0.0
        %3468 = vadd.xlane.f32.xlu0 %v3467
        %v3469 = vpop.xlane.xlu0 %3468
        %v3470 = vsel %vm2840, %v3420, 0.0
        %3471 = vadd.xlane.f32.xlu0 %v3470
        %v3472 = vpop.xlane.xlu0 %3471
        %v3473 = vsel %vm2840, %v3422, 0.0
        %3474 = vadd.xlane.f32.xlu0 %v3473
        %v3475 = vpop.xlane.xlu0 %3474
        %v3476 = vsel %vm2840, %v3424, 0.0
        %3477 = vadd.xlane.f32.xlu0 %v3476
        %v3478 = vpop.xlane.xlu0 %3477
        %v3479 = vsel %vm2840, %v3426, 0.0
        %3480 = vadd.xlane.f32.xlu0 %v3479
        %v3481 = vpop.xlane.xlu0 %3480
        %v3482 = vsel %vm2840, %v3428, 0.0
        %3483 = vadd.xlane.f32.xlu0 %v3482
        %v3484 = vpop.xlane.xlu0 %3483
        %v3485 = vsel %vm2840, %v3430, 0.0
        %3486 = vadd.xlane.f32.xlu0 %v3485
        %v3487 = vpop.xlane.xlu0 %3486
        %v3488 = vsel %vm2840, %v3432, 0.0
        %3489 = vadd.xlane.f32.xlu0 %v3488
        %v3490 = vpop.xlane.xlu0 %3489
        %v3491 = vsel %vm2840, %v3434, 0.0
        %3492 = vadd.xlane.f32.xlu0 %v3491
        %v3493 = vpop.xlane.xlu0 %3492
        %v3494 = vsel %vm2840, %v3436, 0.0
        %3495 = vadd.xlane.f32.xlu0 %v3494
        %v3496 = vpop.xlane.xlu0 %3495
        %v3497 = vsel %vm2840, %v3438, 0.0
        %3498 = vadd.xlane.f32.xlu0 %v3497
        %v3499 = vpop.xlane.xlu0 %3498
        %v3500 = vsel %vm2840, %v3440, 0.0
        %3501 = vadd.xlane.f32.xlu0 %v3500
        %v3502 = vpop.xlane.xlu0 %3501
        %v3503 = vsel %vm2840, %v3442, 0.0
        %3504 = vadd.xlane.f32.xlu0 %v3503
        %v3505 = vpop.xlane.xlu0 %3504
        %v3506 = vsel %vm2840, %v3444, 0.0
        %3507 = vadd.xlane.f32.xlu0 %v3506
        %v3508 = vpop.xlane.xlu0 %3507
        %v3525 = vperm.slane %v3463, %v2906
        %v3526 = vperm.slane %v3466, %v2908
        %v3527 = vsel %vm2910, %v3526, %v3525
        %v3528 = vperm.slane %v3469, %v2906
        %v3529 = vperm.slane %v3472, %v2908
        %v3530 = vsel %vm2910, %v3529, %v3528
        %v3531 = vperm.slane %v3475, %v2906
        %v3532 = vperm.slane %v3478, %v2908
        %v3533 = vsel %vm2910, %v3532, %v3531
        %v3534 = vperm.slane %v3481, %v2906
        %v3535 = vperm.slane %v3484, %v2908
        %v3536 = vsel %vm2910, %v3535, %v3534
        %v3537 = vperm.slane %v3487, %v2906
        %v3538 = vperm.slane %v3490, %v2908
        %v3539 = vsel %vm2910, %v3538, %v3537
        %v3540 = vperm.slane %v3493, %v2906
        %v3541 = vperm.slane %v3496, %v2908
        %v3542 = vsel %vm2910, %v3541, %v3540
        %v3543 = vperm.slane %v3499, %v2906
        %v3544 = vperm.slane %v3502, %v2908
        %v3545 = vsel %vm2910, %v3544, %v3543
        %v3546 = vperm.slane %v3505, %v2906
        %v3547 = vperm.slane %v3508, %v2908
        %v3548 = vsel %vm2910, %v3547, %v3546
        %v3549 = vsel %vm2933, %v3530, %v3527
        %v3550 = vsel %vm2935, %v3533, %v3549
        %v3551 = vsel %vm2937, %v3536, %v3550
        %v3552 = vsel %vm2939, %v3539, %v3551
        %v3553 = vsel %vm2941, %v3542, %v3552
        %v3554 = vsel %vm2943, %v3545, %v3553
        %v3555 = vsel %vm2945, %v3548, %v3554
        %v3557 = vsel %vm779, %v3555, -inf
        %3558 = vmax.xlane.f32.xlu0 %v3557
        %v3559 = vpop.xlane.xlu0 %3558
        %v3561 = vperm.slane %v3559, 0
        %v3562 = vperm.slane %v3559, 1
        %v3563 = vperm.slane %v3559, 2
        %v3564 = vperm.slane %v3559, 3
        %v3565 = vperm.slane %v3559, 4
        %v3566 = vperm.slane %v3559, 5
        %v3567 = vperm.slane %v3559, 6
        %v3568 = vperm.slane %v3559, 7
        %v3577 = vsub.f32 %v3463, %v3561
        %v3578 = vsub.f32 %v3466, %v3561
        %v3579 = vsub.f32 %v3469, %v3562
        %v3580 = vsub.f32 %v3472, %v3562
        %v3581 = vsub.f32 %v3475, %v3563
        %v3582 = vsub.f32 %v3478, %v3563
        %v3583 = vsub.f32 %v3481, %v3564
        %v3584 = vsub.f32 %v3484, %v3564
        %v3585 = vsub.f32 %v3487, %v3565
        %v3586 = vsub.f32 %v3490, %v3565
        %v3587 = vsub.f32 %v3493, %v3566
        %v3588 = vsub.f32 %v3496, %v3566
        %v3589 = vsub.f32 %v3499, %v3567
        %v3590 = vsub.f32 %v3502, %v3567
        %v3591 = vsub.f32 %v3505, %v3568
        %v3592 = vsub.f32 %v3508, %v3568
        %v3593 = vmul.f32 %v3577, 1.442695
        %v3594 = vpow.pop %v3593
        %v3595 = vmul.f32 %v3578, 1.442695
        %v3596 = vpow.pop %v3595
        %v3597 = vmul.f32 %v3579, 1.442695
        %v3598 = vpow.pop %v3597
        %v3599 = vmul.f32 %v3580, 1.442695
        %v3600 = vpow.pop %v3599
        %v3601 = vmul.f32 %v3581, 1.442695
        %v3602 = vpow.pop %v3601
        %v3603 = vmul.f32 %v3582, 1.442695
        %v3604 = vpow.pop %v3603
        %v3605 = vmul.f32 %v3583, 1.442695
        %v3606 = vpow.pop %v3605
        %v3607 = vmul.f32 %v3584, 1.442695
        %v3608 = vpow.pop %v3607
        %v3609 = vmul.f32 %v3585, 1.442695
        %v3610 = vpow.pop %v3609
        %v3611 = vmul.f32 %v3586, 1.442695
        %v3612 = vpow.pop %v3611
        %v3613 = vmul.f32 %v3587, 1.442695
        %v3614 = vpow.pop %v3613
        %v3615 = vmul.f32 %v3588, 1.442695
        %v3616 = vpow.pop %v3615
        %v3617 = vmul.f32 %v3589, 1.442695
        %v3618 = vpow.pop %v3617
        %v3619 = vmul.f32 %v3590, 1.442695
        %v3620 = vpow.pop %v3619
        %v3621 = vmul.f32 %v3591, 1.442695
        %v3622 = vpow.pop %v3621
        %v3623 = vmul.f32 %v3592, 1.442695
        %v3624 = vpow.pop %v3623
        %3641 = vset.pattern.permute.xlu0 0
        %3642 = vperm.xlu0 %3641, %v3594
        %v3643 = vpop.permute.xlu0 %3642
        %3644 = vset.pattern.permute.xlu0 0
        %3645 = vperm.xlu0 %3644, %v3596
        %v3646 = vpop.permute.xlu0 %3645
        %3647 = vset.pattern.permute.xlu0 0
        %3648 = vperm.xlu0 %3647, %v3598
        %v3649 = vpop.permute.xlu0 %3648
        %3650 = vset.pattern.permute.xlu0 0
        %3651 = vperm.xlu0 %3650, %v3600
        %v3652 = vpop.permute.xlu0 %3651
        %3653 = vset.pattern.permute.xlu0 0
        %3654 = vperm.xlu0 %3653, %v3602
        %v3655 = vpop.permute.xlu0 %3654
        %3656 = vset.pattern.permute.xlu0 0
        %3657 = vperm.xlu0 %3656, %v3604
        %v3658 = vpop.permute.xlu0 %3657
        %3659 = vset.pattern.permute.xlu0 0
        %3660 = vperm.xlu0 %3659, %v3606
        %v3661 = vpop.permute.xlu0 %3660
        %3662 = vset.pattern.permute.xlu0 0
        %3663 = vperm.xlu0 %3662, %v3608
        %v3664 = vpop.permute.xlu0 %3663
        %3665 = vset.pattern.permute.xlu0 0
        %3666 = vperm.xlu0 %3665, %v3610
        %v3667 = vpop.permute.xlu0 %3666
        %3668 = vset.pattern.permute.xlu0 0
        %3669 = vperm.xlu0 %3668, %v3612
        %v3670 = vpop.permute.xlu0 %3669
        %3671 = vset.pattern.permute.xlu0 0
        %3672 = vperm.xlu0 %3671, %v3614
        %v3673 = vpop.permute.xlu0 %3672
        %3674 = vset.pattern.permute.xlu0 0
        %3675 = vperm.xlu0 %3674, %v3616
        %v3676 = vpop.permute.xlu0 %3675
        %3677 = vset.pattern.permute.xlu0 0
        %3678 = vperm.xlu0 %3677, %v3618
        %v3679 = vpop.permute.xlu0 %3678
        %3680 = vset.pattern.permute.xlu0 0
        %3681 = vperm.xlu0 %3680, %v3620
        %v3682 = vpop.permute.xlu0 %3681
        %3683 = vset.pattern.permute.xlu0 0
        %3684 = vperm.xlu0 %3683, %v3622
        %v3685 = vpop.permute.xlu0 %3684
        %3686 = vset.pattern.permute.xlu0 0
        %3687 = vperm.xlu0 %3686, %v3624
        %v3688 = vpop.permute.xlu0 %3687
        %v3689 = vperm.slane %v3643, %v2906
        %v3690 = vperm.slane %v3646, %v2908
        %v3691 = vsel %vm2910, %v3690, %v3689
        %v3692 = vperm.slane %v3649, %v2906
        %v3693 = vperm.slane %v3652, %v2908
        %v3694 = vsel %vm2910, %v3693, %v3692
        %v3695 = vperm.slane %v3655, %v2906
        %v3696 = vperm.slane %v3658, %v2908
        %v3697 = vsel %vm2910, %v3696, %v3695
        %v3698 = vperm.slane %v3661, %v2906
        %v3699 = vperm.slane %v3664, %v2908
        %v3700 = vsel %vm2910, %v3699, %v3698
        %v3701 = vperm.slane %v3667, %v2906
        %v3702 = vperm.slane %v3670, %v2908
        %v3703 = vsel %vm2910, %v3702, %v3701
        %v3704 = vperm.slane %v3673, %v2906
        %v3705 = vperm.slane %v3676, %v2908
        %v3706 = vsel %vm2910, %v3705, %v3704
        %v3707 = vperm.slane %v3679, %v2906
        %v3708 = vperm.slane %v3682, %v2908
        %v3709 = vsel %vm2910, %v3708, %v3707
        %v3710 = vperm.slane %v3685, %v2906
        %v3711 = vperm.slane %v3688, %v2908
        %v3712 = vsel %vm2910, %v3711, %v3710
        %v3713 = vsel %vm2933, %v3694, %v3691
        %v3714 = vsel %vm2935, %v3697, %v3713
        %v3715 = vsel %vm2937, %v3700, %v3714
        %v3716 = vsel %vm2939, %v3703, %v3715
        %v3717 = vsel %vm2941, %v3706, %v3716
        %v3718 = vsel %vm2943, %v3709, %v3717
        %v3719 = vsel %vm2945, %v3712, %v3718
        %v3721 = vsel %vm779, %v3719, 0.0
        %3722 = vadd.xlane.f32.xlu0 %v3721
        %v3723 = vpop.xlane.xlu0 %3722
        %v3724 = vrcp.pop %v3723
        %v3726 = vperm.slane %v3724, 0
        %v3727 = vperm.slane %v3724, 1
        %v3728 = vperm.slane %v3724, 2
        %v3729 = vperm.slane %v3724, 3
        %v3730 = vperm.slane %v3724, 4
        %v3731 = vperm.slane %v3724, 5
        %v3732 = vperm.slane %v3724, 6
        %v3733 = vperm.slane %v3724, 7
        %v3742 = vmul.f32 %v3594, %v3726
        %v3743 = vmul.f32 %v3596, %v3726
        %v3744 = vmul.f32 %v3598, %v3727
        %v3745 = vmul.f32 %v3600, %v3727
        %v3746 = vmul.f32 %v3602, %v3728
        %v3747 = vmul.f32 %v3604, %v3728
        %v3748 = vmul.f32 %v3606, %v3729
        %v3749 = vmul.f32 %v3608, %v3729
        %v3750 = vmul.f32 %v3610, %v3730
        %v3751 = vmul.f32 %v3612, %v3730
        %v3752 = vmul.f32 %v3614, %v3731
        %v3753 = vmul.f32 %v3616, %v3731
        %v3754 = vmul.f32 %v3618, %v3732
        %v3755 = vmul.f32 %v3620, %v3732
        %v3756 = vmul.f32 %v3622, %v3733
        %v3757 = vmul.f32 %v3624, %v3733
        %3774 = vset.pattern.permute.xlu0 0
        %3775 = vperm.xlu0 %3774, %v3742
        %v3776 = vpop.permute.xlu0 %3775
        %3777 = vset.pattern.permute.xlu0 0
        %3778 = vperm.xlu0 %3777, %v3743
        %v3779 = vpop.permute.xlu0 %3778
        %3780 = vset.pattern.permute.xlu0 0
        %3781 = vperm.xlu0 %3780, %v3744
        %v3782 = vpop.permute.xlu0 %3781
        %3783 = vset.pattern.permute.xlu0 0
        %3784 = vperm.xlu0 %3783, %v3745
        %v3785 = vpop.permute.xlu0 %3784
        %3786 = vset.pattern.permute.xlu0 0
        %3787 = vperm.xlu0 %3786, %v3746
        %v3788 = vpop.permute.xlu0 %3787
        %3789 = vset.pattern.permute.xlu0 0
        %3790 = vperm.xlu0 %3789, %v3747
        %v3791 = vpop.permute.xlu0 %3790
        %3792 = vset.pattern.permute.xlu0 0
        %3793 = vperm.xlu0 %3792, %v3748
        %v3794 = vpop.permute.xlu0 %3793
        %3795 = vset.pattern.permute.xlu0 0
        %3796 = vperm.xlu0 %3795, %v3749
        %v3797 = vpop.permute.xlu0 %3796
        %3798 = vset.pattern.permute.xlu0 0
        %3799 = vperm.xlu0 %3798, %v3750
        %v3800 = vpop.permute.xlu0 %3799
        %3801 = vset.pattern.permute.xlu0 0
        %3802 = vperm.xlu0 %3801, %v3751
        %v3803 = vpop.permute.xlu0 %3802
        %3804 = vset.pattern.permute.xlu0 0
        %3805 = vperm.xlu0 %3804, %v3752
        %v3806 = vpop.permute.xlu0 %3805
        %3807 = vset.pattern.permute.xlu0 0
        %3808 = vperm.xlu0 %3807, %v3753
        %v3809 = vpop.permute.xlu0 %3808
        %3810 = vset.pattern.permute.xlu0 0
        %3811 = vperm.xlu0 %3810, %v3754
        %v3812 = vpop.permute.xlu0 %3811
        %3813 = vset.pattern.permute.xlu0 0
        %3814 = vperm.xlu0 %3813, %v3755
        %v3815 = vpop.permute.xlu0 %3814
        %3816 = vset.pattern.permute.xlu0 0
        %3817 = vperm.xlu0 %3816, %v3756
        %v3818 = vpop.permute.xlu0 %3817
        %3819 = vset.pattern.permute.xlu0 0
        %3820 = vperm.xlu0 %3819, %v3757
        %v3821 = vpop.permute.xlu0 %3820
        %v3822 = vperm.slane %v3776, %v2906
        %v3823 = vperm.slane %v3779, %v2908
        %v3824 = vsel %vm2910, %v3823, %v3822
        %v3825 = vperm.slane %v3782, %v2906
        %v3826 = vperm.slane %v3785, %v2908
        %v3827 = vsel %vm2910, %v3826, %v3825
        %v3828 = vperm.slane %v3788, %v2906
        %v3829 = vperm.slane %v3791, %v2908
        %v3830 = vsel %vm2910, %v3829, %v3828
        %v3831 = vperm.slane %v3794, %v2906
        %v3832 = vperm.slane %v3797, %v2908
        %v3833 = vsel %vm2910, %v3832, %v3831
        %v3834 = vperm.slane %v3800, %v2906
        %v3835 = vperm.slane %v3803, %v2908
        %v3836 = vsel %vm2910, %v3835, %v3834
        %v3837 = vperm.slane %v3806, %v2906
        %v3838 = vperm.slane %v3809, %v2908
        %v3839 = vsel %vm2910, %v3838, %v3837
        %v3840 = vperm.slane %v3812, %v2906
        %v3841 = vperm.slane %v3815, %v2908
        %v3842 = vsel %vm2910, %v3841, %v3840
        %v3843 = vperm.slane %v3818, %v2906
        %v3844 = vperm.slane %v3821, %v2908
        %v3845 = vsel %vm2910, %v3844, %v3843
        %v3846 = vsel %vm2933, %v3827, %v3824
        %v3847 = vsel %vm2935, %v3830, %v3846
        %v3848 = vsel %vm2937, %v3833, %v3847
        %v3849 = vsel %vm2939, %v3836, %v3848
        %v3850 = vsel %vm2941, %v3839, %v3849
        %v3851 = vsel %vm2943, %v3842, %v3850
        %v3852 = vsel %vm2945, %v3845, %v3851
        %3853 = vrot.lane.b32.xlu0 %v986, 108
        %v3854 = vpop.permute.xlu0 %3853
        %3855 = vrot.lane.b32.xlu0 %v987, 108
        %v3856 = vpop.permute.xlu0 %3855
        %v3859 = vsel %vm779, %v3852, 0
        %3861 = vmatpush.msra.mxu0 0.0
        %3862 = vmatpush.msra.mxu0 0.0
        %3863 = vmatpush.msra.mxu0 0.0
        %3864 = vmatpush.msra.mxu0 0.0
        %3865 = vmatpush.msra.mxu0 0.0
        %3866 = vmatpush.msra.mxu0 0.0
        %3867 = vmatpush.msra.mxu0 0.0
        %3868 = vmatpush.msra.mxu0 0.0
        %3869 = vmatpush.msra.mxu0 0.0
        %3870 = vmatpush.msra.mxu0 0.0
        %3871 = vmatpush.msra.mxu0 0.0
        %3872 = vmatpush.msra.mxu0 0.0
        %3873 = vmatpush.msra.mxu0 0.0
        %3874 = vmatpush.msra.mxu0 0.0
        %v3875 = vand.u32 %v3856, 4294901760
        %3876 = vmatpush.msra.mxu0 %v3875
        %v3877 = vand.u32 %v3854, 4294901760
        %3878 = vmatpush.msra.mxu0 %v3877
        %v3879 = vand.u32 %v3859, 4294901760
        %v3880 = vsub.f32 %v3859, %v3879
        %v3881 = vand.u32 %v3880, 4294901760
        %v3882 = vsub.f32 %v3880, %v3881
        %v3883 = vand.u32 %v3882, 4294901760
        %3884 = vmatmul.f32.gmra.mxu0 %v3883
        %v3885 = vpop.f32.mrf.mxu0
        %v3886 = vadd.f32 0.0, %v3885
        %3887 = vdwg.mxu0
        %3888 = vmatpush.msra.mxu0 0.0
        %3889 = vmatpush.msra.mxu0 0.0
        %3890 = vmatpush.msra.mxu0 0.0
        %3891 = vmatpush.msra.mxu0 0.0
        %3892 = vmatpush.msra.mxu0 0.0
        %3893 = vmatpush.msra.mxu0 0.0
        %3894 = vmatpush.msra.mxu0 0.0
        %3895 = vmatpush.msra.mxu0 0.0
        %3896 = vmatpush.msra.mxu0 0.0
        %3897 = vmatpush.msra.mxu0 0.0
        %3898 = vmatpush.msra.mxu0 0.0
        %3899 = vmatpush.msra.mxu0 0.0
        %3900 = vmatpush.msra.mxu0 0.0
        %3901 = vmatpush.msra.mxu0 0.0
        %v3902 = vand.u32 %v3856, 4294901760
        %v3903 = vsub.f32 %v3856, %v3902
        %v3904 = vand.u32 %v3903, 4294901760
        %v3905 = vsub.f32 %v3903, %v3904
        %v3906 = vand.u32 %v3905, 4294901760
        %3907 = vmatpush.msra.mxu0 %v3906
        %v3908 = vand.u32 %v3854, 4294901760
        %v3909 = vsub.f32 %v3854, %v3908
        %v3910 = vand.u32 %v3909, 4294901760
        %v3911 = vsub.f32 %v3909, %v3910
        %v3912 = vand.u32 %v3911, 4294901760
        %3913 = vmatpush.msra.mxu0 %v3912
        %v3914 = vand.u32 %v3859, 4294901760
        %3915 = vmatmul.f32.gmra.mxu0 %v3914
        %v3916 = vpop.f32.mrf.mxu0
        %v3917 = vadd.f32 %v3886, %v3916
        %3918 = vdwg.mxu0
        %3919 = vmatpush.msra.mxu0 0.0
        %3920 = vmatpush.msra.mxu0 0.0
        %3921 = vmatpush.msra.mxu0 0.0
        %3922 = vmatpush.msra.mxu0 0.0
        %3923 = vmatpush.msra.mxu0 0.0
        %3924 = vmatpush.msra.mxu0 0.0
        %3925 = vmatpush.msra.mxu0 0.0
        %3926 = vmatpush.msra.mxu0 0.0
        %3927 = vmatpush.msra.mxu0 0.0
        %3928 = vmatpush.msra.mxu0 0.0
        %3929 = vmatpush.msra.mxu0 0.0
        %3930 = vmatpush.msra.mxu0 0.0
        %3931 = vmatpush.msra.mxu0 0.0
        %3932 = vmatpush.msra.mxu0 0.0
        %v3933 = vand.u32 %v3856, 4294901760
        %v3934 = vsub.f32 %v3856, %v3933
        %3935 = vmatpush.msra.mxu0 %v3934
        %v3936 = vand.u32 %v3854, 4294901760
        %v3937 = vsub.f32 %v3854, %v3936
        %3938 = vmatpush.msra.mxu0 %v3937
        %v3939 = vand.u32 %v3859, 4294901760
        %v3940 = vsub.f32 %v3859, %v3939
        %3941 = vmatmul.f32.gmra.mxu0 %v3940
        %v3942 = vpop.f32.mrf.mxu0
        %v3943 = vadd.f32 %v3917, %v3942
        %3944 = vdwg.mxu0
        %3945 = vmatpush.msra.mxu0 0.0
        %3946 = vmatpush.msra.mxu0 0.0
        %3947 = vmatpush.msra.mxu0 0.0
        %3948 = vmatpush.msra.mxu0 0.0
        %3949 = vmatpush.msra.mxu0 0.0
        %3950 = vmatpush.msra.mxu0 0.0
        %3951 = vmatpush.msra.mxu0 0.0
        %3952 = vmatpush.msra.mxu0 0.0
        %3953 = vmatpush.msra.mxu0 0.0
        %3954 = vmatpush.msra.mxu0 0.0
        %3955 = vmatpush.msra.mxu0 0.0
        %3956 = vmatpush.msra.mxu0 0.0
        %3957 = vmatpush.msra.mxu0 0.0
        %3958 = vmatpush.msra.mxu0 0.0
        %v3959 = vand.u32 %v3856, 4294901760
        %3960 = vmatpush.msra.mxu0 %v3959
        %v3961 = vand.u32 %v3854, 4294901760
        %3962 = vmatpush.msra.mxu0 %v3961
        %v3963 = vand.u32 %v3859, 4294901760
        %v3964 = vsub.f32 %v3859, %v3963
        %v3965 = vand.u32 %v3964, 4294901760
        %3966 = vmatmul.f32.gmra.mxu0 %v3965
        %v3967 = vpop.f32.mrf.mxu0
        %v3968 = vadd.f32 %v3943, %v3967
        %3969 = vdwg.mxu0
        %3970 = vmatpush.msra.mxu0 0.0
        %3971 = vmatpush.msra.mxu0 0.0
        %3972 = vmatpush.msra.mxu0 0.0
        %3973 = vmatpush.msra.mxu0 0.0
        %3974 = vmatpush.msra.mxu0 0.0
        %3975 = vmatpush.msra.mxu0 0.0
        %3976 = vmatpush.msra.mxu0 0.0
        %3977 = vmatpush.msra.mxu0 0.0
        %3978 = vmatpush.msra.mxu0 0.0
        %3979 = vmatpush.msra.mxu0 0.0
        %3980 = vmatpush.msra.mxu0 0.0
        %3981 = vmatpush.msra.mxu0 0.0
        %3982 = vmatpush.msra.mxu0 0.0
        %3983 = vmatpush.msra.mxu0 0.0
        %v3984 = vand.u32 %v3856, 4294901760
        %v3985 = vsub.f32 %v3856, %v3984
        %v3986 = vand.u32 %v3985, 4294901760
        %3987 = vmatpush.msra.mxu0 %v3986
        %v3988 = vand.u32 %v3854, 4294901760
        %v3989 = vsub.f32 %v3854, %v3988
        %v3990 = vand.u32 %v3989, 4294901760
        %3991 = vmatpush.msra.mxu0 %v3990
        %v3992 = vand.u32 %v3859, 4294901760
        %3993 = vmatmul.f32.gmra.mxu0 %v3992
        %v3994 = vpop.f32.mrf.mxu0
        %v3995 = vadd.f32 %v3968, %v3994
        %3996 = vdwg.mxu0
        %3997 = vmatpush.msra.mxu0 0.0
        %3998 = vmatpush.msra.mxu0 0.0
        %3999 = vmatpush.msra.mxu0 0.0
        %4000 = vmatpush.msra.mxu0 0.0
        %4001 = vmatpush.msra.mxu0 0.0
        %4002 = vmatpush.msra.mxu0 0.0
        %4003 = vmatpush.msra.mxu0 0.0
        %4004 = vmatpush.msra.mxu0 0.0
        %4005 = vmatpush.msra.mxu0 0.0
        %4006 = vmatpush.msra.mxu0 0.0
        %4007 = vmatpush.msra.mxu0 0.0
        %4008 = vmatpush.msra.mxu0 0.0
        %4009 = vmatpush.msra.mxu0 0.0
        %4010 = vmatpush.msra.mxu0 0.0
        %v4011 = vand.u32 %v3856, 4294901760
        %4012 = vmatpush.msra.mxu0 %v4011
        %v4013 = vand.u32 %v3854, 4294901760
        %4014 = vmatpush.msra.mxu0 %v4013
        %v4015 = vand.u32 %v3859, 4294901760
        %4016 = vmatmul.f32.gmra.mxu0 %v4015
        %v4017 = vpop.f32.mrf.mxu0
        %v4018 = vadd.f32 %v3995, %v4017
        %4019 = vdwg.mxu0
        %4020 = vrot.lane.b32.xlu0 %v2114, 120
        %v4021 = vpop.permute.xlu0 %4020
        %4022 = vrot.lane.b32.xlu0 %v2115, 120
        %v4023 = vpop.permute.xlu0 %4022
        %4024 = vrot.lane.b32.xlu0 %v2116, 120
        %v4025 = vpop.permute.xlu0 %4024
        %4026 = vrot.lane.b32.xlu0 %v2117, 120
        %v4027 = vpop.permute.xlu0 %4026
        %4028 = vrot.lane.b32.xlu0 %v2118, 120
        %v4029 = vpop.permute.xlu0 %4028
        %4030 = vrot.lane.b32.xlu0 %v2119, 120
        %v4031 = vpop.permute.xlu0 %4030
        %4032 = vrot.lane.b32.xlu0 %v2120, 120
        %v4033 = vpop.permute.xlu0 %4032
        %4034 = vrot.lane.b32.xlu0 %v2121, 120
        %v4035 = vpop.permute.xlu0 %4034
        %4036 = vrot.lane.b32.xlu0 %v2122, 120
        %v4037 = vpop.permute.xlu0 %4036
        %4038 = vrot.lane.b32.xlu0 %v2123, 120
        %v4039 = vpop.permute.xlu0 %4038
        %4040 = vrot.lane.b32.xlu0 %v2124, 120
        %v4041 = vpop.permute.xlu0 %4040
        %4042 = vrot.lane.b32.xlu0 %v2125, 120
        %v4043 = vpop.permute.xlu0 %4042
        %4044 = vrot.lane.b32.xlu0 %v2126, 120
        %v4045 = vpop.permute.xlu0 %4044
        %4046 = vrot.lane.b32.xlu0 %v2127, 120
        %v4047 = vpop.permute.xlu0 %4046
        %4048 = vrot.lane.b32.xlu0 %v2128, 120
        %v4049 = vpop.permute.xlu0 %4048
        %4050 = vrot.lane.b32.xlu0 %v2129, 120
        %v4051 = vpop.permute.xlu0 %4050
        %v4068 = vsel %vm2840, %v4021, 0.0
        %4069 = vadd.xlane.f32.xlu0 %v4068
        %v4070 = vpop.xlane.xlu0 %4069
        %v4071 = vsel %vm2840, %v4023, 0.0
        %4072 = vadd.xlane.f32.xlu0 %v4071
        %v4073 = vpop.xlane.xlu0 %4072
        %v4074 = vsel %vm2840, %v4025, 0.0
        %4075 = vadd.xlane.f32.xlu0 %v4074
        %v4076 = vpop.xlane.xlu0 %4075
        %v4077 = vsel %vm2840, %v4027, 0.0
        %4078 = vadd.xlane.f32.xlu0 %v4077
        %v4079 = vpop.xlane.xlu0 %4078
        %v4080 = vsel %vm2840, %v4029, 0.0
        %4081 = vadd.xlane.f32.xlu0 %v4080
        %v4082 = vpop.xlane.xlu0 %4081
        %v4083 = vsel %vm2840, %v4031, 0.0
        %4084 = vadd.xlane.f32.xlu0 %v4083
        %v4085 = vpop.xlane.xlu0 %4084
        %v4086 = vsel %vm2840, %v4033, 0.0
        %4087 = vadd.xlane.f32.xlu0 %v4086
        %v4088 = vpop.xlane.xlu0 %4087
        %v4089 = vsel %vm2840, %v4035, 0.0
        %4090 = vadd.xlane.f32.xlu0 %v4089
        %v4091 = vpop.xlane.xlu0 %4090
        %v4092 = vsel %vm2840, %v4037, 0.0
        %4093 = vadd.xlane.f32.xlu0 %v4092
        %v4094 = vpop.xlane.xlu0 %4093
        %v4095 = vsel %vm2840, %v4039, 0.0
        %4096 = vadd.xlane.f32.xlu0 %v4095
        %v4097 = vpop.xlane.xlu0 %4096
        %v4098 = vsel %vm2840, %v4041, 0.0
        %4099 = vadd.xlane.f32.xlu0 %v4098
        %v4100 = vpop.xlane.xlu0 %4099
        %v4101 = vsel %vm2840, %v4043, 0.0
        %4102 = vadd.xlane.f32.xlu0 %v4101
        %v4103 = vpop.xlane.xlu0 %4102
        %v4104 = vsel %vm2840, %v4045, 0.0
        %4105 = vadd.xlane.f32.xlu0 %v4104
        %v4106 = vpop.xlane.xlu0 %4105
        %v4107 = vsel %vm2840, %v4047, 0.0
        %4108 = vadd.xlane.f32.xlu0 %v4107
        %v4109 = vpop.xlane.xlu0 %4108
        %v4110 = vsel %vm2840, %v4049, 0.0
        %4111 = vadd.xlane.f32.xlu0 %v4110
        %v4112 = vpop.xlane.xlu0 %4111
        %v4113 = vsel %vm2840, %v4051, 0.0
        %4114 = vadd.xlane.f32.xlu0 %v4113
        %v4115 = vpop.xlane.xlu0 %4114
        %v4132 = vperm.slane %v4070, %v2906
        %v4133 = vperm.slane %v4073, %v2908
        %v4134 = vsel %vm2910, %v4133, %v4132
        %v4135 = vperm.slane %v4076, %v2906
        %v4136 = vperm.slane %v4079, %v2908
        %v4137 = vsel %vm2910, %v4136, %v4135
        %v4138 = vperm.slane %v4082, %v2906
        %v4139 = vperm.slane %v4085, %v2908
        %v4140 = vsel %vm2910, %v4139, %v4138
        %v4141 = vperm.slane %v4088, %v2906
        %v4142 = vperm.slane %v4091, %v2908
        %v4143 = vsel %vm2910, %v4142, %v4141
        %v4144 = vperm.slane %v4094, %v2906
        %v4145 = vperm.slane %v4097, %v2908
        %v4146 = vsel %vm2910, %v4145, %v4144
        %v4147 = vperm.slane %v4100, %v2906
        %v4148 = vperm.slane %v4103, %v2908
        %v4149 = vsel %vm2910, %v4148, %v4147
        %v4150 = vperm.slane %v4106, %v2906
        %v4151 = vperm.slane %v4109, %v2908
        %v4152 = vsel %vm2910, %v4151, %v4150
        %v4153 = vperm.slane %v4112, %v2906
        %v4154 = vperm.slane %v4115, %v2908
        %v4155 = vsel %vm2910, %v4154, %v4153
        %v4156 = vsel %vm2933, %v4137, %v4134
        %v4157 = vsel %vm2935, %v4140, %v4156
        %v4158 = vsel %vm2937, %v4143, %v4157
        %v4159 = vsel %vm2939, %v4146, %v4158
        %v4160 = vsel %vm2941, %v4149, %v4159
        %v4161 = vsel %vm2943, %v4152, %v4160
        %v4162 = vsel %vm2945, %v4155, %v4161
        %v4164 = vsel %vm779, %v4162, -inf
        %4165 = vmax.xlane.f32.xlu0 %v4164
        %v4166 = vpop.xlane.xlu0 %4165
        %v4168 = vperm.slane %v4166, 0
        %v4169 = vperm.slane %v4166, 1
        %v4170 = vperm.slane %v4166, 2
        %v4171 = vperm.slane %v4166, 3
        %v4172 = vperm.slane %v4166, 4
        %v4173 = vperm.slane %v4166, 5
        %v4174 = vperm.slane %v4166, 6
        %v4175 = vperm.slane %v4166, 7
        %v4184 = vsub.f32 %v4070, %v4168
        %v4185 = vsub.f32 %v4073, %v4168
        %v4186 = vsub.f32 %v4076, %v4169
        %v4187 = vsub.f32 %v4079, %v4169
        %v4188 = vsub.f32 %v4082, %v4170
        %v4189 = vsub.f32 %v4085, %v4170
        %v4190 = vsub.f32 %v4088, %v4171
        %v4191 = vsub.f32 %v4091, %v4171
        %v4192 = vsub.f32 %v4094, %v4172
        %v4193 = vsub.f32 %v4097, %v4172
        %v4194 = vsub.f32 %v4100, %v4173
        %v4195 = vsub.f32 %v4103, %v4173
        %v4196 = vsub.f32 %v4106, %v4174
        %v4197 = vsub.f32 %v4109, %v4174
        %v4198 = vsub.f32 %v4112, %v4175
        %v4199 = vsub.f32 %v4115, %v4175
        %v4200 = vmul.f32 %v4184, 1.442695
        %v4201 = vpow.pop %v4200
        %v4202 = vmul.f32 %v4185, 1.442695
        %v4203 = vpow.pop %v4202
        %v4204 = vmul.f32 %v4186, 1.442695
        %v4205 = vpow.pop %v4204
        %v4206 = vmul.f32 %v4187, 1.442695
        %v4207 = vpow.pop %v4206
        %v4208 = vmul.f32 %v4188, 1.442695
        %v4209 = vpow.pop %v4208
        %v4210 = vmul.f32 %v4189, 1.442695
        %v4211 = vpow.pop %v4210
        %v4212 = vmul.f32 %v4190, 1.442695
        %v4213 = vpow.pop %v4212
        %v4214 = vmul.f32 %v4191, 1.442695
        %v4215 = vpow.pop %v4214
        %v4216 = vmul.f32 %v4192, 1.442695
        %v4217 = vpow.pop %v4216
        %v4218 = vmul.f32 %v4193, 1.442695
        %v4219 = vpow.pop %v4218
        %v4220 = vmul.f32 %v4194, 1.442695
        %v4221 = vpow.pop %v4220
        %v4222 = vmul.f32 %v4195, 1.442695
        %v4223 = vpow.pop %v4222
        %v4224 = vmul.f32 %v4196, 1.442695
        %v4225 = vpow.pop %v4224
        %v4226 = vmul.f32 %v4197, 1.442695
        %v4227 = vpow.pop %v4226
        %v4228 = vmul.f32 %v4198, 1.442695
        %v4229 = vpow.pop %v4228
        %v4230 = vmul.f32 %v4199, 1.442695
        %v4231 = vpow.pop %v4230
        %4248 = vset.pattern.permute.xlu0 0
        %4249 = vperm.xlu0 %4248, %v4201
        %v4250 = vpop.permute.xlu0 %4249
        %4251 = vset.pattern.permute.xlu0 0
        %4252 = vperm.xlu0 %4251, %v4203
        %v4253 = vpop.permute.xlu0 %4252
        %4254 = vset.pattern.permute.xlu0 0
        %4255 = vperm.xlu0 %4254, %v4205
        %v4256 = vpop.permute.xlu0 %4255
        %4257 = vset.pattern.permute.xlu0 0
        %4258 = vperm.xlu0 %4257, %v4207
        %v4259 = vpop.permute.xlu0 %4258
        %4260 = vset.pattern.permute.xlu0 0
        %4261 = vperm.xlu0 %4260, %v4209
        %v4262 = vpop.permute.xlu0 %4261
        %4263 = vset.pattern.permute.xlu0 0
        %4264 = vperm.xlu0 %4263, %v4211
        %v4265 = vpop.permute.xlu0 %4264
        %4266 = vset.pattern.permute.xlu0 0
        %4267 = vperm.xlu0 %4266, %v4213
        %v4268 = vpop.permute.xlu0 %4267
        %4269 = vset.pattern.permute.xlu0 0
        %4270 = vperm.xlu0 %4269, %v4215
        %v4271 = vpop.permute.xlu0 %4270
        %4272 = vset.pattern.permute.xlu0 0
        %4273 = vperm.xlu0 %4272, %v4217
        %v4274 = vpop.permute.xlu0 %4273
        %4275 = vset.pattern.permute.xlu0 0
        %4276 = vperm.xlu0 %4275, %v4219
        %v4277 = vpop.permute.xlu0 %4276
        %4278 = vset.pattern.permute.xlu0 0
        %4279 = vperm.xlu0 %4278, %v4221
        %v4280 = vpop.permute.xlu0 %4279
        %4281 = vset.pattern.permute.xlu0 0
        %4282 = vperm.xlu0 %4281, %v4223
        %v4283 = vpop.permute.xlu0 %4282
        %4284 = vset.pattern.permute.xlu0 0
        %4285 = vperm.xlu0 %4284, %v4225
        %v4286 = vpop.permute.xlu0 %4285
        %4287 = vset.pattern.permute.xlu0 0
        %4288 = vperm.xlu0 %4287, %v4227
        %v4289 = vpop.permute.xlu0 %4288
        %4290 = vset.pattern.permute.xlu0 0
        %4291 = vperm.xlu0 %4290, %v4229
        %v4292 = vpop.permute.xlu0 %4291
        %4293 = vset.pattern.permute.xlu0 0
        %4294 = vperm.xlu0 %4293, %v4231
        %v4295 = vpop.permute.xlu0 %4294
        %v4296 = vperm.slane %v4250, %v2906
        %v4297 = vperm.slane %v4253, %v2908
        %v4298 = vsel %vm2910, %v4297, %v4296
        %v4299 = vperm.slane %v4256, %v2906
        %v4300 = vperm.slane %v4259, %v2908
        %v4301 = vsel %vm2910, %v4300, %v4299
        %v4302 = vperm.slane %v4262, %v2906
        %v4303 = vperm.slane %v4265, %v2908
        %v4304 = vsel %vm2910, %v4303, %v4302
        %v4305 = vperm.slane %v4268, %v2906
        %v4306 = vperm.slane %v4271, %v2908
        %v4307 = vsel %vm2910, %v4306, %v4305
        %v4308 = vperm.slane %v4274, %v2906
        %v4309 = vperm.slane %v4277, %v2908
        %v4310 = vsel %vm2910, %v4309, %v4308
        %v4311 = vperm.slane %v4280, %v2906
        %v4312 = vperm.slane %v4283, %v2908
        %v4313 = vsel %vm2910, %v4312, %v4311
        %v4314 = vperm.slane %v4286, %v2906
        %v4315 = vperm.slane %v4289, %v2908
        %v4316 = vsel %vm2910, %v4315, %v4314
        %v4317 = vperm.slane %v4292, %v2906
        %v4318 = vperm.slane %v4295, %v2908
        %v4319 = vsel %vm2910, %v4318, %v4317
        %v4320 = vsel %vm2933, %v4301, %v4298
        %v4321 = vsel %vm2935, %v4304, %v4320
        %v4322 = vsel %vm2937, %v4307, %v4321
        %v4323 = vsel %vm2939, %v4310, %v4322
        %v4324 = vsel %vm2941, %v4313, %v4323
        %v4325 = vsel %vm2943, %v4316, %v4324
        %v4326 = vsel %vm2945, %v4319, %v4325
        %v4328 = vsel %vm779, %v4326, 0.0
        %4329 = vadd.xlane.f32.xlu0 %v4328
        %v4330 = vpop.xlane.xlu0 %4329
        %v4331 = vrcp.pop %v4330
        %v4333 = vperm.slane %v4331, 0
        %v4334 = vperm.slane %v4331, 1
        %v4335 = vperm.slane %v4331, 2
        %v4336 = vperm.slane %v4331, 3
        %v4337 = vperm.slane %v4331, 4
        %v4338 = vperm.slane %v4331, 5
        %v4339 = vperm.slane %v4331, 6
        %v4340 = vperm.slane %v4331, 7
        %v4349 = vmul.f32 %v4201, %v4333
        %v4350 = vmul.f32 %v4203, %v4333
        %v4351 = vmul.f32 %v4205, %v4334
        %v4352 = vmul.f32 %v4207, %v4334
        %v4353 = vmul.f32 %v4209, %v4335
        %v4354 = vmul.f32 %v4211, %v4335
        %v4355 = vmul.f32 %v4213, %v4336
        %v4356 = vmul.f32 %v4215, %v4336
        %v4357 = vmul.f32 %v4217, %v4337
        %v4358 = vmul.f32 %v4219, %v4337
        %v4359 = vmul.f32 %v4221, %v4338
        %v4360 = vmul.f32 %v4223, %v4338
        %v4361 = vmul.f32 %v4225, %v4339
        %v4362 = vmul.f32 %v4227, %v4339
        %v4363 = vmul.f32 %v4229, %v4340
        %v4364 = vmul.f32 %v4231, %v4340
        %4381 = vset.pattern.permute.xlu0 0
        %4382 = vperm.xlu0 %4381, %v4349
        %v4383 = vpop.permute.xlu0 %4382
        %4384 = vset.pattern.permute.xlu0 0
        %4385 = vperm.xlu0 %4384, %v4350
        %v4386 = vpop.permute.xlu0 %4385
        %4387 = vset.pattern.permute.xlu0 0
        %4388 = vperm.xlu0 %4387, %v4351
        %v4389 = vpop.permute.xlu0 %4388
        %4390 = vset.pattern.permute.xlu0 0
        %4391 = vperm.xlu0 %4390, %v4352
        %v4392 = vpop.permute.xlu0 %4391
        %4393 = vset.pattern.permute.xlu0 0
        %4394 = vperm.xlu0 %4393, %v4353
        %v4395 = vpop.permute.xlu0 %4394
        %4396 = vset.pattern.permute.xlu0 0
        %4397 = vperm.xlu0 %4396, %v4354
        %v4398 = vpop.permute.xlu0 %4397
        %4399 = vset.pattern.permute.xlu0 0
        %4400 = vperm.xlu0 %4399, %v4355
        %v4401 = vpop.permute.xlu0 %4400
        %4402 = vset.pattern.permute.xlu0 0
        %4403 = vperm.xlu0 %4402, %v4356
        %v4404 = vpop.permute.xlu0 %4403
        %4405 = vset.pattern.permute.xlu0 0
        %4406 = vperm.xlu0 %4405, %v4357
        %v4407 = vpop.permute.xlu0 %4406
        %4408 = vset.pattern.permute.xlu0 0
        %4409 = vperm.xlu0 %4408, %v4358
        %v4410 = vpop.permute.xlu0 %4409
        %4411 = vset.pattern.permute.xlu0 0
        %4412 = vperm.xlu0 %4411, %v4359
        %v4413 = vpop.permute.xlu0 %4412
        %4414 = vset.pattern.permute.xlu0 0
        %4415 = vperm.xlu0 %4414, %v4360
        %v4416 = vpop.permute.xlu0 %4415
        %4417 = vset.pattern.permute.xlu0 0
        %4418 = vperm.xlu0 %4417, %v4361
        %v4419 = vpop.permute.xlu0 %4418
        %4420 = vset.pattern.permute.xlu0 0
        %4421 = vperm.xlu0 %4420, %v4362
        %v4422 = vpop.permute.xlu0 %4421
        %4423 = vset.pattern.permute.xlu0 0
        %4424 = vperm.xlu0 %4423, %v4363
        %v4425 = vpop.permute.xlu0 %4424
        %4426 = vset.pattern.permute.xlu0 0
        %4427 = vperm.xlu0 %4426, %v4364
        %v4428 = vpop.permute.xlu0 %4427
        %v4429 = vperm.slane %v4383, %v2906
        %v4430 = vperm.slane %v4386, %v2908
        %v4431 = vsel %vm2910, %v4430, %v4429
        %v4432 = vperm.slane %v4389, %v2906
        %v4433 = vperm.slane %v4392, %v2908
        %v4434 = vsel %vm2910, %v4433, %v4432
        %v4435 = vperm.slane %v4395, %v2906
        %v4436 = vperm.slane %v4398, %v2908
        %v4437 = vsel %vm2910, %v4436, %v4435
        %v4438 = vperm.slane %v4401, %v2906
        %v4439 = vperm.slane %v4404, %v2908
        %v4440 = vsel %vm2910, %v4439, %v4438
        %v4441 = vperm.slane %v4407, %v2906
        %v4442 = vperm.slane %v4410, %v2908
        %v4443 = vsel %vm2910, %v4442, %v4441
        %v4444 = vperm.slane %v4413, %v2906
        %v4445 = vperm.slane %v4416, %v2908
        %v4446 = vsel %vm2910, %v4445, %v4444
        %v4447 = vperm.slane %v4419, %v2906
        %v4448 = vperm.slane %v4422, %v2908
        %v4449 = vsel %vm2910, %v4448, %v4447
        %v4450 = vperm.slane %v4425, %v2906
        %v4451 = vperm.slane %v4428, %v2908
        %v4452 = vsel %vm2910, %v4451, %v4450
        %v4453 = vsel %vm2933, %v4434, %v4431
        %v4454 = vsel %vm2935, %v4437, %v4453
        %v4455 = vsel %vm2937, %v4440, %v4454
        %v4456 = vsel %vm2939, %v4443, %v4455
        %v4457 = vsel %vm2941, %v4446, %v4456
        %v4458 = vsel %vm2943, %v4449, %v4457
        %v4459 = vsel %vm2945, %v4452, %v4458
        %4460 = vrot.lane.b32.xlu0 %v986, 104
        %v4461 = vpop.permute.xlu0 %4460
        %4462 = vrot.lane.b32.xlu0 %v987, 104
        %v4463 = vpop.permute.xlu0 %4462
        %v4466 = vsel %vm779, %v4459, 0
        %4468 = vmatpush.msra.mxu0 0.0
        %4469 = vmatpush.msra.mxu0 0.0
        %4470 = vmatpush.msra.mxu0 0.0
        %4471 = vmatpush.msra.mxu0 0.0
        %4472 = vmatpush.msra.mxu0 0.0
        %4473 = vmatpush.msra.mxu0 0.0
        %4474 = vmatpush.msra.mxu0 0.0
        %4475 = vmatpush.msra.mxu0 0.0
        %4476 = vmatpush.msra.mxu0 0.0
        %4477 = vmatpush.msra.mxu0 0.0
        %4478 = vmatpush.msra.mxu0 0.0
        %4479 = vmatpush.msra.mxu0 0.0
        %4480 = vmatpush.msra.mxu0 0.0
        %4481 = vmatpush.msra.mxu0 0.0
        %v4482 = vand.u32 %v4463, 4294901760
        %4483 = vmatpush.msra.mxu0 %v4482
        %v4484 = vand.u32 %v4461, 4294901760
        %4485 = vmatpush.msra.mxu0 %v4484
        %v4486 = vand.u32 %v4466, 4294901760
        %v4487 = vsub.f32 %v4466, %v4486
        %v4488 = vand.u32 %v4487, 4294901760
        %v4489 = vsub.f32 %v4487, %v4488
        %v4490 = vand.u32 %v4489, 4294901760
        %4491 = vmatmul.f32.gmra.mxu0 %v4490
        %v4492 = vpop.f32.mrf.mxu0
        %v4493 = vadd.f32 0.0, %v4492
        %4494 = vdwg.mxu0
        %4495 = vmatpush.msra.mxu0 0.0
        %4496 = vmatpush.msra.mxu0 0.0
        %4497 = vmatpush.msra.mxu0 0.0
        %4498 = vmatpush.msra.mxu0 0.0
        %4499 = vmatpush.msra.mxu0 0.0
        %4500 = vmatpush.msra.mxu0 0.0
        %4501 = vmatpush.msra.mxu0 0.0
        %4502 = vmatpush.msra.mxu0 0.0
        %4503 = vmatpush.msra.mxu0 0.0
        %4504 = vmatpush.msra.mxu0 0.0
        %4505 = vmatpush.msra.mxu0 0.0
        %4506 = vmatpush.msra.mxu0 0.0
        %4507 = vmatpush.msra.mxu0 0.0
        %4508 = vmatpush.msra.mxu0 0.0
        %v4509 = vand.u32 %v4463, 4294901760
        %v4510 = vsub.f32 %v4463, %v4509
        %v4511 = vand.u32 %v4510, 4294901760
        %v4512 = vsub.f32 %v4510, %v4511
        %v4513 = vand.u32 %v4512, 4294901760
        %4514 = vmatpush.msra.mxu0 %v4513
        %v4515 = vand.u32 %v4461, 4294901760
        %v4516 = vsub.f32 %v4461, %v4515
        %v4517 = vand.u32 %v4516, 4294901760
        %v4518 = vsub.f32 %v4516, %v4517
        %v4519 = vand.u32 %v4518, 4294901760
        %4520 = vmatpush.msra.mxu0 %v4519
        %v4521 = vand.u32 %v4466, 4294901760
        %4522 = vmatmul.f32.gmra.mxu0 %v4521
        %v4523 = vpop.f32.mrf.mxu0
        %v4524 = vadd.f32 %v4493, %v4523
        %4525 = vdwg.mxu0
        %4526 = vmatpush.msra.mxu0 0.0
        %4527 = vmatpush.msra.mxu0 0.0
        %4528 = vmatpush.msra.mxu0 0.0
        %4529 = vmatpush.msra.mxu0 0.0
        %4530 = vmatpush.msra.mxu0 0.0
        %4531 = vmatpush.msra.mxu0 0.0
        %4532 = vmatpush.msra.mxu0 0.0
        %4533 = vmatpush.msra.mxu0 0.0
        %4534 = vmatpush.msra.mxu0 0.0
        %4535 = vmatpush.msra.mxu0 0.0
        %4536 = vmatpush.msra.mxu0 0.0
        %4537 = vmatpush.msra.mxu0 0.0
        %4538 = vmatpush.msra.mxu0 0.0
        %4539 = vmatpush.msra.mxu0 0.0
        %v4540 = vand.u32 %v4463, 4294901760
        %v4541 = vsub.f32 %v4463, %v4540
        %4542 = vmatpush.msra.mxu0 %v4541
        %v4543 = vand.u32 %v4461, 4294901760
        %v4544 = vsub.f32 %v4461, %v4543
        %4545 = vmatpush.msra.mxu0 %v4544
        %v4546 = vand.u32 %v4466, 4294901760
        %v4547 = vsub.f32 %v4466, %v4546
        %4548 = vmatmul.f32.gmra.mxu0 %v4547
        %v4549 = vpop.f32.mrf.mxu0
        %v4550 = vadd.f32 %v4524, %v4549
        %4551 = vdwg.mxu0
        %4552 = vmatpush.msra.mxu0 0.0
        %4553 = vmatpush.msra.mxu0 0.0
        %4554 = vmatpush.msra.mxu0 0.0
        %4555 = vmatpush.msra.mxu0 0.0
        %4556 = vmatpush.msra.mxu0 0.0
        %4557 = vmatpush.msra.mxu0 0.0
        %4558 = vmatpush.msra.mxu0 0.0
        %4559 = vmatpush.msra.mxu0 0.0
        %4560 = vmatpush.msra.mxu0 0.0
        %4561 = vmatpush.msra.mxu0 0.0
        %4562 = vmatpush.msra.mxu0 0.0
        %4563 = vmatpush.msra.mxu0 0.0
        %4564 = vmatpush.msra.mxu0 0.0
        %4565 = vmatpush.msra.mxu0 0.0
        %v4566 = vand.u32 %v4463, 4294901760
        %4567 = vmatpush.msra.mxu0 %v4566
        %v4568 = vand.u32 %v4461, 4294901760
        %4569 = vmatpush.msra.mxu0 %v4568
        %v4570 = vand.u32 %v4466, 4294901760
        %v4571 = vsub.f32 %v4466, %v4570
        %v4572 = vand.u32 %v4571, 4294901760
        %4573 = vmatmul.f32.gmra.mxu0 %v4572
        %v4574 = vpop.f32.mrf.mxu0
        %v4575 = vadd.f32 %v4550, %v4574
        %4576 = vdwg.mxu0
        %4577 = vmatpush.msra.mxu0 0.0
        %4578 = vmatpush.msra.mxu0 0.0
        %4579 = vmatpush.msra.mxu0 0.0
        %4580 = vmatpush.msra.mxu0 0.0
        %4581 = vmatpush.msra.mxu0 0.0
        %4582 = vmatpush.msra.mxu0 0.0
        %4583 = vmatpush.msra.mxu0 0.0
        %4584 = vmatpush.msra.mxu0 0.0
        %4585 = vmatpush.msra.mxu0 0.0
        %4586 = vmatpush.msra.mxu0 0.0
        %4587 = vmatpush.msra.mxu0 0.0
        %4588 = vmatpush.msra.mxu0 0.0
        %4589 = vmatpush.msra.mxu0 0.0
        %4590 = vmatpush.msra.mxu0 0.0
        %v4591 = vand.u32 %v4463, 4294901760
        %v4592 = vsub.f32 %v4463, %v4591
        %v4593 = vand.u32 %v4592, 4294901760
        %4594 = vmatpush.msra.mxu0 %v4593
        %v4595 = vand.u32 %v4461, 4294901760
        %v4596 = vsub.f32 %v4461, %v4595
        %v4597 = vand.u32 %v4596, 4294901760
        %4598 = vmatpush.msra.mxu0 %v4597
        %v4599 = vand.u32 %v4466, 4294901760
        %4600 = vmatmul.f32.gmra.mxu0 %v4599
        %v4601 = vpop.f32.mrf.mxu0
        %v4602 = vadd.f32 %v4575, %v4601
        %4603 = vdwg.mxu0
        %4604 = vmatpush.msra.mxu0 0.0
        %4605 = vmatpush.msra.mxu0 0.0
        %4606 = vmatpush.msra.mxu0 0.0
        %4607 = vmatpush.msra.mxu0 0.0
        %4608 = vmatpush.msra.mxu0 0.0
        %4609 = vmatpush.msra.mxu0 0.0
        %4610 = vmatpush.msra.mxu0 0.0
        %4611 = vmatpush.msra.mxu0 0.0
        %4612 = vmatpush.msra.mxu0 0.0
        %4613 = vmatpush.msra.mxu0 0.0
        %4614 = vmatpush.msra.mxu0 0.0
        %4615 = vmatpush.msra.mxu0 0.0
        %4616 = vmatpush.msra.mxu0 0.0
        %4617 = vmatpush.msra.mxu0 0.0
        %v4618 = vand.u32 %v4463, 4294901760
        %4619 = vmatpush.msra.mxu0 %v4618
        %v4620 = vand.u32 %v4461, 4294901760
        %4621 = vmatpush.msra.mxu0 %v4620
        %v4622 = vand.u32 %v4466, 4294901760
        %4623 = vmatmul.f32.gmra.mxu0 %v4622
        %v4624 = vpop.f32.mrf.mxu0
        %v4625 = vadd.f32 %v4602, %v4624
        %4626 = vdwg.mxu0
        %4627 = vrot.lane.b32.xlu0 %v2114, 116
        %v4628 = vpop.permute.xlu0 %4627
        %4629 = vrot.lane.b32.xlu0 %v2115, 116
        %v4630 = vpop.permute.xlu0 %4629
        %4631 = vrot.lane.b32.xlu0 %v2116, 116
        %v4632 = vpop.permute.xlu0 %4631
        %4633 = vrot.lane.b32.xlu0 %v2117, 116
        %v4634 = vpop.permute.xlu0 %4633
        %4635 = vrot.lane.b32.xlu0 %v2118, 116
        %v4636 = vpop.permute.xlu0 %4635
        %4637 = vrot.lane.b32.xlu0 %v2119, 116
        %v4638 = vpop.permute.xlu0 %4637
        %4639 = vrot.lane.b32.xlu0 %v2120, 116
        %v4640 = vpop.permute.xlu0 %4639
        %4641 = vrot.lane.b32.xlu0 %v2121, 116
        %v4642 = vpop.permute.xlu0 %4641
        %4643 = vrot.lane.b32.xlu0 %v2122, 116
        %v4644 = vpop.permute.xlu0 %4643
        %4645 = vrot.lane.b32.xlu0 %v2123, 116
        %v4646 = vpop.permute.xlu0 %4645
        %4647 = vrot.lane.b32.xlu0 %v2124, 116
        %v4648 = vpop.permute.xlu0 %4647
        %4649 = vrot.lane.b32.xlu0 %v2125, 116
        %v4650 = vpop.permute.xlu0 %4649
        %4651 = vrot.lane.b32.xlu0 %v2126, 116
        %v4652 = vpop.permute.xlu0 %4651
        %4653 = vrot.lane.b32.xlu0 %v2127, 116
        %v4654 = vpop.permute.xlu0 %4653
        %4655 = vrot.lane.b32.xlu0 %v2128, 116
        %v4656 = vpop.permute.xlu0 %4655
        %4657 = vrot.lane.b32.xlu0 %v2129, 116
        %v4658 = vpop.permute.xlu0 %4657
        %v4675 = vsel %vm2840, %v4628, 0.0
        %4676 = vadd.xlane.f32.xlu0 %v4675
        %v4677 = vpop.xlane.xlu0 %4676
        %v4678 = vsel %vm2840, %v4630, 0.0
        %4679 = vadd.xlane.f32.xlu0 %v4678
        %v4680 = vpop.xlane.xlu0 %4679
        %v4681 = vsel %vm2840, %v4632, 0.0
        %4682 = vadd.xlane.f32.xlu0 %v4681
        %v4683 = vpop.xlane.xlu0 %4682
        %v4684 = vsel %vm2840, %v4634, 0.0
        %4685 = vadd.xlane.f32.xlu0 %v4684
        %v4686 = vpop.xlane.xlu0 %4685
        %v4687 = vsel %vm2840, %v4636, 0.0
        %4688 = vadd.xlane.f32.xlu0 %v4687
        %v4689 = vpop.xlane.xlu0 %4688
        %v4690 = vsel %vm2840, %v4638, 0.0
        %4691 = vadd.xlane.f32.xlu0 %v4690
        %v4692 = vpop.xlane.xlu0 %4691
        %v4693 = vsel %vm2840, %v4640, 0.0
        %4694 = vadd.xlane.f32.xlu0 %v4693
        %v4695 = vpop.xlane.xlu0 %4694
        %v4696 = vsel %vm2840, %v4642, 0.0
        %4697 = vadd.xlane.f32.xlu0 %v4696
        %v4698 = vpop.xlane.xlu0 %4697
        %v4699 = vsel %vm2840, %v4644, 0.0
        %4700 = vadd.xlane.f32.xlu0 %v4699
        %v4701 = vpop.xlane.xlu0 %4700
        %v4702 = vsel %vm2840, %v4646, 0.0
        %4703 = vadd.xlane.f32.xlu0 %v4702
        %v4704 = vpop.xlane.xlu0 %4703
        %v4705 = vsel %vm2840, %v4648, 0.0
        %4706 = vadd.xlane.f32.xlu0 %v4705
        %v4707 = vpop.xlane.xlu0 %4706
        %v4708 = vsel %vm2840, %v4650, 0.0
        %4709 = vadd.xlane.f32.xlu0 %v4708
        %v4710 = vpop.xlane.xlu0 %4709
        %v4711 = vsel %vm2840, %v4652, 0.0
        %4712 = vadd.xlane.f32.xlu0 %v4711
        %v4713 = vpop.xlane.xlu0 %4712
        %v4714 = vsel %vm2840, %v4654, 0.0
        %4715 = vadd.xlane.f32.xlu0 %v4714
        %v4716 = vpop.xlane.xlu0 %4715
        %v4717 = vsel %vm2840, %v4656, 0.0
        %4718 = vadd.xlane.f32.xlu0 %v4717
        %v4719 = vpop.xlane.xlu0 %4718
        %v4720 = vsel %vm2840, %v4658, 0.0
        %4721 = vadd.xlane.f32.xlu0 %v4720
        %v4722 = vpop.xlane.xlu0 %4721
        %v4739 = vperm.slane %v4677, %v2906
        %v4740 = vperm.slane %v4680, %v2908
        %v4741 = vsel %vm2910, %v4740, %v4739
        %v4742 = vperm.slane %v4683, %v2906
        %v4743 = vperm.slane %v4686, %v2908
        %v4744 = vsel %vm2910, %v4743, %v4742
        %v4745 = vperm.slane %v4689, %v2906
        %v4746 = vperm.slane %v4692, %v2908
        %v4747 = vsel %vm2910, %v4746, %v4745
        %v4748 = vperm.slane %v4695, %v2906
        %v4749 = vperm.slane %v4698, %v2908
        %v4750 = vsel %vm2910, %v4749, %v4748
        %v4751 = vperm.slane %v4701, %v2906
        %v4752 = vperm.slane %v4704, %v2908
        %v4753 = vsel %vm2910, %v4752, %v4751
        %v4754 = vperm.slane %v4707, %v2906
        %v4755 = vperm.slane %v4710, %v2908
        %v4756 = vsel %vm2910, %v4755, %v4754
        %v4757 = vperm.slane %v4713, %v2906
        %v4758 = vperm.slane %v4716, %v2908
        %v4759 = vsel %vm2910, %v4758, %v4757
        %v4760 = vperm.slane %v4719, %v2906
        %v4761 = vperm.slane %v4722, %v2908
        %v4762 = vsel %vm2910, %v4761, %v4760
        %v4763 = vsel %vm2933, %v4744, %v4741
        %v4764 = vsel %vm2935, %v4747, %v4763
        %v4765 = vsel %vm2937, %v4750, %v4764
        %v4766 = vsel %vm2939, %v4753, %v4765
        %v4767 = vsel %vm2941, %v4756, %v4766
        %v4768 = vsel %vm2943, %v4759, %v4767
        %v4769 = vsel %vm2945, %v4762, %v4768
        %v4771 = vsel %vm779, %v4769, -inf
        %4772 = vmax.xlane.f32.xlu0 %v4771
        %v4773 = vpop.xlane.xlu0 %4772
        %v4775 = vperm.slane %v4773, 0
        %v4776 = vperm.slane %v4773, 1
        %v4777 = vperm.slane %v4773, 2
        %v4778 = vperm.slane %v4773, 3
        %v4779 = vperm.slane %v4773, 4
        %v4780 = vperm.slane %v4773, 5
        %v4781 = vperm.slane %v4773, 6
        %v4782 = vperm.slane %v4773, 7
        %v4791 = vsub.f32 %v4677, %v4775
        %v4792 = vsub.f32 %v4680, %v4775
        %v4793 = vsub.f32 %v4683, %v4776
        %v4794 = vsub.f32 %v4686, %v4776
        %v4795 = vsub.f32 %v4689, %v4777
        %v4796 = vsub.f32 %v4692, %v4777
        %v4797 = vsub.f32 %v4695, %v4778
        %v4798 = vsub.f32 %v4698, %v4778
        %v4799 = vsub.f32 %v4701, %v4779
        %v4800 = vsub.f32 %v4704, %v4779
        %v4801 = vsub.f32 %v4707, %v4780
        %v4802 = vsub.f32 %v4710, %v4780
        %v4803 = vsub.f32 %v4713, %v4781
        %v4804 = vsub.f32 %v4716, %v4781
        %v4805 = vsub.f32 %v4719, %v4782
        %v4806 = vsub.f32 %v4722, %v4782
        %v4807 = vmul.f32 %v4791, 1.442695
        %v4808 = vpow.pop %v4807
        %v4809 = vmul.f32 %v4792, 1.442695
        %v4810 = vpow.pop %v4809
        %v4811 = vmul.f32 %v4793, 1.442695
        %v4812 = vpow.pop %v4811
        %v4813 = vmul.f32 %v4794, 1.442695
        %v4814 = vpow.pop %v4813
        %v4815 = vmul.f32 %v4795, 1.442695
        %v4816 = vpow.pop %v4815
        %v4817 = vmul.f32 %v4796, 1.442695
        %v4818 = vpow.pop %v4817
        %v4819 = vmul.f32 %v4797, 1.442695
        %v4820 = vpow.pop %v4819
        %v4821 = vmul.f32 %v4798, 1.442695
        %v4822 = vpow.pop %v4821
        %v4823 = vmul.f32 %v4799, 1.442695
        %v4824 = vpow.pop %v4823
        %v4825 = vmul.f32 %v4800, 1.442695
        %v4826 = vpow.pop %v4825
        %v4827 = vmul.f32 %v4801, 1.442695
        %v4828 = vpow.pop %v4827
        %v4829 = vmul.f32 %v4802, 1.442695
        %v4830 = vpow.pop %v4829
        %v4831 = vmul.f32 %v4803, 1.442695
        %v4832 = vpow.pop %v4831
        %v4833 = vmul.f32 %v4804, 1.442695
        %v4834 = vpow.pop %v4833
        %v4835 = vmul.f32 %v4805, 1.442695
        %v4836 = vpow.pop %v4835
        %v4837 = vmul.f32 %v4806, 1.442695
        %v4838 = vpow.pop %v4837
        %4855 = vset.pattern.permute.xlu0 0
        %4856 = vperm.xlu0 %4855, %v4808
        %v4857 = vpop.permute.xlu0 %4856
        %4858 = vset.pattern.permute.xlu0 0
        %4859 = vperm.xlu0 %4858, %v4810
        %v4860 = vpop.permute.xlu0 %4859
        %4861 = vset.pattern.permute.xlu0 0
        %4862 = vperm.xlu0 %4861, %v4812
        %v4863 = vpop.permute.xlu0 %4862
        %4864 = vset.pattern.permute.xlu0 0
        %4865 = vperm.xlu0 %4864, %v4814
        %v4866 = vpop.permute.xlu0 %4865
        %4867 = vset.pattern.permute.xlu0 0
        %4868 = vperm.xlu0 %4867, %v4816
        %v4869 = vpop.permute.xlu0 %4868
        %4870 = vset.pattern.permute.xlu0 0
        %4871 = vperm.xlu0 %4870, %v4818
        %v4872 = vpop.permute.xlu0 %4871
        %4873 = vset.pattern.permute.xlu0 0
        %4874 = vperm.xlu0 %4873, %v4820
        %v4875 = vpop.permute.xlu0 %4874
        %4876 = vset.pattern.permute.xlu0 0
        %4877 = vperm.xlu0 %4876, %v4822
        %v4878 = vpop.permute.xlu0 %4877
        %4879 = vset.pattern.permute.xlu0 0
        %4880 = vperm.xlu0 %4879, %v4824
        %v4881 = vpop.permute.xlu0 %4880
        %4882 = vset.pattern.permute.xlu0 0
        %4883 = vperm.xlu0 %4882, %v4826
        %v4884 = vpop.permute.xlu0 %4883
        %4885 = vset.pattern.permute.xlu0 0
        %4886 = vperm.xlu0 %4885, %v4828
        %v4887 = vpop.permute.xlu0 %4886
        %4888 = vset.pattern.permute.xlu0 0
        %4889 = vperm.xlu0 %4888, %v4830
        %v4890 = vpop.permute.xlu0 %4889
        %4891 = vset.pattern.permute.xlu0 0
        %4892 = vperm.xlu0 %4891, %v4832
        %v4893 = vpop.permute.xlu0 %4892
        %4894 = vset.pattern.permute.xlu0 0
        %4895 = vperm.xlu0 %4894, %v4834
        %v4896 = vpop.permute.xlu0 %4895
        %4897 = vset.pattern.permute.xlu0 0
        %4898 = vperm.xlu0 %4897, %v4836
        %v4899 = vpop.permute.xlu0 %4898
        %4900 = vset.pattern.permute.xlu0 0
        %4901 = vperm.xlu0 %4900, %v4838
        %v4902 = vpop.permute.xlu0 %4901
        %v4903 = vperm.slane %v4857, %v2906
        %v4904 = vperm.slane %v4860, %v2908
        %v4905 = vsel %vm2910, %v4904, %v4903
        %v4906 = vperm.slane %v4863, %v2906
        %v4907 = vperm.slane %v4866, %v2908
        %v4908 = vsel %vm2910, %v4907, %v4906
        %v4909 = vperm.slane %v4869, %v2906
        %v4910 = vperm.slane %v4872, %v2908
        %v4911 = vsel %vm2910, %v4910, %v4909
        %v4912 = vperm.slane %v4875, %v2906
        %v4913 = vperm.slane %v4878, %v2908
        %v4914 = vsel %vm2910, %v4913, %v4912
        %v4915 = vperm.slane %v4881, %v2906
        %v4916 = vperm.slane %v4884, %v2908
        %v4917 = vsel %vm2910, %v4916, %v4915
        %v4918 = vperm.slane %v4887, %v2906
        %v4919 = vperm.slane %v4890, %v2908
        %v4920 = vsel %vm2910, %v4919, %v4918
        %v4921 = vperm.slane %v4893, %v2906
        %v4922 = vperm.slane %v4896, %v2908
        %v4923 = vsel %vm2910, %v4922, %v4921
        %v4924 = vperm.slane %v4899, %v2906
        %v4925 = vperm.slane %v4902, %v2908
        %v4926 = vsel %vm2910, %v4925, %v4924
        %v4927 = vsel %vm2933, %v4908, %v4905
        %v4928 = vsel %vm2935, %v4911, %v4927
        %v4929 = vsel %vm2937, %v4914, %v4928
        %v4930 = vsel %vm2939, %v4917, %v4929
        %v4931 = vsel %vm2941, %v4920, %v4930
        %v4932 = vsel %vm2943, %v4923, %v4931
        %v4933 = vsel %vm2945, %v4926, %v4932
        %v4935 = vsel %vm779, %v4933, 0.0
        %4936 = vadd.xlane.f32.xlu0 %v4935
        %v4937 = vpop.xlane.xlu0 %4936
        %v4938 = vrcp.pop %v4937
        %v4940 = vperm.slane %v4938, 0
        %v4941 = vperm.slane %v4938, 1
        %v4942 = vperm.slane %v4938, 2
        %v4943 = vperm.slane %v4938, 3
        %v4944 = vperm.slane %v4938, 4
        %v4945 = vperm.slane %v4938, 5
        %v4946 = vperm.slane %v4938, 6
        %v4947 = vperm.slane %v4938, 7
        %v4956 = vmul.f32 %v4808, %v4940
        %v4957 = vmul.f32 %v4810, %v4940
        %v4958 = vmul.f32 %v4812, %v4941
        %v4959 = vmul.f32 %v4814, %v4941
        %v4960 = vmul.f32 %v4816, %v4942
        %v4961 = vmul.f32 %v4818, %v4942
        %v4962 = vmul.f32 %v4820, %v4943
        %v4963 = vmul.f32 %v4822, %v4943
        %v4964 = vmul.f32 %v4824, %v4944
        %v4965 = vmul.f32 %v4826, %v4944
        %v4966 = vmul.f32 %v4828, %v4945
        %v4967 = vmul.f32 %v4830, %v4945
        %v4968 = vmul.f32 %v4832, %v4946
        %v4969 = vmul.f32 %v4834, %v4946
        %v4970 = vmul.f32 %v4836, %v4947
        %v4971 = vmul.f32 %v4838, %v4947
        %4988 = vset.pattern.permute.xlu0 0
        %4989 = vperm.xlu0 %4988, %v4956
        %v4990 = vpop.permute.xlu0 %4989
        %4991 = vset.pattern.permute.xlu0 0
        %4992 = vperm.xlu0 %4991, %v4957
        %v4993 = vpop.permute.xlu0 %4992
        %4994 = vset.pattern.permute.xlu0 0
        %4995 = vperm.xlu0 %4994, %v4958
        %v4996 = vpop.permute.xlu0 %4995
        %4997 = vset.pattern.permute.xlu0 0
        %4998 = vperm.xlu0 %4997, %v4959
        %v4999 = vpop.permute.xlu0 %4998
        %5000 = vset.pattern.permute.xlu0 0
        %5001 = vperm.xlu0 %5000, %v4960
        %v5002 = vpop.permute.xlu0 %5001
        %5003 = vset.pattern.permute.xlu0 0
        %5004 = vperm.xlu0 %5003, %v4961
        %v5005 = vpop.permute.xlu0 %5004
        %5006 = vset.pattern.permute.xlu0 0
        %5007 = vperm.xlu0 %5006, %v4962
        %v5008 = vpop.permute.xlu0 %5007
        %5009 = vset.pattern.permute.xlu0 0
        %5010 = vperm.xlu0 %5009, %v4963
        %v5011 = vpop.permute.xlu0 %5010
        %5012 = vset.pattern.permute.xlu0 0
        %5013 = vperm.xlu0 %5012, %v4964
        %v5014 = vpop.permute.xlu0 %5013
        %5015 = vset.pattern.permute.xlu0 0
        %5016 = vperm.xlu0 %5015, %v4965
        %v5017 = vpop.permute.xlu0 %5016
        %5018 = vset.pattern.permute.xlu0 0
        %5019 = vperm.xlu0 %5018, %v4966
        %v5020 = vpop.permute.xlu0 %5019
        %5021 = vset.pattern.permute.xlu0 0
        %5022 = vperm.xlu0 %5021, %v4967
        %v5023 = vpop.permute.xlu0 %5022
        %5024 = vset.pattern.permute.xlu0 0
        %5025 = vperm.xlu0 %5024, %v4968
        %v5026 = vpop.permute.xlu0 %5025
        %5027 = vset.pattern.permute.xlu0 0
        %5028 = vperm.xlu0 %5027, %v4969
        %v5029 = vpop.permute.xlu0 %5028
        %5030 = vset.pattern.permute.xlu0 0
        %5031 = vperm.xlu0 %5030, %v4970
        %v5032 = vpop.permute.xlu0 %5031
        %5033 = vset.pattern.permute.xlu0 0
        %5034 = vperm.xlu0 %5033, %v4971
        %v5035 = vpop.permute.xlu0 %5034
        %v5036 = vperm.slane %v4990, %v2906
        %v5037 = vperm.slane %v4993, %v2908
        %v5038 = vsel %vm2910, %v5037, %v5036
        %v5039 = vperm.slane %v4996, %v2906
        %v5040 = vperm.slane %v4999, %v2908
        %v5041 = vsel %vm2910, %v5040, %v5039
        %v5042 = vperm.slane %v5002, %v2906
        %v5043 = vperm.slane %v5005, %v2908
        %v5044 = vsel %vm2910, %v5043, %v5042
        %v5045 = vperm.slane %v5008, %v2906
        %v5046 = vperm.slane %v5011, %v2908
        %v5047 = vsel %vm2910, %v5046, %v5045
        %v5048 = vperm.slane %v5014, %v2906
        %v5049 = vperm.slane %v5017, %v2908
        %v5050 = vsel %vm2910, %v5049, %v5048
        %v5051 = vperm.slane %v5020, %v2906
        %v5052 = vperm.slane %v5023, %v2908
        %v5053 = vsel %vm2910, %v5052, %v5051
        %v5054 = vperm.slane %v5026, %v2906
        %v5055 = vperm.slane %v5029, %v2908
        %v5056 = vsel %vm2910, %v5055, %v5054
        %v5057 = vperm.slane %v5032, %v2906
        %v5058 = vperm.slane %v5035, %v2908
        %v5059 = vsel %vm2910, %v5058, %v5057
        %v5060 = vsel %vm2933, %v5041, %v5038
        %v5061 = vsel %vm2935, %v5044, %v5060
        %v5062 = vsel %vm2937, %v5047, %v5061
        %v5063 = vsel %vm2939, %v5050, %v5062
        %v5064 = vsel %vm2941, %v5053, %v5063
        %v5065 = vsel %vm2943, %v5056, %v5064
        %v5066 = vsel %vm2945, %v5059, %v5065
        %5067 = vrot.lane.b32.xlu0 %v986, 100
        %v5068 = vpop.permute.xlu0 %5067
        %5069 = vrot.lane.b32.xlu0 %v987, 100
        %v5070 = vpop.permute.xlu0 %5069
        %v5073 = vsel %vm779, %v5066, 0
        %5075 = vmatpush.msra.mxu0 0.0
        %5076 = vmatpush.msra.mxu0 0.0
        %5077 = vmatpush.msra.mxu0 0.0
        %5078 = vmatpush.msra.mxu0 0.0
        %5079 = vmatpush.msra.mxu0 0.0
        %5080 = vmatpush.msra.mxu0 0.0
        %5081 = vmatpush.msra.mxu0 0.0
        %5082 = vmatpush.msra.mxu0 0.0
        %5083 = vmatpush.msra.mxu0 0.0
        %5084 = vmatpush.msra.mxu0 0.0
        %5085 = vmatpush.msra.mxu0 0.0
        %5086 = vmatpush.msra.mxu0 0.0
        %5087 = vmatpush.msra.mxu0 0.0
        %5088 = vmatpush.msra.mxu0 0.0
        %v5089 = vand.u32 %v5070, 4294901760
        %5090 = vmatpush.msra.mxu0 %v5089
        %v5091 = vand.u32 %v5068, 4294901760
        %5092 = vmatpush.msra.mxu0 %v5091
        %v5093 = vand.u32 %v5073, 4294901760
        %v5094 = vsub.f32 %v5073, %v5093
        %v5095 = vand.u32 %v5094, 4294901760
        %v5096 = vsub.f32 %v5094, %v5095
        %v5097 = vand.u32 %v5096, 4294901760
        %5098 = vmatmul.f32.gmra.mxu0 %v5097
        %v5099 = vpop.f32.mrf.mxu0
        %v5100 = vadd.f32 0.0, %v5099
        %5101 = vdwg.mxu0
        %5102 = vmatpush.msra.mxu0 0.0
        %5103 = vmatpush.msra.mxu0 0.0
        %5104 = vmatpush.msra.mxu0 0.0
        %5105 = vmatpush.msra.mxu0 0.0
        %5106 = vmatpush.msra.mxu0 0.0
        %5107 = vmatpush.msra.mxu0 0.0
        %5108 = vmatpush.msra.mxu0 0.0
        %5109 = vmatpush.msra.mxu0 0.0
        %5110 = vmatpush.msra.mxu0 0.0
        %5111 = vmatpush.msra.mxu0 0.0
        %5112 = vmatpush.msra.mxu0 0.0
        %5113 = vmatpush.msra.mxu0 0.0
        %5114 = vmatpush.msra.mxu0 0.0
        %5115 = vmatpush.msra.mxu0 0.0
        %v5116 = vand.u32 %v5070, 4294901760
        %v5117 = vsub.f32 %v5070, %v5116
        %v5118 = vand.u32 %v5117, 4294901760
        %v5119 = vsub.f32 %v5117, %v5118
        %v5120 = vand.u32 %v5119, 4294901760
        %5121 = vmatpush.msra.mxu0 %v5120
        %v5122 = vand.u32 %v5068, 4294901760
        %v5123 = vsub.f32 %v5068, %v5122
        %v5124 = vand.u32 %v5123, 4294901760
        %v5125 = vsub.f32 %v5123, %v5124
        %v5126 = vand.u32 %v5125, 4294901760
        %5127 = vmatpush.msra.mxu0 %v5126
        %v5128 = vand.u32 %v5073, 4294901760
        %5129 = vmatmul.f32.gmra.mxu0 %v5128
        %v5130 = vpop.f32.mrf.mxu0
        %v5131 = vadd.f32 %v5100, %v5130
        %5132 = vdwg.mxu0
        %5133 = vmatpush.msra.mxu0 0.0
        %5134 = vmatpush.msra.mxu0 0.0
        %5135 = vmatpush.msra.mxu0 0.0
        %5136 = vmatpush.msra.mxu0 0.0
        %5137 = vmatpush.msra.mxu0 0.0
        %5138 = vmatpush.msra.mxu0 0.0
        %5139 = vmatpush.msra.mxu0 0.0
        %5140 = vmatpush.msra.mxu0 0.0
        %5141 = vmatpush.msra.mxu0 0.0
        %5142 = vmatpush.msra.mxu0 0.0
        %5143 = vmatpush.msra.mxu0 0.0
        %5144 = vmatpush.msra.mxu0 0.0
        %5145 = vmatpush.msra.mxu0 0.0
        %5146 = vmatpush.msra.mxu0 0.0
        %v5147 = vand.u32 %v5070, 4294901760
        %v5148 = vsub.f32 %v5070, %v5147
        %5149 = vmatpush.msra.mxu0 %v5148
        %v5150 = vand.u32 %v5068, 4294901760
        %v5151 = vsub.f32 %v5068, %v5150
        %5152 = vmatpush.msra.mxu0 %v5151
        %v5153 = vand.u32 %v5073, 4294901760
        %v5154 = vsub.f32 %v5073, %v5153
        %5155 = vmatmul.f32.gmra.mxu0 %v5154
        %v5156 = vpop.f32.mrf.mxu0
        %v5157 = vadd.f32 %v5131, %v5156
        %5158 = vdwg.mxu0
        %5159 = vmatpush.msra.mxu0 0.0
        %5160 = vmatpush.msra.mxu0 0.0
        %5161 = vmatpush.msra.mxu0 0.0
        %5162 = vmatpush.msra.mxu0 0.0
        %5163 = vmatpush.msra.mxu0 0.0
        %5164 = vmatpush.msra.mxu0 0.0
        %5165 = vmatpush.msra.mxu0 0.0
        %5166 = vmatpush.msra.mxu0 0.0
        %5167 = vmatpush.msra.mxu0 0.0
        %5168 = vmatpush.msra.mxu0 0.0
        %5169 = vmatpush.msra.mxu0 0.0
        %5170 = vmatpush.msra.mxu0 0.0
        %5171 = vmatpush.msra.mxu0 0.0
        %5172 = vmatpush.msra.mxu0 0.0
        %v5173 = vand.u32 %v5070, 4294901760
        %5174 = vmatpush.msra.mxu0 %v5173
        %v5175 = vand.u32 %v5068, 4294901760
        %5176 = vmatpush.msra.mxu0 %v5175
        %v5177 = vand.u32 %v5073, 4294901760
        %v5178 = vsub.f32 %v5073, %v5177
        %v5179 = vand.u32 %v5178, 4294901760
        %5180 = vmatmul.f32.gmra.mxu0 %v5179
        %v5181 = vpop.f32.mrf.mxu0
        %v5182 = vadd.f32 %v5157, %v5181
        %5183 = vdwg.mxu0
        %5184 = vmatpush.msra.mxu0 0.0
        %5185 = vmatpush.msra.mxu0 0.0
        %5186 = vmatpush.msra.mxu0 0.0
        %5187 = vmatpush.msra.mxu0 0.0
        %5188 = vmatpush.msra.mxu0 0.0
        %5189 = vmatpush.msra.mxu0 0.0
        %5190 = vmatpush.msra.mxu0 0.0
        %5191 = vmatpush.msra.mxu0 0.0
        %5192 = vmatpush.msra.mxu0 0.0
        %5193 = vmatpush.msra.mxu0 0.0
        %5194 = vmatpush.msra.mxu0 0.0
        %5195 = vmatpush.msra.mxu0 0.0
        %5196 = vmatpush.msra.mxu0 0.0
        %5197 = vmatpush.msra.mxu0 0.0
        %v5198 = vand.u32 %v5070, 4294901760
        %v5199 = vsub.f32 %v5070, %v5198
        %v5200 = vand.u32 %v5199, 4294901760
        %5201 = vmatpush.msra.mxu0 %v5200
        %v5202 = vand.u32 %v5068, 4294901760
        %v5203 = vsub.f32 %v5068, %v5202
        %v5204 = vand.u32 %v5203, 4294901760
        %5205 = vmatpush.msra.mxu0 %v5204
        %v5206 = vand.u32 %v5073, 4294901760
        %5207 = vmatmul.f32.gmra.mxu0 %v5206
        %v5208 = vpop.f32.mrf.mxu0
        %v5209 = vadd.f32 %v5182, %v5208
        %5210 = vdwg.mxu0
        %5211 = vmatpush.msra.mxu0 0.0
        %5212 = vmatpush.msra.mxu0 0.0
        %5213 = vmatpush.msra.mxu0 0.0
        %5214 = vmatpush.msra.mxu0 0.0
        %5215 = vmatpush.msra.mxu0 0.0
        %5216 = vmatpush.msra.mxu0 0.0
        %5217 = vmatpush.msra.mxu0 0.0
        %5218 = vmatpush.msra.mxu0 0.0
        %5219 = vmatpush.msra.mxu0 0.0
        %5220 = vmatpush.msra.mxu0 0.0
        %5221 = vmatpush.msra.mxu0 0.0
        %5222 = vmatpush.msra.mxu0 0.0
        %5223 = vmatpush.msra.mxu0 0.0
        %5224 = vmatpush.msra.mxu0 0.0
        %v5225 = vand.u32 %v5070, 4294901760
        %5226 = vmatpush.msra.mxu0 %v5225
        %v5227 = vand.u32 %v5068, 4294901760
        %5228 = vmatpush.msra.mxu0 %v5227
        %v5229 = vand.u32 %v5073, 4294901760
        %5230 = vmatmul.f32.gmra.mxu0 %v5229
        %v5231 = vpop.f32.mrf.mxu0
        %v5232 = vadd.f32 %v5209, %v5231
        %5233 = vdwg.mxu0
        %5235 = vrot.lane.b32.xlu0 %v4018, 4
        %v5236 = vpop.permute.xlu0 %5235
        %5239 = vrot.lane.b32.xlu0 %v4625, 8
        %v5240 = vpop.permute.xlu0 %5239
        %5243 = vrot.lane.b32.xlu0 %v5232, 12
        %v5244 = vpop.permute.xlu0 %5243
        %v5246 = vsel %vm2840, %v3411, %v5236
        %v5247 = vsel %vm1206, %v5246, %v5240
        %vm5248 = vcmask 97280
        %v5249 = vsel %vm5248, %v5247, %v5244
        %v5250 = vld [vmem:[%s746] sm:$0x1]
        %v5251 = vld [vmem:[%s749] sm:$0x1]
        %v5252 = vadd.f32 %v5251, 1.0
        %v5254 = vperm.slane %v5252, 0
        %v5256 = vmul.f32 %v5254, %v5249
        %v5258 = vperm.slane %v5250, 0
        %v5260 = vadd.f32 %v5258, %v5256
        %v5261 = vld [vmem:[%s15] sm:$0xff]
        %v5262 = vld [vmem:[%s15 + $0x8] sm:$0xff]
        %v5263 = vld [vmem:[%s16] sm:$0x1]
        %v5265 = vperm.slane %v5263, 0
        %v5268 = vsel %vm779, %v5260, 0
        %5270 = vmatpush.msra.mxu0 0.0
        %5271 = vmatpush.msra.mxu0 0.0
        %5272 = vmatpush.msra.mxu0 0.0
        %5273 = vmatpush.msra.mxu0 0.0
        %5274 = vmatpush.msra.mxu0 0.0
        %5275 = vmatpush.msra.mxu0 0.0
        %5276 = vmatpush.msra.mxu0 0.0
        %5277 = vmatpush.msra.mxu0 0.0
        %5278 = vmatpush.msra.mxu0 0.0
        %5279 = vmatpush.msra.mxu0 0.0
        %5280 = vmatpush.msra.mxu0 0.0
        %5281 = vmatpush.msra.mxu0 0.0
        %5282 = vmatpush.msra.mxu0 0.0
        %5283 = vmatpush.msra.mxu0 0.0
        %v5284 = vand.u32 %v5262, 4294901760
        %5285 = vmatpush.msra.mxu0 %v5284
        %v5286 = vand.u32 %v5261, 4294901760
        %5287 = vmatpush.msra.mxu0 %v5286
        %v5288 = vand.u32 %v5268, 4294901760
        %v5289 = vsub.f32 %v5268, %v5288
        %v5290 = vand.u32 %v5289, 4294901760
        %v5291 = vsub.f32 %v5289, %v5290
        %v5292 = vand.u32 %v5291, 4294901760
        %5293 = vmatmul.f32.gmra.mxu0 %v5292
        %v5294 = vpop.f32.mrf.mxu0
        %v5295 = vadd.f32 %v5265, %v5294
        %5296 = vdwg.mxu0
        %5297 = vmatpush.msra.mxu0 0.0
        %5298 = vmatpush.msra.mxu0 0.0
        %5299 = vmatpush.msra.mxu0 0.0
        %5300 = vmatpush.msra.mxu0 0.0
        %5301 = vmatpush.msra.mxu0 0.0
        %5302 = vmatpush.msra.mxu0 0.0
        %5303 = vmatpush.msra.mxu0 0.0
        %5304 = vmatpush.msra.mxu0 0.0
        %5305 = vmatpush.msra.mxu0 0.0
        %5306 = vmatpush.msra.mxu0 0.0
        %5307 = vmatpush.msra.mxu0 0.0
        %5308 = vmatpush.msra.mxu0 0.0
        %5309 = vmatpush.msra.mxu0 0.0
        %5310 = vmatpush.msra.mxu0 0.0
        %v5311 = vand.u32 %v5262, 4294901760
        %v5312 = vsub.f32 %v5262, %v5311
        %v5313 = vand.u32 %v5312, 4294901760
        %v5314 = vsub.f32 %v5312, %v5313
        %v5315 = vand.u32 %v5314, 4294901760
        %5316 = vmatpush.msra.mxu0 %v5315
        %v5317 = vand.u32 %v5261, 4294901760
        %v5318 = vsub.f32 %v5261, %v5317
        %v5319 = vand.u32 %v5318, 4294901760
        %v5320 = vsub.f32 %v5318, %v5319
        %v5321 = vand.u32 %v5320, 4294901760
        %5322 = vmatpush.msra.mxu0 %v5321
        %v5323 = vand.u32 %v5268, 4294901760
        %5324 = vmatmul.f32.gmra.mxu0 %v5323
        %v5325 = vpop.f32.mrf.mxu0
        %v5326 = vadd.f32 %v5295, %v5325
        %5327 = vdwg.mxu0
        %5328 = vmatpush.msra.mxu0 0.0
        %5329 = vmatpush.msra.mxu0 0.0
        %5330 = vmatpush.msra.mxu0 0.0
        %5331 = vmatpush.msra.mxu0 0.0
        %5332 = vmatpush.msra.mxu0 0.0
        %5333 = vmatpush.msra.mxu0 0.0
        %5334 = vmatpush.msra.mxu0 0.0
        %5335 = vmatpush.msra.mxu0 0.0
        %5336 = vmatpush.msra.mxu0 0.0
        %5337 = vmatpush.msra.mxu0 0.0
        %5338 = vmatpush.msra.mxu0 0.0
        %5339 = vmatpush.msra.mxu0 0.0
        %5340 = vmatpush.msra.mxu0 0.0
        %5341 = vmatpush.msra.mxu0 0.0
        %v5342 = vand.u32 %v5262, 4294901760
        %v5343 = vsub.f32 %v5262, %v5342
        %5344 = vmatpush.msra.mxu0 %v5343
        %v5345 = vand.u32 %v5261, 4294901760
        %v5346 = vsub.f32 %v5261, %v5345
        %5347 = vmatpush.msra.mxu0 %v5346
        %v5348 = vand.u32 %v5268, 4294901760
        %v5349 = vsub.f32 %v5268, %v5348
        %5350 = vmatmul.f32.gmra.mxu0 %v5349
        %v5351 = vpop.f32.mrf.mxu0
        %v5352 = vadd.f32 %v5326, %v5351
        %5353 = vdwg.mxu0
        %5354 = vmatpush.msra.mxu0 0.0
        %5355 = vmatpush.msra.mxu0 0.0
        %5356 = vmatpush.msra.mxu0 0.0
        %5357 = vmatpush.msra.mxu0 0.0
        %5358 = vmatpush.msra.mxu0 0.0
        %5359 = vmatpush.msra.mxu0 0.0
        %5360 = vmatpush.msra.mxu0 0.0
        %5361 = vmatpush.msra.mxu0 0.0
        %5362 = vmatpush.msra.mxu0 0.0
        %5363 = vmatpush.msra.mxu0 0.0
        %5364 = vmatpush.msra.mxu0 0.0
        %5365 = vmatpush.msra.mxu0 0.0
        %5366 = vmatpush.msra.mxu0 0.0
        %5367 = vmatpush.msra.mxu0 0.0
        %v5368 = vand.u32 %v5262, 4294901760
        %5369 = vmatpush.msra.mxu0 %v5368
        %v5370 = vand.u32 %v5261, 4294901760
        %5371 = vmatpush.msra.mxu0 %v5370
        %v5372 = vand.u32 %v5268, 4294901760
        %v5373 = vsub.f32 %v5268, %v5372
        %v5374 = vand.u32 %v5373, 4294901760
        %5375 = vmatmul.f32.gmra.mxu0 %v5374
        %v5376 = vpop.f32.mrf.mxu0
        %v5377 = vadd.f32 %v5352, %v5376
        %5378 = vdwg.mxu0
        %5379 = vmatpush.msra.mxu0 0.0
        %5380 = vmatpush.msra.mxu0 0.0
        %5381 = vmatpush.msra.mxu0 0.0
        %5382 = vmatpush.msra.mxu0 0.0
        %5383 = vmatpush.msra.mxu0 0.0
        %5384 = vmatpush.msra.mxu0 0.0
        %5385 = vmatpush.msra.mxu0 0.0
        %5386 = vmatpush.msra.mxu0 0.0
        %5387 = vmatpush.msra.mxu0 0.0
        %5388 = vmatpush.msra.mxu0 0.0
        %5389 = vmatpush.msra.mxu0 0.0
        %5390 = vmatpush.msra.mxu0 0.0
        %5391 = vmatpush.msra.mxu0 0.0
        %5392 = vmatpush.msra.mxu0 0.0
        %v5393 = vand.u32 %v5262, 4294901760
        %v5394 = vsub.f32 %v5262, %v5393
        %v5395 = vand.u32 %v5394, 4294901760
        %5396 = vmatpush.msra.mxu0 %v5395
        %v5397 = vand.u32 %v5261, 4294901760
        %v5398 = vsub.f32 %v5261, %v5397
        %v5399 = vand.u32 %v5398, 4294901760
        %5400 = vmatpush.msra.mxu0 %v5399
        %v5401 = vand.u32 %v5268, 4294901760
        %5402 = vmatmul.f32.gmra.mxu0 %v5401
        %v5403 = vpop.f32.mrf.mxu0
        %v5404 = vadd.f32 %v5377, %v5403
        %5405 = vdwg.mxu0
        %5406 = vmatpush.msra.mxu0 0.0
        %5407 = vmatpush.msra.mxu0 0.0
        %5408 = vmatpush.msra.mxu0 0.0
        %5409 = vmatpush.msra.mxu0 0.0
        %5410 = vmatpush.msra.mxu0 0.0
        %5411 = vmatpush.msra.mxu0 0.0
        %5412 = vmatpush.msra.mxu0 0.0
        %5413 = vmatpush.msra.mxu0 0.0
        %5414 = vmatpush.msra.mxu0 0.0
        %5415 = vmatpush.msra.mxu0 0.0
        %5416 = vmatpush.msra.mxu0 0.0
        %5417 = vmatpush.msra.mxu0 0.0
        %5418 = vmatpush.msra.mxu0 0.0
        %5419 = vmatpush.msra.mxu0 0.0
        %v5420 = vand.u32 %v5262, 4294901760
        %5421 = vmatpush.msra.mxu0 %v5420
        %v5422 = vand.u32 %v5261, 4294901760
        %5423 = vmatpush.msra.mxu0 %v5422
        %v5424 = vand.u32 %v5268, 4294901760
        %5425 = vmatmul.f32.gmra.mxu0 %v5424
        %v5426 = vpop.f32.mrf.mxu0
        %v5427 = vadd.f32 %v5404, %v5426
        %5428 = vdwg.mxu0
        %v5429 = vmul.f32 %v5427, %v1159
        %5430 = vst [vmem:[%s699] sm:$0xff] %v5429
        %s5431 = sand.u32 %s456, 1
        %s5432 = scalar_lea.sflag [#allocation3], %s5431
        %s5433 = sand.u32 %s456, 1
        %s5434 = smul.addr %s5433, 8
        %s5435 = scalar_lea.vmem [#allocation2], %s5434
        %s5436 = sand.u32 %s484, 1
        %s5437 = scalar_lea.sflag [#allocation5], %s5436
        %s5438 = sand.u32 %s484, 1
        %s5439 = smul.addr %s5438, 128
        %s5440 = scalar_lea.vmem [#allocation4], %s5439
        // Predicated region
        $region89: #{tpu_custom_call.1} parent=87 // pred_check
          %p5441 = pneg %p466
        $region90: #{tpu_custom_call.1} parent=87 // pred_check_branch
          %5443 = sbr.rel (%p5441) target = $region92
        $region91: #{tpu_custom_call.1} parent=87 // pred_region
          %5445 = vsyncadd %s5432, 0
          %s5446 = smul.addr %s40, 2
          %s5447 = sadd.s32 %s41, %s5446
          %s5448 = smul.addr %s5447, 8
          %s5449 = scalar_lea.hbm %s17, %s5448
          %s5451 = sshll.u32 %s5435, 4
          %s5452 = int_to_ptr.vmem [resolvable:$true] %s5451
          %s5453 = sshll.u32 %s5449, 4
          %s5454 = int_to_ptr.hbm [resolvable:$true] %s5453
          %5456 = dma.vmem_to_hbm [thread:$0]  %s5452, 128, %s5454, %s5432
        $region92: #{tpu_custom_call.1} parent=87 // pred_fallthru
          _
        // Predicated region
        $region93: #{tpu_custom_call.1} parent=87 // pred_check
          %p5457 = pneg %p494
        $region94: #{tpu_custom_call.1} parent=87 // pred_check_branch
          %5459 = sbr.rel (%p5457) target = $region96
        $region95: #{tpu_custom_call.1} parent=87 // pred_region
          %s5460 = smul.u32 8, %s41
          %5462 = vsyncadd %s5437, 0
          %s5463 = smul.addr %s5460, 2
          %s5464 = smul.addr %s40, 32
          %s5465 = sadd.s32 %s5463, %s5464
          %s5466 = smul.addr %s5465, 8
          %s5467 = scalar_lea.hbm %s18, %s5466
          %s5468 = sshll.u32 %s5440, 4
          %s5469 = int_to_ptr.vmem [resolvable:$true] %s5468
          %s5470 = sshll.u32 %s5467, 4
          %s5471 = int_to_ptr.hbm [resolvable:$true] %s5470
          %5476 = dma.vmem_to_hbm [thread:$0]  %s5469, 2048, %s5471, %s5437, 128, 128, 8
        $region96: #{tpu_custom_call.1} parent=87 // pred_fallthru
          _
      $region88: #{tpu_custom_call.1} parent=5 // pred_fallthru
        _
      %p5477 = scmp.le.s32.totalorder 2, %s31
      // Predicated region
      $region97: #{tpu_custom_call.1} parent=5 // pred_check
        %p5478 = pneg %p5477
      $region98: #{tpu_custom_call.1} parent=5 // pred_check_branch
        %5480 = sbr.rel (%p5478) target = $region100
      $region99: #{tpu_custom_call.1} parent=5 // pred_region
        %s5481 = ssub.s32 %s31, 2
        // Predicated region
        $region101: #{tpu_custom_call.1} parent=99 // pred_check
          %p5482 = pneg %p472
        $region102: #{tpu_custom_call.1} parent=99 // pred_check_branch
          %5484 = sbr.rel (%p5482) target = $region104
        $region103: #{tpu_custom_call.1} parent=99 // pred_region
          %s5485 = sand.u32 %s457, 1
          %s5486 = scalar_lea.sflag [#allocation3], %s5485
          %s5487 = sand.u32 %s457, 1
          %s5488 = smul.addr %s5487, 8
          %s5489 = scalar_lea.vmem [#allocation2], %s5488
          %5491 = dma.done %s5486, 128
        $region104: #{tpu_custom_call.1} parent=99 // pred_fallthru
          _
        // Predicated region
        $region105: #{tpu_custom_call.1} parent=99 // pred_check
          %p5492 = pneg %p500
        $region106: #{tpu_custom_call.1} parent=99 // pred_check_branch
          %5494 = sbr.rel (%p5492) target = $region108
        $region107: #{tpu_custom_call.1} parent=99 // pred_region
          %s5495 = sand.u32 %s485, 1
          %s5496 = scalar_lea.sflag [#allocation5], %s5495
          %s5497 = sand.u32 %s485, 1
          %s5498 = smul.addr %s5497, 128
          %s5499 = scalar_lea.vmem [#allocation4], %s5498
          %5501 = dma.done %s5496, 2048
        $region108: #{tpu_custom_call.1} parent=99 // pred_fallthru
          _
      $region100: #{tpu_custom_call.1} parent=5 // pred_fallthru
        _
    $region6: #{tpu_custom_call.1} parent=1 // loop_footer
      %s35 = sadd.s32 1, %s31
    $region7: #{tpu_custom_call.1} parent=1 // loop_footer_branch
      %30 = sbr.rel target = $region3
    $region8: #{tpu_custom_call.1} parent=1 // loop_exit
      _
    %5502 = vsyncpa [#allocation3], 1
    %s5503 = scalar_lea.sflag [#allocation3], 1
    %5504 = vsyncpa %s5503, 1
    %5505 = vsyncpa [#allocation5], 1
    %s5506 = scalar_lea.sflag [#allocation5], 1
    %5507 = vsyncpa %s5506, 1

</llo_original>
